<compile_context>
chip_gen: v7x
topology: tpu7x:2x2x1
jax: 0.10.0
libtpu: 0.0.40
codegen_flags: <defaults>
</compile_context>

<pallas_src>
import math
import functools

import jax
import jax.numpy as jnp
from jax import lax
from jax.experimental import pallas as pl
from jax.experimental.pallas import tpu as pltpu


def _round_up(v, m):
    return -(-v // m) * m


def _elu(t):
    # ELU(alpha=1); clamp exp argument so the unselected branch never overflows.
    return jnp.where(t > 0, t, jnp.exp(jnp.minimum(t, 0.0)) - 1.0)


def _layer_norm(x, gamma, beta, eps):
    mean = jnp.mean(x, axis=-1, keepdims=True)
    xc = x - mean
    var = jnp.mean(xc * xc, axis=-1, keepdims=True)
    return xc * lax.rsqrt(var + eps) * gamma + beta


def transformer_layer_kernel(
    x_ref,
    wq_ref, bq_ref, wkv_ref, bkv_ref,
    wd_ref, bd_ref, ln1_g_ref, ln1_b_ref,
    w1_ref, b1_ref, w2_ref, b2_ref, ln2_g_ref, ln2_b_ref,
    oh_dh_ref, oh_hd_ref,
    o_ref,
    kv_ref, kvm_ref,
    *, hidden, head_size, ln_eps, seq_len, tail_mask,
):
    f32 = jnp.float32
    bf16 = jnp.bfloat16
    D = hidden

    phase = pl.program_id(1)
    s_idx = pl.program_id(2)
    n_s = pl.num_programs(2)

    x_b = x_ref[0]                       # (TS, D) bf16 activation tile
    ts = x_b.shape[0]

    # Zero the KV accumulator at the start of each batch element.
    @pl.when(jnp.logical_and(phase == 0, s_idx == 0))
    def _init():
        kv_ref[...] = jnp.zeros_like(kv_ref)

    def head_inv_norm(e):
        # per-head 1/||e||: (TS,D)@(D,H) one-hot reduce (f32), rsqrt on (TS,H),
        # then (TS,H)@(H,D) one-hot expand back to (TS,D).  Replaces the former
        # (TS,D)@(D,D) same-head-mask matmul (TS*D^2 -> 2*TS*D*H flops) and keeps
        # the reduction in f32.
        ssq = jnp.dot(e * e, oh_dh_ref[...], preferred_element_type=f32)
        inv = lax.rsqrt(ssq + 1e-12)
        return jnp.dot(inv, oh_hd_ref[...], preferred_element_type=f32)

    # ---------------- phase 0: accumulate KV = nk^T @ v over the sequence -------
    @pl.when(phase == 0)
    def _accumulate_kv():
        # fused K|V projection: (TS, D) @ (D, 2D)
        kvp = jnp.dot(x_b, wkv_ref[...], preferred_element_type=f32) + bkv_ref[...]
        k = kvp[:, :D]
        v = kvp[:, D:]

        ek = _elu(k)
        nk = ek * head_inv_norm(ek)
        if tail_mask:
            # zero padded sequence rows so they do not contribute to KV
            row = s_idx * ts + lax.broadcasted_iota(jnp.int32, (ts, 1), 0)
            nk = jnp.where(row < seq_len, nk, 0.0)

        # kv += nk^T @ v  (contract over the sequence-tile dim)
        kv_ref[...] += lax.dot_general(
            nk.astype(bf16), v.astype(bf16),
            dimension_numbers=(((0,), (0,)), ((), ())),
            preferred_element_type=f32)

        # Last tile: apply the block-diagonal (same-head) mask once per batch and
        # cache a bf16 copy used by every phase-1 tile.
        @pl.when(s_idx == n_s - 1)
        def _finalize_kv():
            blockmask = jnp.dot(oh_dh_ref[...], oh_hd_ref[...],
                                preferred_element_type=f32)    # exact 0/1
            kvm_ref[...] = (kv_ref[...] * blockmask).astype(bf16)

    # ---------------- phase 1: apply attention + FFN per sequence tile ----------
    @pl.when(phase == 1)
    def _apply():
        inv_sqrt_dh = 1.0 / math.sqrt(head_size)
        x_f = x_b.astype(f32)

        q = jnp.dot(x_b, wq_ref[...], preferred_element_type=f32) + bq_ref[...]
        eq = _elu(q)
        nq = eq * (head_inv_norm(eq) * inv_sqrt_dh)    # normalized + pre-scaled

        # NOTE: when head_size is a multiple of 128 a per-head batched dot_general
        # on a free (TS,H,Dh) reshape would avoid the block-diagonal full-width
        # product; the mask trick is kept here (relayout-free, and Dh < 128 in the
        # tested configs).
        ctx = jnp.dot(nq.astype(bf16), kvm_ref[...], preferred_element_type=f32)

        # attention output projection + residual + LayerNorm
        attn = jnp.dot(ctx.astype(bf16), wd_ref[...],
                       preferred_element_type=f32) + bd_ref[...]
        h1 = _layer_norm(attn + x_f, ln1_g_ref[...], ln1_b_ref[...], ln_eps)

        # feed-forward: dense1 -> gelu(erf) -> dense2 -> residual -> LayerNorm
        ff = jnp.dot(h1.astype(bf16), w1_ref[...],
                     preferred_element_type=f32) + b1_ref[...]
        ff = ff * 0.5 * (1.0 + lax.erf(ff * (1.0 / math.sqrt(2.0))))
        ff = jnp.dot(ff.astype(bf16), w2_ref[...],
                     preferred_element_type=f32) + b2_ref[...]
        o_ref[0] = _layer_norm(ff + h1, ln2_g_ref[...], ln2_b_ref[...], ln_eps)


def _vmem_limit_bytes():
    """Per-generation VMEM limit: ~100 MiB on v5e/v6e (128 MiB physical),
    ~56 MiB on v7x (64 MiB physical); conservative default if query fails."""
    try:
        cap = pltpu.get_tpu_info().vmem_capacity_bytes
    except Exception:
        cap = 64 * 1024 * 1024
    return int(min(cap - cap // 8, 100 * 1024 * 1024))


def _pick_seq_tile(S, D, I, vmem_limit):
    """Sequence tile: a multiple of 128 (MXU M dim), as large as fits next to the
    single-buffered weights; tiny sequences use one tile rounded up to 8."""
    if S <= 128:
        return _round_up(S, 8)
    weight_bytes = 2 * (4 * D * D + 2 * D * I)       # bf16 wq + wkv + wd, w1 + w2
    kv_bytes = D * D * (4 + 2)                       # f32 KV accum + bf16 masked KV
    for ts in (512, 384, 256, 128):
        act = ts * D * 2 * 2                         # bf16 x tile, double buffered
        act += ts * D * 4 * 2                        # f32 output tile, double buffered
        act += ts * I * 4                            # f32 FFN intermediate (transient)
        act += ts * 2 * D * 4 * 2                    # f32 q / k|v projections (transient)
        if weight_bytes + kv_bytes + act <= 0.9 * vmem_limit:
            return ts
    return 128


def transformer_layer(x, params, *, n_heads, ln_eps, seq_tile=None):
    B, S, D = x.shape
    assert D % n_heads == 0
    head_size = D // n_heads
    I = params["w1"].shape[1]
    bf16 = jnp.bfloat16

    vmem_limit = _vmem_limit_bytes()
    TS = seq_tile if seq_tile is not None else _pick_seq_tile(S, D, I, vmem_limit)
    TS = min(TS, _round_up(S, 8))
    NS = -(-S // TS)
    S_pad = NS * TS

    # Stream activations in bf16 (x is read once per phase -> halves x HBM traffic).
    x_b = x.astype(bf16)
    if S_pad != S:
        x_b = jnp.pad(x_b, ((0, 0), (0, S_pad - S), (0, 0)))

    # (D,H)/(H,D) head one-hots: per-head reduce/expand + same-head mask derivation.
    hid = jnp.arange(D, dtype=jnp.int32) // head_size
    oh_dh = (hid[:, None] == jnp.arange(n_heads, dtype=jnp.int32)[None, :]
             ).astype(jnp.float32)
    oh_hd = oh_dh.T

    # bf16 matmul operands, fused K|V projection; f32 biases / LN params.
    wq = params["wq"].astype(bf16)
    wkv = jnp.concatenate([params["wk"], params["wv"]], axis=1).astype(bf16)
    bkv = jnp.concatenate([params["bk"], params["bv"]], axis=1)
    wd = params["wd"].astype(bf16)
    w1 = params["w1"].astype(bf16)
    w2 = params["w2"].astype(bf16)

    kernel = functools.partial(
        transformer_layer_kernel,
        hidden=D, head_size=head_size, ln_eps=ln_eps,
        seq_len=S, tail_mask=(S_pad != S))

    args = (x_b, wq, params["bq"], wkv, bkv, wd, params["bd"],
            params["ln1_g"], params["ln1_b"],
            w1, params["b1"], w2, params["b2"],
            params["ln2_g"], params["ln2_b"],
            oh_dh, oh_hd)

    def run(single_buffer_weights):
        def const_spec(shape):
            n = len(shape)
            idx = lambda *_: (0,) * n
            if single_buffer_weights:
                # Constant-index-map inputs are DMA'd once; single-buffer them so
                # bf16 weights are not held twice in VMEM (key on v7x's 64 MiB).
                return pl.BlockSpec(shape, idx, pipeline_mode=pl.Buffered(1))
            return pl.BlockSpec(shape, idx)

        in_specs = [
            pl.BlockSpec((1, TS, D), lambda b, p, s: (b, s, 0)),   # x tile
            const_spec((D, D)), const_spec((1, D)),                # wq, bq
            const_spec((D, 2 * D)), const_spec((1, 2 * D)),        # wkv, bkv
            const_spec((D, D)), const_spec((1, D)),                # wd, bd
            const_spec((1, D)), const_spec((1, D)),                # ln1 gamma, beta
            const_spec((D, I)), const_spec((1, I)),                # w1, b1
            const_spec((I, D)), const_spec((1, D)),                # w2, b2
            const_spec((1, D)), const_spec((1, D)),                # ln2 gamma, beta
            const_spec((D, n_heads)), const_spec((n_heads, D)),    # head one-hots
        ]

        return pl.pallas_call(
            kernel,
            out_shape=jax.ShapeDtypeStruct((B, S_pad, D), jnp.float32),
            grid=(B, 2, NS),
            in_specs=in_specs,
            # Freeze the output block index while p == 0 so phase 0 never writes
            # untouched (garbage) tiles back to HBM.
            out_specs=pl.BlockSpec((1, TS, D), lambda b, p, s: (b, s * p, 0)),
            scratch_shapes=[pltpu.VMEM((D, D), jnp.float32),    # KV accumulator
                            pltpu.VMEM((D, D), jnp.bfloat16)],  # masked bf16 KV
            compiler_params=pltpu.CompilerParams(
                dimension_semantics=("parallel", "arbitrary", "arbitrary"),
                vmem_limit_bytes=vmem_limit),
        )(*args)

    try:
        out = jax.block_until_ready(run(True))
    except Exception:
        # pipeline_mode=pl.Buffered(1) not supported on this JAX version: fall
        # back to default (double-buffered) constant weights.
        out = jax.block_until_ready(run(False))

    return out[:, :S, :] if S_pad != S else out


def transformer_layer_ref(x, params, *, n_heads, ln_eps):
    """Pure-JAX f32 reference mirroring the PyTorch forward (dropout = identity)."""
    B, S, D = x.shape
    Dh = D // n_heads

    def lin(t, w, b):
        return t @ w + b[0]

    q = lin(x, params["wq"], params["bq"]).reshape(B, S, n_heads, Dh).transpose(0, 2, 1, 3)
    k = lin(x, params["wk"], params["bk"]).reshape(B, S, n_heads, Dh).transpose(0, 2, 1, 3)
    v = lin(x, params["wv"], params["bv"]).reshape(B, S, n_heads, Dh).transpose(0, 2, 1, 3)

    elu = lambda t: jnp.where(t > 0, t, jnp.exp(jnp.minimum(t, 0.0)) - 1.0)
    eq, ek = elu(q), elu(k)
    nq = eq / jnp.linalg.norm(eq, axis=-1, keepdims=True)
    nk = ek / jnp.linalg.norm(ek, axis=-1, keepdims=True)
    kv = jnp.einsum("bhsd,bhse->bhde", nk, v)
    ctx = jnp.einsum("bhsd,bhde->bhse", nq, kv) / math.sqrt(Dh)
    ctx = ctx.transpose(0, 2, 1, 3).reshape(B, S, D)

    attn = lin(ctx, params["wd"], params["bd"])
    attn_ln = _layer_norm(attn + x, params["ln1_g"][0], params["ln1_b"][0], ln_eps)

    h = lin(attn_ln, params["w1"], params["b1"])
    h = h * 0.5 * (1.0 + lax.erf(h / math.sqrt(2.0)))
    h = lin(h, params["w2"], params["b2"])
    return _layer_norm(h + attn_ln, params["ln2_g"][0], params["ln2_b"][0], ln_eps)


def init_params(key, hidden, inter):
    ks = jax.random.split(key, 8)
    s = 0.05
    return {
        "wq": s * jax.random.normal(ks[0], (hidden, hidden), jnp.float32),
        "wk": s * jax.random.normal(ks[1], (hidden, hidden), jnp.float32),
        "wv": s * jax.random.normal(ks[2], (hidden, hidden), jnp.float32),
        "wd": s * jax.random.normal(ks[3], (hidden, hidden), jnp.float32),
        "w1": s * jax.random.normal(ks[4], (hidden, inter), jnp.float32),
        "w2": s * jax.random.normal(ks[5], (inter, hidden), jnp.float32),
        "bq": 0.01 * jax.random.normal(ks[6], (1, hidden), jnp.float32),
        "bk": jnp.zeros((1, hidden), jnp.float32),
        "bv": jnp.zeros((1, hidden), jnp.float32),
        "bd": jnp.zeros((1, hidden), jnp.float32),
        "b1": 0.01 * jax.random.normal(ks[7], (1, inter), jnp.float32),
        "b2": jnp.zeros((1, hidden), jnp.float32),
        "ln1_g": jnp.ones((1, hidden), jnp.float32),
        "ln1_b": jnp.zeros((1, hidden), jnp.float32),
        "ln2_g": jnp.ones((1, hidden), jnp.float32),
        "ln2_b": jnp.zeros((1, hidden), jnp.float32),
    }


if __name__ == "__main__":
    LN_EPS = 1e-12
    key = jax.random.PRNGKey(0)
    k1, k2, k3, k4 = jax.random.split(key, 4)

    # ---- Test 1: small shapes, single sequence tile --------------------------
    B, S, D, H, I = 2, 8, 32, 2, 64
    x = jax.random.normal(k1, (B, S, D), jnp.float32)
    params = init_params(k2, D, I)

    out = transformer_layer(x, params, n_heads=H, ln_eps=LN_EPS)
    out = jax.block_until_ready(out)
    ref = transformer_layer_ref(x, params, n_heads=H, ln_eps=LN_EPS)
    assert out.shape == (B, S, D)
    # bf16 matmul operands / bf16 activation streaming -> loosened tolerance.
    assert jnp.allclose(out, ref, rtol=5e-2, atol=5e-2), "test1 mismatch vs reference"

    # ---- Test 2: multi-tile sequence with tail padding ------------------------
    # Exercises the phase-0 tail mask, the frozen phase-0 output index and the
    # cached block-diagonal bf16 KV.
    B2, S2, D2, H2, I2 = 1, 200, 256, 4, 512
    x2 = jax.random.normal(k3, (B2, S2, D2), jnp.float32)
    params2 = init_params(k4, D2, I2)

    out2 = transformer_layer(x2, params2, n_heads=H2, ln_eps=LN_EPS, seq_tile=128)
    out2 = jax.block_until_ready(out2)
    ref2 = transformer_layer_ref(x2, params2, n_heads=H2, ln_eps=LN_EPS)
    assert out2.shape == (B2, S2, D2)
    assert jnp.allclose(out2, ref2, rtol=5e-2, atol=5e-2), "test2 mismatch vs reference"

    print("KERNEL_OK")
</pallas_src>

<mosaic_0001>
module attributes {stable_mosaic.version = 11 : i64} {
  func.func @transformer_layer_kernel(%arg0: i32, %arg1: i32, %arg2: i32, %arg3: memref<1x8x32xbf16, #tpu.memory_space<vmem>>, %arg4: memref<32x32xbf16, #tpu.memory_space<vmem>>, %arg5: memref<1x32xf32, #tpu.memory_space<vmem>>, %arg6: memref<32x64xbf16, #tpu.memory_space<vmem>>, %arg7: memref<1x64xf32, #tpu.memory_space<vmem>>, %arg8: memref<32x32xbf16, #tpu.memory_space<vmem>>, %arg9: memref<1x32xf32, #tpu.memory_space<vmem>>, %arg10: memref<1x32xf32, #tpu.memory_space<vmem>>, %arg11: memref<1x32xf32, #tpu.memory_space<vmem>>, %arg12: memref<32x64xbf16, #tpu.memory_space<vmem>>, %arg13: memref<1x64xf32, #tpu.memory_space<vmem>>, %arg14: memref<64x32xbf16, #tpu.memory_space<vmem>>, %arg15: memref<1x32xf32, #tpu.memory_space<vmem>>, %arg16: memref<1x32xf32, #tpu.memory_space<vmem>>, %arg17: memref<1x32xf32, #tpu.memory_space<vmem>>, %arg18: memref<32x2xf32, #tpu.memory_space<vmem>>, %arg19: memref<2x32xf32, #tpu.memory_space<vmem>>, %arg20: memref<1x8x32xf32, #tpu.memory_space<vmem>>, %arg21: memref<32x32xf32, #tpu.memory_space<vmem>>, %arg22: memref<32x32xbf16, #tpu.memory_space<vmem>>) attributes {dimension_semantics = [#tpu.dimension_semantics<parallel>, #tpu.dimension_semantics<arbitrary>, #tpu.dimension_semantics<arbitrary>], iteration_bounds = array<i64: 2, 2, 1>, scalar_prefetch = 0 : i64, scratch_operands = 2 : i64, tpu.core_type = #tpu.core_type<tc>, window_params = [{transform_indices = @transform_0, window_bounds = array<i64: 1, 8, 32>}, {pipeline_mode = #tpu.pipeline_mode<synchronous>, transform_indices = @transform_1, window_bounds = array<i64: 32, 32>}, {pipeline_mode = #tpu.pipeline_mode<synchronous>, transform_indices = @transform_2, window_bounds = array<i64: 1, 32>}, {pipeline_mode = #tpu.pipeline_mode<synchronous>, transform_indices = @transform_3, window_bounds = array<i64: 32, 64>}, {pipeline_mode = #tpu.pipeline_mode<synchronous>, transform_indices = @transform_4, window_bounds = array<i64: 1, 64>}, {pipeline_mode = #tpu.pipeline_mode<synchronous>, transform_indices = @transform_5, window_bounds = array<i64: 32, 32>}, {pipeline_mode = #tpu.pipeline_mode<synchronous>, transform_indices = @transform_6, window_bounds = array<i64: 1, 32>}, {pipeline_mode = #tpu.pipeline_mode<synchronous>, transform_indices = @transform_7, window_bounds = array<i64: 1, 32>}, {pipeline_mode = #tpu.pipeline_mode<synchronous>, transform_indices = @transform_8, window_bounds = array<i64: 1, 32>}, {pipeline_mode = #tpu.pipeline_mode<synchronous>, transform_indices = @transform_9, window_bounds = array<i64: 32, 64>}, {pipeline_mode = #tpu.pipeline_mode<synchronous>, transform_indices = @transform_10, window_bounds = array<i64: 1, 64>}, {pipeline_mode = #tpu.pipeline_mode<synchronous>, transform_indices = @transform_11, window_bounds = array<i64: 64, 32>}, {pipeline_mode = #tpu.pipeline_mode<synchronous>, transform_indices = @transform_12, window_bounds = array<i64: 1, 32>}, {pipeline_mode = #tpu.pipeline_mode<synchronous>, transform_indices = @transform_13, window_bounds = array<i64: 1, 32>}, {pipeline_mode = #tpu.pipeline_mode<synchronous>, transform_indices = @transform_14, window_bounds = array<i64: 1, 32>}, {pipeline_mode = #tpu.pipeline_mode<synchronous>, transform_indices = @transform_15, window_bounds = array<i64: 32, 2>}, {pipeline_mode = #tpu.pipeline_mode<synchronous>, transform_indices = @transform_16, window_bounds = array<i64: 2, 32>}, {transform_indices = @transform_17, window_bounds = array<i64: 1, 8, 32>}]} {
    %c0 = arith.constant 0 : index
    %c0_0 = arith.constant 0 : index
    %c0_1 = arith.constant 0 : index
    %0 = vector.load %arg3[%c0, %c0_0, %c0_1] : memref<1x8x32xbf16, #tpu.memory_space<vmem>>, vector<1x8x32xbf16>
    %1 = vector.shape_cast %0 : vector<1x8x32xbf16> to vector<8x32xbf16>
    %c0_i32 = arith.constant 0 : i32
    %2 = arith.cmpi eq, %arg1, %c0_i32 : i32
    %c0_i32_2 = arith.constant 0 : i32
    %3 = arith.cmpi eq, %arg2, %c0_i32_2 : i32
    %4 = arith.andi %2, %3 : i1
    %5 = arith.extui %4 : i1 to i32
    %c0_i32_3 = arith.constant 0 : i32
    %6 = arith.cmpi ne, %5, %c0_i32_3 : i32
    scf.if %6 {
      %cst = arith.constant 0.000000e+00 : f32
      %13 = vector.broadcast %cst : f32 to vector<32x32xf32>
      %c0_7 = arith.constant 0 : index
      %c0_8 = arith.constant 0 : index
      %14 = vector.load %arg21[%c0_7, %c0_8] : memref<32x32xf32, #tpu.memory_space<vmem>>, vector<32x32xf32>
      tpu.vector_store %arg21[%c0_7, %c0_8], %13 {strides = array<i32>} : memref<32x32xf32, #tpu.memory_space<vmem>>, vector<32x32xf32>,
    } else {
    }
    %c0_i32_4 = arith.constant 0 : i32
    %7 = arith.cmpi eq, %arg1, %c0_i32_4 : i32
    %8 = arith.extui %7 : i1 to i32
    %c0_i32_5 = arith.constant 0 : i32
    %9 = arith.cmpi ne, %8, %c0_i32_5 : i32
    scf.if %9 {
      %c0_7 = arith.constant 0 : index
      %c0_8 = arith.constant 0 : index
      %13 = vector.load %arg6[%c0_7, %c0_8] : memref<32x64xbf16, #tpu.memory_space<vmem>>, vector<32x64xbf16>
      %cst = arith.constant dense<0.000000e+00> : vector<8x64xf32>
      %14 = tpu.matmul %1, %13, %cst {dimension_numbers = #tpu.dot_dimension_numbers<[1], [0], [0], [1], [0, 0, 1, 1], [], []>} : vector<8x32xbf16>, vector<32x64xbf16>, vector<8x64xf32> -> vector<8x64xf32>
      %c0_9 = arith.constant 0 : index
      %c0_10 = arith.constant 0 : index
      %15 = vector.load %arg7[%c0_9, %c0_10] : memref<1x64xf32, #tpu.memory_space<vmem>>, vector<1x64xf32>
      %16 = vector.broadcast %15 : vector<1x64xf32> to vector<8x64xf32>
      %17 = arith.addf %14, %16 : vector<8x64xf32>
      %18 = vector.extract_strided_slice %17 {offsets = [0, 0], sizes = [8, 32], strides = [1, 1]} : vector<8x64xf32> to vector<8x32xf32>
      %19 = vector.extract_strided_slice %17 {offsets = [0, 32], sizes = [8, 32], strides = [1, 1]} : vector<8x64xf32> to vector<8x32xf32>
      %cst_11 = arith.constant 0.000000e+00 : f32
      %20 = vector.broadcast %cst_11 : f32 to vector<8x32xf32>
      %21 = arith.cmpf ogt, %18, %20 : vector<8x32xf32>
      %cst_12 = arith.constant 0.000000e+00 : f32
      %22 = vector.broadcast %cst_12 : f32 to vector<8x32xf32>
      %23 = arith.minimumf %18, %22 : vector<8x32xf32>
      %24 = math.exp %23 : vector<8x32xf32>
      %cst_13 = arith.constant 1.000000e+00 : f32
      %25 = vector.broadcast %cst_13 : f32 to vector<8x32xf32>
      %26 = arith.subf %24, %25 : vector<8x32xf32>
      %27 = arith.select %21, %18, %26 : vector<8x32xi1>, vector<8x32xf32>
      %28 = arith.mulf %27, %27 : vector<8x32xf32>
      %c0_14 = arith.constant 0 : index
      %c0_15 = arith.constant 0 : index
      %29 = vector.load %arg18[%c0_14, %c0_15] : memref<32x2xf32, #tpu.memory_space<vmem>>, vector<32x2xf32>
      %cst_16 = arith.constant dense<0.000000e+00> : vector<8x2xf32>
      %30 = tpu.matmul %28, %29, %cst_16 {dimension_numbers = #tpu.dot_dimension_numbers<[1], [0], [0], [1], [0, 0, 1, 1], [], []>} : vector<8x32xf32>, vector<32x2xf32>, vector<8x2xf32> -> vector<8x2xf32>
      %cst_17 = arith.constant 9.99999996E-13 : f32
      %31 = vector.broadcast %cst_17 : f32 to vector<8x2xf32>
      %32 = arith.addf %30, %31 : vector<8x2xf32>
      %33 = math.rsqrt %32 : vector<8x2xf32>
      %c0_18 = arith.constant 0 : index
      %c0_19 = arith.constant 0 : index
      %34 = vector.load %arg19[%c0_18, %c0_19] : memref<2x32xf32, #tpu.memory_space<vmem>>, vector<2x32xf32>
      %cst_20 = arith.constant dense<0.000000e+00> : vector<8x32xf32>
      %35 = tpu.matmul %33, %34, %cst_20 {dimension_numbers = #tpu.dot_dimension_numbers<[1], [0], [0], [1], [0, 0, 1, 1], [], []>} : vector<8x2xf32>, vector<2x32xf32>, vector<8x32xf32> -> vector<8x32xf32>
      %36 = arith.mulf %27, %35 : vector<8x32xf32>
      %c0_21 = arith.constant 0 : index
      %c0_22 = arith.constant 0 : index
      %37 = vector.load %arg21[%c0_21, %c0_22] : memref<32x32xf32, #tpu.memory_space<vmem>>, vector<32x32xf32>
      %38 = arith.truncf %36 : vector<8x32xf32> to vector<8x32xbf16>
      %39 = arith.truncf %19 : vector<8x32xf32> to vector<8x32xbf16>
      %cst_23 = arith.constant dense<0.000000e+00> : vector<32x32xf32>
      %40 = tpu.matmul %38, %39, %cst_23 {dimension_numbers = #tpu.dot_dimension_numbers<[0], [0], [1], [1], [0, 1, 1, 1], [], []>} : vector<8x32xbf16>, vector<8x32xbf16>, vector<32x32xf32> -> vector<32x32xf32>
      %41 = arith.addf %37, %40 : vector<32x32xf32>
      %c0_24 = arith.constant 0 : index
      %c0_25 = arith.constant 0 : index
      %42 = vector.load %arg21[%c0_24, %c0_25] : memref<32x32xf32, #tpu.memory_space<vmem>>, vector<32x32xf32>
      tpu.vector_store %arg21[%c0_24, %c0_25], %41 {strides = array<i32>} : memref<32x32xf32, #tpu.memory_space<vmem>>, vector<32x32xf32>,
      %c0_i32_26 = arith.constant 0 : i32
      %43 = arith.cmpi eq, %arg2, %c0_i32_26 : i32
      %44 = arith.extui %43 : i1 to i32
      %c0_i32_27 = arith.constant 0 : i32
      %45 = arith.cmpi ne, %44, %c0_i32_27 : i32
      scf.if %45 {
        %c0_28 = arith.constant 0 : index
        %c0_29 = arith.constant 0 : index
        %46 = vector.load %arg18[%c0_28, %c0_29] : memref<32x2xf32, #tpu.memory_space<vmem>>, vector<32x2xf32>
        %c0_30 = arith.constant 0 : index
        %c0_31 = arith.constant 0 : index
        %47 = vector.load %arg19[%c0_30, %c0_31] : memref<2x32xf32, #tpu.memory_space<vmem>>, vector<2x32xf32>
        %cst_32 = arith.constant dense<0.000000e+00> : vector<32x32xf32>
        %48 = tpu.matmul %46, %47, %cst_32 {dimension_numbers = #tpu.dot_dimension_numbers<[1], [0], [0], [1], [0, 0, 1, 1], [], []>} : vector<32x2xf32>, vector<2x32xf32>, vector<32x32xf32> -> vector<32x32xf32>
        %c0_33 = arith.constant 0 : index
        %c0_34 = arith.constant 0 : index
        %49 = vector.load %arg21[%c0_33, %c0_34] : memref<32x32xf32, #tpu.memory_space<vmem>>, vector<32x32xf32>
        %50 = arith.mulf %49, %48 : vector<32x32xf32>
        %51 = arith.truncf %50 : vector<32x32xf32> to vector<32x32xbf16>
        %c0_35 = arith.constant 0 : index
        %c0_36 = arith.constant 0 : index
        %52 = vector.load %arg22[%c0_35, %c0_36] : memref<32x32xbf16, #tpu.memory_space<vmem>>, vector<32x32xbf16>
        tpu.vector_store %arg22[%c0_35, %c0_36], %51 {strides = array<i32>} : memref<32x32xbf16, #tpu.memory_space<vmem>>, vector<32x32xbf16>,
      } else {
      }
    } else {
    }
    %c1_i32 = arith.constant 1 : i32
    %10 = arith.cmpi eq, %arg1, %c1_i32 : i32
    %11 = arith.extui %10 : i1 to i32
    %c0_i32_6 = arith.constant 0 : i32
    %12 = arith.cmpi ne, %11, %c0_i32_6 : i32
    scf.if %12 {
      %13 = arith.extf %1 : vector<8x32xbf16> to vector<8x32xf32>
      %c0_7 = arith.constant 0 : index
      %c0_8 = arith.constant 0 : index
      %14 = vector.load %arg4[%c0_7, %c0_8] : memref<32x32xbf16, #tpu.memory_space<vmem>>, vector<32x32xbf16>
      %cst = arith.constant dense<0.000000e+00> : vector<8x32xf32>
      %15 = tpu.matmul %1, %14, %cst {dimension_numbers = #tpu.dot_dimension_numbers<[1], [0], [0], [1], [0, 0, 1, 1], [], []>} : vector<8x32xbf16>, vector<32x32xbf16>, vector<8x32xf32> -> vector<8x32xf32>
      %c0_9 = arith.constant 0 : index
      %c0_10 = arith.constant 0 : index
      %16 = vector.load %arg5[%c0_9, %c0_10] : memref<1x32xf32, #tpu.memory_space<vmem>>, vector<1x32xf32>
      %17 = vector.broadcast %16 : vector<1x32xf32> to vector<8x32xf32>
      %18 = arith.addf %15, %17 : vector<8x32xf32>
      %cst_11 = arith.constant 0.000000e+00 : f32
      %19 = vector.broadcast %cst_11 : f32 to vector<8x32xf32>
      %20 = arith.cmpf ogt, %18, %19 : vector<8x32xf32>
      %cst_12 = arith.constant 0.000000e+00 : f32
      %21 = vector.broadcast %cst_12 : f32 to vector<8x32xf32>
      %22 = arith.minimumf %18, %21 : vector<8x32xf32>
      %23 = math.exp %22 : vector<8x32xf32>
      %cst_13 = arith.constant 1.000000e+00 : f32
      %24 = vector.broadcast %cst_13 : f32 to vector<8x32xf32>
      %25 = arith.subf %23, %24 : vector<8x32xf32>
      %26 = arith.select %20, %18, %25 : vector<8x32xi1>, vector<8x32xf32>
      %27 = arith.mulf %26, %26 : vector<8x32xf32>
      %c0_14 = arith.constant 0 : index
      %c0_15 = arith.constant 0 : index
      %28 = vector.load %arg18[%c0_14, %c0_15] : memref<32x2xf32, #tpu.memory_space<vmem>>, vector<32x2xf32>
      %cst_16 = arith.constant dense<0.000000e+00> : vector<8x2xf32>
      %29 = tpu.matmul %27, %28, %cst_16 {dimension_numbers = #tpu.dot_dimension_numbers<[1], [0], [0], [1], [0, 0, 1, 1], [], []>} : vector<8x32xf32>, vector<32x2xf32>, vector<8x2xf32> -> vector<8x2xf32>
      %cst_17 = arith.constant 9.99999996E-13 : f32
      %30 = vector.broadcast %cst_17 : f32 to vector<8x2xf32>
      %31 = arith.addf %29, %30 : vector<8x2xf32>
      %32 = math.rsqrt %31 : vector<8x2xf32>
      %c0_18 = arith.constant 0 : index
      %c0_19 = arith.constant 0 : index
      %33 = vector.load %arg19[%c0_18, %c0_19] : memref<2x32xf32, #tpu.memory_space<vmem>>, vector<2x32xf32>
      %cst_20 = arith.constant dense<0.000000e+00> : vector<8x32xf32>
      %34 = tpu.matmul %32, %33, %cst_20 {dimension_numbers = #tpu.dot_dimension_numbers<[1], [0], [0], [1], [0, 0, 1, 1], [], []>} : vector<8x2xf32>, vector<2x32xf32>, vector<8x32xf32> -> vector<8x32xf32>
      %cst_21 = arith.constant 2.500000e-01 : f32
      %35 = vector.broadcast %cst_21 : f32 to vector<8x32xf32>
      %36 = arith.mulf %34, %35 : vector<8x32xf32>
      %37 = arith.mulf %26, %36 : vector<8x32xf32>
      %38 = arith.truncf %37 : vector<8x32xf32> to vector<8x32xbf16>
      %c0_22 = arith.constant 0 : index
      %c0_23 = arith.constant 0 : index
      %39 = vector.load %arg22[%c0_22, %c0_23] : memref<32x32xbf16, #tpu.memory_space<vmem>>, vector<32x32xbf16>
      %cst_24 = arith.constant dense<0.000000e+00> : vector<8x32xf32>
      %40 = tpu.matmul %38, %39, %cst_24 {dimension_numbers = #tpu.dot_dimension_numbers<[1], [0], [0], [1], [0, 0, 1, 1], [], []>} : vector<8x32xbf16>, vector<32x32xbf16>, vector<8x32xf32> -> vector<8x32xf32>
      %41 = arith.truncf %40 : vector<8x32xf32> to vector<8x32xbf16>
      %c0_25 = arith.constant 0 : index
      %c0_26 = arith.constant 0 : index
      %42 = vector.load %arg8[%c0_25, %c0_26] : memref<32x32xbf16, #tpu.memory_space<vmem>>, vector<32x32xbf16>
      %cst_27 = arith.constant dense<0.000000e+00> : vector<8x32xf32>
      %43 = tpu.matmul %41, %42, %cst_27 {dimension_numbers = #tpu.dot_dimension_numbers<[1], [0], [0], [1], [0, 0, 1, 1], [], []>} : vector<8x32xbf16>, vector<32x32xbf16>, vector<8x32xf32> -> vector<8x32xf32>
      %c0_28 = arith.constant 0 : index
      %c0_29 = arith.constant 0 : index
      %44 = vector.load %arg9[%c0_28, %c0_29] : memref<1x32xf32, #tpu.memory_space<vmem>>, vector<1x32xf32>
      %45 = vector.broadcast %44 : vector<1x32xf32> to vector<8x32xf32>
      %46 = arith.addf %43, %45 : vector<8x32xf32>
      %47 = arith.addf %46, %13 : vector<8x32xf32>
      %c0_30 = arith.constant 0 : index
      %c0_31 = arith.constant 0 : index
      %48 = vector.load %arg10[%c0_30, %c0_31] : memref<1x32xf32, #tpu.memory_space<vmem>>, vector<1x32xf32>
      %c0_32 = arith.constant 0 : index
      %c0_33 = arith.constant 0 : index
      %49 = vector.load %arg11[%c0_32, %c0_33] : memref<1x32xf32, #tpu.memory_space<vmem>>, vector<1x32xf32>
      %cst_34 = arith.constant dense<0.000000e+00> : vector<8xf32>
      %50 = vector.multi_reduction <add>, %47, %cst_34 [1] : vector<8x32xf32> to vector<8xf32>
      %51 = vector.shape_cast %50 : vector<8xf32> to vector<8x1xf32>
      %cst_35 = arith.constant 3.200000e+01 : f32
      %52 = vector.broadcast %cst_35 : f32 to vector<8x1xf32>
      %53 = arith.divf %51, %52 : vector<8x1xf32>
      %54 = vector.broadcast %53 : vector<8x1xf32> to vector<8x32xf32>
      %55 = arith.subf %47, %54 : vector<8x32xf32>
      %56 = arith.mulf %55, %55 : vector<8x32xf32>
      %cst_36 = arith.constant dense<0.000000e+00> : vector<8xf32>
      %57 = vector.multi_reduction <add>, %56, %cst_36 [1] : vector<8x32xf32> to vector<8xf32>
      %58 = vector.shape_cast %57 : vector<8xf32> to vector<8x1xf32>
      %cst_37 = arith.constant 3.200000e+01 : f32
      %59 = vector.broadcast %cst_37 : f32 to vector<8x1xf32>
      %60 = arith.divf %58, %59 : vector<8x1xf32>
      %cst_38 = arith.constant 9.99999996E-13 : f32
      %61 = vector.broadcast %cst_38 : f32 to vector<8x1xf32>
      %62 = arith.addf %60, %61 : vector<8x1xf32>
      %63 = math.rsqrt %62 : vector<8x1xf32>
      %64 = vector.broadcast %63 : vector<8x1xf32> to vector<8x32xf32>
      %65 = arith.mulf %55, %64 : vector<8x32xf32>
      %66 = vector.broadcast %48 : vector<1x32xf32> to vector<8x32xf32>
      %67 = arith.mulf %65, %66 : vector<8x32xf32>
      %68 = vector.broadcast %49 : vector<1x32xf32> to vector<8x32xf32>
      %69 = arith.addf %67, %68 : vector<8x32xf32>
      %70 = arith.truncf %69 : vector<8x32xf32> to vector<8x32xbf16>
      %c0_39 = arith.constant 0 : index
      %c0_40 = arith.constant 0 : index
      %71 = vector.load %arg12[%c0_39, %c0_40] : memref<32x64xbf16, #tpu.memory_space<vmem>>, vector<32x64xbf16>
      %cst_41 = arith.constant dense<0.000000e+00> : vector<8x64xf32>
      %72 = tpu.matmul %70, %71, %cst_41 {dimension_numbers = #tpu.dot_dimension_numbers<[1], [0], [0], [1], [0, 0, 1, 1], [], []>} : vector<8x32xbf16>, vector<32x64xbf16>, vector<8x64xf32> -> vector<8x64xf32>
      %c0_42 = arith.constant 0 : index
      %c0_43 = arith.constant 0 : index
      %73 = vector.load %arg13[%c0_42, %c0_43] : memref<1x64xf32, #tpu.memory_space<vmem>>, vector<1x64xf32>
      %74 = vector.broadcast %73 : vector<1x64xf32> to vector<8x64xf32>
      %75 = arith.addf %72, %74 : vector<8x64xf32>
      %cst_44 = arith.constant 5.000000e-01 : f32
      %76 = vector.broadcast %cst_44 : f32 to vector<8x64xf32>
      %77 = arith.mulf %75, %76 : vector<8x64xf32>
      %cst_45 = arith.constant 0.707106769 : f32
      %78 = vector.broadcast %cst_45 : f32 to vector<8x64xf32>
      %79 = arith.mulf %75, %78 : vector<8x64xf32>
      %80 = math.erf %79 : vector<8x64xf32>
      %cst_46 = arith.constant 1.000000e+00 : f32
      %81 = vector.broadcast %cst_46 : f32 to vector<8x64xf32>
      %82 = arith.addf %81, %80 : vector<8x64xf32>
      %83 = arith.mulf %77, %82 : vector<8x64xf32>
      %84 = arith.truncf %83 : vector<8x64xf32> to vector<8x64xbf16>
      %c0_47 = arith.constant 0 : index
      %c0_48 = arith.constant 0 : index
      %85 = vector.load %arg14[%c0_47, %c0_48] : memref<64x32xbf16, #tpu.memory_space<vmem>>, vector<64x32xbf16>
      %cst_49 = arith.constant dense<0.000000e+00> : vector<8x32xf32>
      %86 = tpu.matmul %84, %85, %cst_49 {dimension_numbers = #tpu.dot_dimension_numbers<[1], [0], [0], [1], [0, 0, 1, 1], [], []>} : vector<8x64xbf16>, vector<64x32xbf16>, vector<8x32xf32> -> vector<8x32xf32>
      %c0_50 = arith.constant 0 : index
      %c0_51 = arith.constant 0 : index
      %87 = vector.load %arg15[%c0_50, %c0_51] : memref<1x32xf32, #tpu.memory_space<vmem>>, vector<1x32xf32>
      %88 = vector.broadcast %87 : vector<1x32xf32> to vector<8x32xf32>
      %89 = arith.addf %86, %88 : vector<8x32xf32>
      %90 = arith.addf %89, %69 : vector<8x32xf32>
      %c0_52 = arith.constant 0 : index
      %c0_53 = arith.constant 0 : index
      %91 = vector.load %arg16[%c0_52, %c0_53] : memref<1x32xf32, #tpu.memory_space<vmem>>, vector<1x32xf32>
      %c0_54 = arith.constant 0 : index
      %c0_55 = arith.constant 0 : index
      %92 = vector.load %arg17[%c0_54, %c0_55] : memref<1x32xf32, #tpu.memory_space<vmem>>, vector<1x32xf32>
      %cst_56 = arith.constant dense<0.000000e+00> : vector<8xf32>
      %93 = vector.multi_reduction <add>, %90, %cst_56 [1] : vector<8x32xf32> to vector<8xf32>
      %94 = vector.shape_cast %93 : vector<8xf32> to vector<8x1xf32>
      %cst_57 = arith.constant 3.200000e+01 : f32
      %95 = vector.broadcast %cst_57 : f32 to vector<8x1xf32>
      %96 = arith.divf %94, %95 : vector<8x1xf32>
      %97 = vector.broadcast %96 : vector<8x1xf32> to vector<8x32xf32>
      %98 = arith.subf %90, %97 : vector<8x32xf32>
      %99 = arith.mulf %98, %98 : vector<8x32xf32>
      %cst_58 = arith.constant dense<0.000000e+00> : vector<8xf32>
      %100 = vector.multi_reduction <add>, %99, %cst_58 [1] : vector<8x32xf32> to vector<8xf32>
      %101 = vector.shape_cast %100 : vector<8xf32> to vector<8x1xf32>
      %cst_59 = arith.constant 3.200000e+01 : f32
      %102 = vector.broadcast %cst_59 : f32 to vector<8x1xf32>
      %103 = arith.divf %101, %102 : vector<8x1xf32>
      %cst_60 = arith.constant 9.99999996E-13 : f32
      %104 = vector.broadcast %cst_60 : f32 to vector<8x1xf32>
      %105 = arith.addf %103, %104 : vector<8x1xf32>
      %106 = math.rsqrt %105 : vector<8x1xf32>
      %107 = vector.broadcast %106 : vector<8x1xf32> to vector<8x32xf32>
      %108 = arith.mulf %98, %107 : vector<8x32xf32>
      %109 = vector.broadcast %91 : vector<1x32xf32> to vector<8x32xf32>
      %110 = arith.mulf %108, %109 : vector<8x32xf32>
      %111 = vector.broadcast %92 : vector<1x32xf32> to vector<8x32xf32>
      %112 = arith.addf %110, %111 : vector<8x32xf32>
      %c0_61 = arith.constant 0 : index
      %c0_62 = arith.constant 0 : index
      %c0_63 = arith.constant 0 : index
      %113 = vector.load %arg20[%c0_61, %c0_62, %c0_63] : memref<1x8x32xf32, #tpu.memory_space<vmem>>, vector<1x8x32xf32>
      %114 = vector.shape_cast %113 : vector<1x8x32xf32> to vector<8x32xf32>
      %115 = vector.shape_cast %112 : vector<8x32xf32> to vector<1x8x32xf32>
      tpu.vector_store %arg20[%c0_61, %c0_62, %c0_63], %115 {strides = array<i32>} : memref<1x8x32xf32, #tpu.memory_space<vmem>>, vector<1x8x32xf32>,
    } else {
    }
    return
  }
  func.func @transform_0(%arg0: i32, %arg1: i32, %arg2: i32) -> (i32, i32, i32) {
    %c0_i32 = arith.constant 0 : i32
    %c0_i32_0 = arith.constant 0 : i32
    return %arg0, %arg2, %c0_i32 : i32, i32, i32
  }
  func.func @transform_1(%arg0: i32, %arg1: i32, %arg2: i32) -> (i32, i32) {
    %c0_i32 = arith.constant 0 : i32
    %c0_i32_0 = arith.constant 0 : i32
    %c0_i32_1 = arith.constant 0 : i32
    return %c0_i32, %c0_i32_0 : i32, i32
  }
  func.func @transform_2(%arg0: i32, %arg1: i32, %arg2: i32) -> (i32, i32) {
    %c0_i32 = arith.constant 0 : i32
    %c0_i32_0 = arith.constant 0 : i32
    %c0_i32_1 = arith.constant 0 : i32
    return %c0_i32, %c0_i32_0 : i32, i32
  }
  func.func @transform_3(%arg0: i32, %arg1: i32, %arg2: i32) -> (i32, i32) {
    %c0_i32 = arith.constant 0 : i32
    %c0_i32_0 = arith.constant 0 : i32
    %c0_i32_1 = arith.constant 0 : i32
    return %c0_i32, %c0_i32_0 : i32, i32
  }
  func.func @transform_4(%arg0: i32, %arg1: i32, %arg2: i32) -> (i32, i32) {
    %c0_i32 = arith.constant 0 : i32
    %c0_i32_0 = arith.constant 0 : i32
    %c0_i32_1 = arith.constant 0 : i32
    return %c0_i32, %c0_i32_0 : i32, i32
  }
  func.func @transform_5(%arg0: i32, %arg1: i32, %arg2: i32) -> (i32, i32) {
    %c0_i32 = arith.constant 0 : i32
    %c0_i32_0 = arith.constant 0 : i32
    %c0_i32_1 = arith.constant 0 : i32
    return %c0_i32, %c0_i32_0 : i32, i32
  }
  func.func @transform_6(%arg0: i32, %arg1: i32, %arg2: i32) -> (i32, i32) {
    %c0_i32 = arith.constant 0 : i32
    %c0_i32_0 = arith.constant 0 : i32
    %c0_i32_1 = arith.constant 0 : i32
    return %c0_i32, %c0_i32_0 : i32, i32
  }
  func.func @transform_7(%arg0: i32, %arg1: i32, %arg2: i32) -> (i32, i32) {
    %c0_i32 = arith.constant 0 : i32
    %c0_i32_0 = arith.constant 0 : i32
    %c0_i32_1 = arith.constant 0 : i32
    return %c0_i32, %c0_i32_0 : i32, i32
  }
  func.func @transform_8(%arg0: i32, %arg1: i32, %arg2: i32) -> (i32, i32) {
    %c0_i32 = arith.constant 0 : i32
    %c0_i32_0 = arith.constant 0 : i32
    %c0_i32_1 = arith.constant 0 : i32
    return %c0_i32, %c0_i32_0 : i32, i32
  }
  func.func @transform_9(%arg0: i32, %arg1: i32, %arg2: i32) -> (i32, i32) {
    %c0_i32 = arith.constant 0 : i32
    %c0_i32_0 = arith.constant 0 : i32
    %c0_i32_1 = arith.constant 0 : i32
    return %c0_i32, %c0_i32_0 : i32, i32
  }
  func.func @transform_10(%arg0: i32, %arg1: i32, %arg2: i32) -> (i32, i32) {
    %c0_i32 = arith.constant 0 : i32
    %c0_i32_0 = arith.constant 0 : i32
    %c0_i32_1 = arith.constant 0 : i32
    return %c0_i32, %c0_i32_0 : i32, i32
  }
  func.func @transform_11(%arg0: i32, %arg1: i32, %arg2: i32) -> (i32, i32) {
    %c0_i32 = arith.constant 0 : i32
    %c0_i32_0 = arith.constant 0 : i32
    %c0_i32_1 = arith.constant 0 : i32
    return %c0_i32, %c0_i32_0 : i32, i32
  }
  func.func @transform_12(%arg0: i32, %arg1: i32, %arg2: i32) -> (i32, i32) {
    %c0_i32 = arith.constant 0 : i32
    %c0_i32_0 = arith.constant 0 : i32
    %c0_i32_1 = arith.constant 0 : i32
    return %c0_i32, %c0_i32_0 : i32, i32
  }
  func.func @transform_13(%arg0: i32, %arg1: i32, %arg2: i32) -> (i32, i32) {
    %c0_i32 = arith.constant 0 : i32
    %c0_i32_0 = arith.constant 0 : i32
    %c0_i32_1 = arith.constant 0 : i32
    return %c0_i32, %c0_i32_0 : i32, i32
  }
  func.func @transform_14(%arg0: i32, %arg1: i32, %arg2: i32) -> (i32, i32) {
    %c0_i32 = arith.constant 0 : i32
    %c0_i32_0 = arith.constant 0 : i32
    %c0_i32_1 = arith.constant 0 : i32
    return %c0_i32, %c0_i32_0 : i32, i32
  }
  func.func @transform_15(%arg0: i32, %arg1: i32, %arg2: i32) -> (i32, i32) {
    %c0_i32 = arith.constant 0 : i32
    %c0_i32_0 = arith.constant 0 : i32
    %c0_i32_1 = arith.constant 0 : i32
    return %c0_i32, %c0_i32_0 : i32, i32
  }
  func.func @transform_16(%arg0: i32, %arg1: i32, %arg2: i32) -> (i32, i32) {
    %c0_i32 = arith.constant 0 : i32
    %c0_i32_0 = arith.constant 0 : i32
    %c0_i32_1 = arith.constant 0 : i32
    return %c0_i32, %c0_i32_0 : i32, i32
  }
  func.func @transform_17(%arg0: i32, %arg1: i32, %arg2: i32) -> (i32, i32, i32) {
    %0 = arith.muli %arg2, %arg1 : i32
    %c0_i32 = arith.constant 0 : i32
    %c0_i32_0 = arith.constant 0 : i32
    return %arg0, %0, %c0_i32 : i32, i32, i32
  }
}

module attributes {stable_mosaic.version = 11 : i64} {
  func.func @transformer_layer_kernel(%arg0: i32, %arg1: i32, %arg2: i32, %arg3: memref<1x8x32xbf16, #tpu.memory_space<vmem>>, %arg4: memref<32x32xbf16, #tpu.memory_space<vmem>>, %arg5: memref<1x32xf32, #tpu.memory_space<vmem>>, %arg6: memref<32x64xbf16, #tpu.memory_space<vmem>>, %arg7: memref<1x64xf32, #tpu.memory_space<vmem>>, %arg8: memref<32x32xbf16, #tpu.memory_space<vmem>>, %arg9: memref<1x32xf32, #tpu.memory_space<vmem>>, %arg10: memref<1x32xf32, #tpu.memory_space<vmem>>, %arg11: memref<1x32xf32, #tpu.memory_space<vmem>>, %arg12: memref<32x64xbf16, #tpu.memory_space<vmem>>, %arg13: memref<1x64xf32, #tpu.memory_space<vmem>>, %arg14: memref<64x32xbf16, #tpu.memory_space<vmem>>, %arg15: memref<1x32xf32, #tpu.memory_space<vmem>>, %arg16: memref<1x32xf32, #tpu.memory_space<vmem>>, %arg17: memref<1x32xf32, #tpu.memory_space<vmem>>, %arg18: memref<32x2xf32, #tpu.memory_space<vmem>>, %arg19: memref<2x32xf32, #tpu.memory_space<vmem>>, %arg20: memref<1x8x32xf32, #tpu.memory_space<vmem>>, %arg21: memref<32x32xf32, #tpu.memory_space<vmem>>, %arg22: memref<32x32xbf16, #tpu.memory_space<vmem>>) attributes {dimension_semantics = [#tpu.dimension_semantics<parallel>, #tpu.dimension_semantics<arbitrary>, #tpu.dimension_semantics<arbitrary>], iteration_bounds = array<i64: 2, 2, 1>, scalar_prefetch = 0 : i64, scratch_operands = 2 : i64, tpu.core_type = #tpu.core_type<tc>, window_params = [{transform_indices = @transform_0, window_bounds = array<i64: 1, 8, 32>}, {pipeline_mode = #tpu.pipeline_mode<synchronous>, transform_indices = @transform_1, window_bounds = array<i64: 32, 32>}, {pipeline_mode = #tpu.pipeline_mode<synchronous>, transform_indices = @transform_2, window_bounds = array<i64: 1, 32>}, {pipeline_mode = #tpu.pipeline_mode<synchronous>, transform_indices = @transform_3, window_bounds = array<i64: 32, 64>}, {pipeline_mode = #tpu.pipeline_mode<synchronous>, transform_indices = @transform_4, window_bounds = array<i64: 1, 64>}, {pipeline_mode = #tpu.pipeline_mode<synchronous>, transform_indices = @transform_5, window_bounds = array<i64: 32, 32>}, {pipeline_mode = #tpu.pipeline_mode<synchronous>, transform_indices = @transform_6, window_bounds = array<i64: 1, 32>}, {pipeline_mode = #tpu.pipeline_mode<synchronous>, transform_indices = @transform_7, window_bounds = array<i64: 1, 32>}, {pipeline_mode = #tpu.pipeline_mode<synchronous>, transform_indices = @transform_8, window_bounds = array<i64: 1, 32>}, {pipeline_mode = #tpu.pipeline_mode<synchronous>, transform_indices = @transform_9, window_bounds = array<i64: 32, 64>}, {pipeline_mode = #tpu.pipeline_mode<synchronous>, transform_indices = @transform_10, window_bounds = array<i64: 1, 64>}, {pipeline_mode = #tpu.pipeline_mode<synchronous>, transform_indices = @transform_11, window_bounds = array<i64: 64, 32>}, {pipeline_mode = #tpu.pipeline_mode<synchronous>, transform_indices = @transform_12, window_bounds = array<i64: 1, 32>}, {pipeline_mode = #tpu.pipeline_mode<synchronous>, transform_indices = @transform_13, window_bounds = array<i64: 1, 32>}, {pipeline_mode = #tpu.pipeline_mode<synchronous>, transform_indices = @transform_14, window_bounds = array<i64: 1, 32>}, {pipeline_mode = #tpu.pipeline_mode<synchronous>, transform_indices = @transform_15, window_bounds = array<i64: 32, 2>}, {pipeline_mode = #tpu.pipeline_mode<synchronous>, transform_indices = @transform_16, window_bounds = array<i64: 2, 32>}, {transform_indices = @transform_17, window_bounds = array<i64: 1, 8, 32>}]} {
    %c0 = arith.constant 0 : index
    %c0_0 = arith.constant 0 : index
    %c0_1 = arith.constant 0 : index
    %0 = vector.load %arg3[%c0, %c0_0, %c0_1] : memref<1x8x32xbf16, #tpu.memory_space<vmem>>, vector<1x8x32xbf16>
    %1 = vector.shape_cast %0 : vector<1x8x32xbf16> to vector<8x32xbf16>
    %c0_i32 = arith.constant 0 : i32
    %2 = arith.cmpi eq, %arg1, %c0_i32 : i32
    %c0_i32_2 = arith.constant 0 : i32
    %3 = arith.cmpi eq, %arg2, %c0_i32_2 : i32
    %4 = arith.andi %2, %3 : i1
    %5 = arith.extui %4 : i1 to i32
    %c0_i32_3 = arith.constant 0 : i32
    %6 = arith.cmpi ne, %5, %c0_i32_3 : i32
    scf.if %6 {
      %cst = arith.constant 0.000000e+00 : f32
      %13 = vector.broadcast %cst : f32 to vector<32x32xf32>
      %c0_7 = arith.constant 0 : index
      %c0_8 = arith.constant 0 : index
      %14 = vector.load %arg21[%c0_7, %c0_8] : memref<32x32xf32, #tpu.memory_space<vmem>>, vector<32x32xf32>
      tpu.vector_store %arg21[%c0_7, %c0_8], %13 {strides = array<i32>} : memref<32x32xf32, #tpu.memory_space<vmem>>, vector<32x32xf32>,
    } else {
    }
    %c0_i32_4 = arith.constant 0 : i32
    %7 = arith.cmpi eq, %arg1, %c0_i32_4 : i32
    %8 = arith.extui %7 : i1 to i32
    %c0_i32_5 = arith.constant 0 : i32
    %9 = arith.cmpi ne, %8, %c0_i32_5 : i32
    scf.if %9 {
      %c0_7 = arith.constant 0 : index
      %c0_8 = arith.constant 0 : index
      %13 = vector.load %arg6[%c0_7, %c0_8] : memref<32x64xbf16, #tpu.memory_space<vmem>>, vector<32x64xbf16>
      %cst = arith.constant dense<0.000000e+00> : vector<8x64xf32>
      %14 = tpu.matmul %1, %13, %cst {dimension_numbers = #tpu.dot_dimension_numbers<[1], [0], [0], [1], [0, 0, 1, 1], [], []>} : vector<8x32xbf16>, vector<32x64xbf16>, vector<8x64xf32> -> vector<8x64xf32>
      %c0_9 = arith.constant 0 : index
      %c0_10 = arith.constant 0 : index
      %15 = vector.load %arg7[%c0_9, %c0_10] : memref<1x64xf32, #tpu.memory_space<vmem>>, vector<1x64xf32>
      %16 = vector.broadcast %15 : vector<1x64xf32> to vector<8x64xf32>
      %17 = arith.addf %14, %16 : vector<8x64xf32>
      %18 = vector.extract_strided_slice %17 {offsets = [0, 0], sizes = [8, 32], strides = [1, 1]} : vector<8x64xf32> to vector<8x32xf32>
      %19 = vector.extract_strided_slice %17 {offsets = [0, 32], sizes = [8, 32], strides = [1, 1]} : vector<8x64xf32> to vector<8x32xf32>
      %cst_11 = arith.constant 0.000000e+00 : f32
      %20 = vector.broadcast %cst_11 : f32 to vector<8x32xf32>
      %21 = arith.cmpf ogt, %18, %20 : vector<8x32xf32>
      %cst_12 = arith.constant 0.000000e+00 : f32
      %22 = vector.broadcast %cst_12 : f32 to vector<8x32xf32>
      %23 = arith.minimumf %18, %22 : vector<8x32xf32>
      %24 = math.exp %23 : vector<8x32xf32>
      %cst_13 = arith.constant 1.000000e+00 : f32
      %25 = vector.broadcast %cst_13 : f32 to vector<8x32xf32>
      %26 = arith.subf %24, %25 : vector<8x32xf32>
      %27 = arith.select %21, %18, %26 : vector<8x32xi1>, vector<8x32xf32>
      %28 = arith.mulf %27, %27 : vector<8x32xf32>
      %c0_14 = arith.constant 0 : index
      %c0_15 = arith.constant 0 : index
      %29 = vector.load %arg18[%c0_14, %c0_15] : memref<32x2xf32, #tpu.memory_space<vmem>>, vector<32x2xf32>
      %cst_16 = arith.constant dense<0.000000e+00> : vector<8x2xf32>
      %30 = tpu.matmul %28, %29, %cst_16 {dimension_numbers = #tpu.dot_dimension_numbers<[1], [0], [0], [1], [0, 0, 1, 1], [], []>} : vector<8x32xf32>, vector<32x2xf32>, vector<8x2xf32> -> vector<8x2xf32>
      %cst_17 = arith.constant 9.99999996E-13 : f32
      %31 = vector.broadcast %cst_17 : f32 to vector<8x2xf32>
      %32 = arith.addf %30, %31 : vector<8x2xf32>
      %33 = math.rsqrt %32 : vector<8x2xf32>
      %c0_18 = arith.constant 0 : index
      %c0_19 = arith.constant 0 : index
      %34 = vector.load %arg19[%c0_18, %c0_19] : memref<2x32xf32, #tpu.memory_space<vmem>>, vector<2x32xf32>
      %cst_20 = arith.constant dense<0.000000e+00> : vector<8x32xf32>
      %35 = tpu.matmul %33, %34, %cst_20 {dimension_numbers = #tpu.dot_dimension_numbers<[1], [0], [0], [1], [0, 0, 1, 1], [], []>} : vector<8x2xf32>, vector<2x32xf32>, vector<8x32xf32> -> vector<8x32xf32>
      %36 = arith.mulf %27, %35 : vector<8x32xf32>
      %c0_21 = arith.constant 0 : index
      %c0_22 = arith.constant 0 : index
      %37 = vector.load %arg21[%c0_21, %c0_22] : memref<32x32xf32, #tpu.memory_space<vmem>>, vector<32x32xf32>
      %38 = arith.truncf %36 : vector<8x32xf32> to vector<8x32xbf16>
      %39 = arith.truncf %19 : vector<8x32xf32> to vector<8x32xbf16>
      %cst_23 = arith.constant dense<0.000000e+00> : vector<32x32xf32>
      %40 = tpu.matmul %38, %39, %cst_23 {dimension_numbers = #tpu.dot_dimension_numbers<[0], [0], [1], [1], [0, 1, 1, 1], [], []>} : vector<8x32xbf16>, vector<8x32xbf16>, vector<32x32xf32> -> vector<32x32xf32>
      %41 = arith.addf %37, %40 : vector<32x32xf32>
      %c0_24 = arith.constant 0 : index
      %c0_25 = arith.constant 0 : index
      %42 = vector.load %arg21[%c0_24, %c0_25] : memref<32x32xf32, #tpu.memory_space<vmem>>, vector<32x32xf32>
      tpu.vector_store %arg21[%c0_24, %c0_25], %41 {strides = array<i32>} : memref<32x32xf32, #tpu.memory_space<vmem>>, vector<32x32xf32>,
      %c0_i32_26 = arith.constant 0 : i32
      %43 = arith.cmpi eq, %arg2, %c0_i32_26 : i32
      %44 = arith.extui %43 : i1 to i32
      %c0_i32_27 = arith.constant 0 : i32
      %45 = arith.cmpi ne, %44, %c0_i32_27 : i32
      scf.if %45 {
        %c0_28 = arith.constant 0 : index
        %c0_29 = arith.constant 0 : index
        %46 = vector.load %arg18[%c0_28, %c0_29] : memref<32x2xf32, #tpu.memory_space<vmem>>, vector<32x2xf32>
        %c0_30 = arith.constant 0 : index
        %c0_31 = arith.constant 0 : index
        %47 = vector.load %arg19[%c0_30, %c0_31] : memref<2x32xf32, #tpu.memory_space<vmem>>, vector<2x32xf32>
        %cst_32 = arith.constant dense<0.000000e+00> : vector<32x32xf32>
        %48 = tpu.matmul %46, %47, %cst_32 {dimension_numbers = #tpu.dot_dimension_numbers<[1], [0], [0], [1], [0, 0, 1, 1], [], []>} : vector<32x2xf32>, vector<2x32xf32>, vector<32x32xf32> -> vector<32x32xf32>
        %c0_33 = arith.constant 0 : index
        %c0_34 = arith.constant 0 : index
        %49 = vector.load %arg21[%c0_33, %c0_34] : memref<32x32xf32, #tpu.memory_space<vmem>>, vector<32x32xf32>
        %50 = arith.mulf %49, %48 : vector<32x32xf32>
        %51 = arith.truncf %50 : vector<32x32xf32> to vector<32x32xbf16>
        %c0_35 = arith.constant 0 : index
        %c0_36 = arith.constant 0 : index
        %52 = vector.load %arg22[%c0_35, %c0_36] : memref<32x32xbf16, #tpu.memory_space<vmem>>, vector<32x32xbf16>
        tpu.vector_store %arg22[%c0_35, %c0_36], %51 {strides = array<i32>} : memref<32x32xbf16, #tpu.memory_space<vmem>>, vector<32x32xbf16>,
      } else {
      }
    } else {
    }
    %c1_i32 = arith.constant 1 : i32
    %10 = arith.cmpi eq, %arg1, %c1_i32 : i32
    %11 = arith.extui %10 : i1 to i32
    %c0_i32_6 = arith.constant 0 : i32
    %12 = arith.cmpi ne, %11, %c0_i32_6 : i32
    scf.if %12 {
      %13 = arith.extf %1 : vector<8x32xbf16> to vector<8x32xf32>
      %c0_7 = arith.constant 0 : index
      %c0_8 = arith.constant 0 : index
      %14 = vector.load %arg4[%c0_7, %c0_8] : memref<32x32xbf16, #tpu.memory_space<vmem>>, vector<32x32xbf16>
      %cst = arith.constant dense<0.000000e+00> : vector<8x32xf32>
      %15 = tpu.matmul %1, %14, %cst {dimension_numbers = #tpu.dot_dimension_numbers<[1], [0], [0], [1], [0, 0, 1, 1], [], []>} : vector<8x32xbf16>, vector<32x32xbf16>, vector<8x32xf32> -> vector<8x32xf32>
      %c0_9 = arith.constant 0 : index
      %c0_10 = arith.constant 0 : index
      %16 = vector.load %arg5[%c0_9, %c0_10] : memref<1x32xf32, #tpu.memory_space<vmem>>, vector<1x32xf32>
      %17 = vector.broadcast %16 : vector<1x32xf32> to vector<8x32xf32>
      %18 = arith.addf %15, %17 : vector<8x32xf32>
      %cst_11 = arith.constant 0.000000e+00 : f32
      %19 = vector.broadcast %cst_11 : f32 to vector<8x32xf32>
      %20 = arith.cmpf ogt, %18, %19 : vector<8x32xf32>
      %cst_12 = arith.constant 0.000000e+00 : f32
      %21 = vector.broadcast %cst_12 : f32 to vector<8x32xf32>
      %22 = arith.minimumf %18, %21 : vector<8x32xf32>
      %23 = math.exp %22 : vector<8x32xf32>
      %cst_13 = arith.constant 1.000000e+00 : f32
      %24 = vector.broadcast %cst_13 : f32 to vector<8x32xf32>
      %25 = arith.subf %23, %24 : vector<8x32xf32>
      %26 = arith.select %20, %18, %25 : vector<8x32xi1>, vector<8x32xf32>
      %27 = arith.mulf %26, %26 : vector<8x32xf32>
      %c0_14 = arith.constant 0 : index
      %c0_15 = arith.constant 0 : index
      %28 = vector.load %arg18[%c0_14, %c0_15] : memref<32x2xf32, #tpu.memory_space<vmem>>, vector<32x2xf32>
      %cst_16 = arith.constant dense<0.000000e+00> : vector<8x2xf32>
      %29 = tpu.matmul %27, %28, %cst_16 {dimension_numbers = #tpu.dot_dimension_numbers<[1], [0], [0], [1], [0, 0, 1, 1], [], []>} : vector<8x32xf32>, vector<32x2xf32>, vector<8x2xf32> -> vector<8x2xf32>
      %cst_17 = arith.constant 9.99999996E-13 : f32
      %30 = vector.broadcast %cst_17 : f32 to vector<8x2xf32>
      %31 = arith.addf %29, %30 : vector<8x2xf32>
      %32 = math.rsqrt %31 : vector<8x2xf32>
      %c0_18 = arith.constant 0 : index
      %c0_19 = arith.constant 0 : index
      %33 = vector.load %arg19[%c0_18, %c0_19] : memref<2x32xf32, #tpu.memory_space<vmem>>, vector<2x32xf32>
      %cst_20 = arith.constant dense<0.000000e+00> : vector<8x32xf32>
      %34 = tpu.matmul %32, %33, %cst_20 {dimension_numbers = #tpu.dot_dimension_numbers<[1], [0], [0], [1], [0, 0, 1, 1], [], []>} : vector<8x2xf32>, vector<2x32xf32>, vector<8x32xf32> -> vector<8x32xf32>
      %cst_21 = arith.constant 2.500000e-01 : f32
      %35 = vector.broadcast %cst_21 : f32 to vector<8x32xf32>
      %36 = arith.mulf %34, %35 : vector<8x32xf32>
      %37 = arith.mulf %26, %36 : vector<8x32xf32>
      %38 = arith.truncf %37 : vector<8x32xf32> to vector<8x32xbf16>
      %c0_22 = arith.constant 0 : index
      %c0_23 = arith.constant 0 : index
      %39 = vector.load %arg22[%c0_22, %c0_23] : memref<32x32xbf16, #tpu.memory_space<vmem>>, vector<32x32xbf16>
      %cst_24 = arith.constant dense<0.000000e+00> : vector<8x32xf32>
      %40 = tpu.matmul %38, %39, %cst_24 {dimension_numbers = #tpu.dot_dimension_numbers<[1], [0], [0], [1], [0, 0, 1, 1], [], []>} : vector<8x32xbf16>, vector<32x32xbf16>, vector<8x32xf32> -> vector<8x32xf32>
      %41 = arith.truncf %40 : vector<8x32xf32> to vector<8x32xbf16>
      %c0_25 = arith.constant 0 : index
      %c0_26 = arith.constant 0 : index
      %42 = vector.load %arg8[%c0_25, %c0_26] : memref<32x32xbf16, #tpu.memory_space<vmem>>, vector<32x32xbf16>
      %cst_27 = arith.constant dense<0.000000e+00> : vector<8x32xf32>
      %43 = tpu.matmul %41, %42, %cst_27 {dimension_numbers = #tpu.dot_dimension_numbers<[1], [0], [0], [1], [0, 0, 1, 1], [], []>} : vector<8x32xbf16>, vector<32x32xbf16>, vector<8x32xf32> -> vector<8x32xf32>
      %c0_28 = arith.constant 0 : index
      %c0_29 = arith.constant 0 : index
      %44 = vector.load %arg9[%c0_28, %c0_29] : memref<1x32xf32, #tpu.memory_space<vmem>>, vector<1x32xf32>
      %45 = vector.broadcast %44 : vector<1x32xf32> to vector<8x32xf32>
      %46 = arith.addf %43, %45 : vector<8x32xf32>
      %47 = arith.addf %46, %13 : vector<8x32xf32>
      %c0_30 = arith.constant 0 : index
      %c0_31 = arith.constant 0 : index
      %48 = vector.load %arg10[%c0_30, %c0_31] : memref<1x32xf32, #tpu.memory_space<vmem>>, vector<1x32xf32>
      %c0_32 = arith.constant 0 : index
      %c0_33 = arith.constant 0 : index
      %49 = vector.load %arg11[%c0_32, %c0_33] : memref<1x32xf32, #tpu.memory_space<vmem>>, vector<1x32xf32>
      %cst_34 = arith.constant dense<0.000000e+00> : vector<8xf32>
      %50 = vector.multi_reduction <add>, %47, %cst_34 [1] : vector<8x32xf32> to vector<8xf32>
      %51 = vector.shape_cast %50 : vector<8xf32> to vector<8x1xf32>
      %cst_35 = arith.constant 3.200000e+01 : f32
      %52 = vector.broadcast %cst_35 : f32 to vector<8x1xf32>
      %53 = arith.divf %51, %52 : vector<8x1xf32>
      %54 = vector.broadcast %53 : vector<8x1xf32> to vector<8x32xf32>
      %55 = arith.subf %47, %54 : vector<8x32xf32>
      %56 = arith.mulf %55, %55 : vector<8x32xf32>
      %cst_36 = arith.constant dense<0.000000e+00> : vector<8xf32>
      %57 = vector.multi_reduction <add>, %56, %cst_36 [1] : vector<8x32xf32> to vector<8xf32>
      %58 = vector.shape_cast %57 : vector<8xf32> to vector<8x1xf32>
      %cst_37 = arith.constant 3.200000e+01 : f32
      %59 = vector.broadcast %cst_37 : f32 to vector<8x1xf32>
      %60 = arith.divf %58, %59 : vector<8x1xf32>
      %cst_38 = arith.constant 9.99999996E-13 : f32
      %61 = vector.broadcast %cst_38 : f32 to vector<8x1xf32>
      %62 = arith.addf %60, %61 : vector<8x1xf32>
      %63 = math.rsqrt %62 : vector<8x1xf32>
      %64 = vector.broadcast %63 : vector<8x1xf32> to vector<8x32xf32>
      %65 = arith.mulf %55, %64 : vector<8x32xf32>
      %66 = vector.broadcast %48 : vector<1x32xf32> to vector<8x32xf32>
      %67 = arith.mulf %65, %66 : vector<8x32xf32>
      %68 = vector.broadcast %49 : vector<1x32xf32> to vector<8x32xf32>
      %69 = arith.addf %67, %68 : vector<8x32xf32>
      %70 = arith.truncf %69 : vector<8x32xf32> to vector<8x32xbf16>
      %c0_39 = arith.constant 0 : index
      %c0_40 = arith.constant 0 : index
      %71 = vector.load %arg12[%c0_39, %c0_40] : memref<32x64xbf16, #tpu.memory_space<vmem>>, vector<32x64xbf16>
      %cst_41 = arith.constant dense<0.000000e+00> : vector<8x64xf32>
      %72 = tpu.matmul %70, %71, %cst_41 {dimension_numbers = #tpu.dot_dimension_numbers<[1], [0], [0], [1], [0, 0, 1, 1], [], []>} : vector<8x32xbf16>, vector<32x64xbf16>, vector<8x64xf32> -> vector<8x64xf32>
      %c0_42 = arith.constant 0 : index
      %c0_43 = arith.constant 0 : index
      %73 = vector.load %arg13[%c0_42, %c0_43] : memref<1x64xf32, #tpu.memory_space<vmem>>, vector<1x64xf32>
      %74 = vector.broadcast %73 : vector<1x64xf32> to vector<8x64xf32>
      %75 = arith.addf %72, %74 : vector<8x64xf32>
      %cst_44 = arith.constant 5.000000e-01 : f32
      %76 = vector.broadcast %cst_44 : f32 to vector<8x64xf32>
      %77 = arith.mulf %75, %76 : vector<8x64xf32>
      %cst_45 = arith.constant 0.707106769 : f32
      %78 = vector.broadcast %cst_45 : f32 to vector<8x64xf32>
      %79 = arith.mulf %75, %78 : vector<8x64xf32>
      %80 = math.erf %79 : vector<8x64xf32>
      %cst_46 = arith.constant 1.000000e+00 : f32
      %81 = vector.broadcast %cst_46 : f32 to vector<8x64xf32>
      %82 = arith.addf %81, %80 : vector<8x64xf32>
      %83 = arith.mulf %77, %82 : vector<8x64xf32>
      %84 = arith.truncf %83 : vector<8x64xf32> to vector<8x64xbf16>
      %c0_47 = arith.constant 0 : index
      %c0_48 = arith.constant 0 : index
      %85 = vector.load %arg14[%c0_47, %c0_48] : memref<64x32xbf16, #tpu.memory_space<vmem>>, vector<64x32xbf16>
      %cst_49 = arith.constant dense<0.000000e+00> : vector<8x32xf32>
      %86 = tpu.matmul %84, %85, %cst_49 {dimension_numbers = #tpu.dot_dimension_numbers<[1], [0], [0], [1], [0, 0, 1, 1], [], []>} : vector<8x64xbf16>, vector<64x32xbf16>, vector<8x32xf32> -> vector<8x32xf32>
      %c0_50 = arith.constant 0 : index
      %c0_51 = arith.constant 0 : index
      %87 = vector.load %arg15[%c0_50, %c0_51] : memref<1x32xf32, #tpu.memory_space<vmem>>, vector<1x32xf32>
      %88 = vector.broadcast %87 : vector<1x32xf32> to vector<8x32xf32>
      %89 = arith.addf %86, %88 : vector<8x32xf32>
      %90 = arith.addf %89, %69 : vector<8x32xf32>
      %c0_52 = arith.constant 0 : index
      %c0_53 = arith.constant 0 : index
      %91 = vector.load %arg16[%c0_52, %c0_53] : memref<1x32xf32, #tpu.memory_space<vmem>>, vector<1x32xf32>
      %c0_54 = arith.constant 0 : index
      %c0_55 = arith.constant 0 : index
      %92 = vector.load %arg17[%c0_54, %c0_55] : memref<1x32xf32, #tpu.memory_space<vmem>>, vector<1x32xf32>
      %cst_56 = arith.constant dense<0.000000e+00> : vector<8xf32>
      %93 = vector.multi_reduction <add>, %90, %cst_56 [1] : vector<8x32xf32> to vector<8xf32>
      %94 = vector.shape_cast %93 : vector<8xf32> to vector<8x1xf32>
      %cst_57 = arith.constant 3.200000e+01 : f32
      %95 = vector.broadcast %cst_57 : f32 to vector<8x1xf32>
      %96 = arith.divf %94, %95 : vector<8x1xf32>
      %97 = vector.broadcast %96 : vector<8x1xf32> to vector<8x32xf32>
      %98 = arith.subf %90, %97 : vector<8x32xf32>
      %99 = arith.mulf %98, %98 : vector<8x32xf32>
      %cst_58 = arith.constant dense<0.000000e+00> : vector<8xf32>
      %100 = vector.multi_reduction <add>, %99, %cst_58 [1] : vector<8x32xf32> to vector<8xf32>
      %101 = vector.shape_cast %100 : vector<8xf32> to vector<8x1xf32>
      %cst_59 = arith.constant 3.200000e+01 : f32
      %102 = vector.broadcast %cst_59 : f32 to vector<8x1xf32>
      %103 = arith.divf %101, %102 : vector<8x1xf32>
      %cst_60 = arith.constant 9.99999996E-13 : f32
      %104 = vector.broadcast %cst_60 : f32 to vector<8x1xf32>
      %105 = arith.addf %103, %104 : vector<8x1xf32>
      %106 = math.rsqrt %105 : vector<8x1xf32>
      %107 = vector.broadcast %106 : vector<8x1xf32> to vector<8x32xf32>
      %108 = arith.mulf %98, %107 : vector<8x32xf32>
      %109 = vector.broadcast %91 : vector<1x32xf32> to vector<8x32xf32>
      %110 = arith.mulf %108, %109 : vector<8x32xf32>
      %111 = vector.broadcast %92 : vector<1x32xf32> to vector<8x32xf32>
      %112 = arith.addf %110, %111 : vector<8x32xf32>
      %c0_61 = arith.constant 0 : index
      %c0_62 = arith.constant 0 : index
      %c0_63 = arith.constant 0 : index
      %113 = vector.load %arg20[%c0_61, %c0_62, %c0_63] : memref<1x8x32xf32, #tpu.memory_space<vmem>>, vector<1x8x32xf32>
      %114 = vector.shape_cast %113 : vector<1x8x32xf32> to vector<8x32xf32>
      %115 = vector.shape_cast %112 : vector<8x32xf32> to vector<1x8x32xf32>
      tpu.vector_store %arg20[%c0_61, %c0_62, %c0_63], %115 {strides = array<i32>} : memref<1x8x32xf32, #tpu.memory_space<vmem>>, vector<1x8x32xf32>,
    } else {
    }
    return
  }
  func.func @transform_0(%arg0: i32, %arg1: i32, %arg2: i32) -> (i32, i32, i32) {
    %c0_i32 = arith.constant 0 : i32
    %c0_i32_0 = arith.constant 0 : i32
    return %arg0, %arg2, %c0_i32 : i32, i32, i32
  }
  func.func @transform_1(%arg0: i32, %arg1: i32, %arg2: i32) -> (i32, i32) {
    %c0_i32 = arith.constant 0 : i32
    %c0_i32_0 = arith.constant 0 : i32
    %c0_i32_1 = arith.constant 0 : i32
    return %c0_i32, %c0_i32_0 : i32, i32
  }
  func.func @transform_2(%arg0: i32, %arg1: i32, %arg2: i32) -> (i32, i32) {
    %c0_i32 = arith.constant 0 : i32
    %c0_i32_0 = arith.constant 0 : i32
    %c0_i32_1 = arith.constant 0 : i32
    return %c0_i32, %c0_i32_0 : i32, i32
  }
  func.func @transform_3(%arg0: i32, %arg1: i32, %arg2: i32) -> (i32, i32) {
    %c0_i32 = arith.constant 0 : i32
    %c0_i32_0 = arith.constant 0 : i32
    %c0_i32_1 = arith.constant 0 : i32
    return %c0_i32, %c0_i32_0 : i32, i32
  }
  func.func @transform_4(%arg0: i32, %arg1: i32, %arg2: i32) -> (i32, i32) {
    %c0_i32 = arith.constant 0 : i32
    %c0_i32_0 = arith.constant 0 : i32
    %c0_i32_1 = arith.constant 0 : i32
    return %c0_i32, %c0_i32_0 : i32, i32
  }
  func.func @transform_5(%arg0: i32, %arg1: i32, %arg2: i32) -> (i32, i32) {
    %c0_i32 = arith.constant 0 : i32
    %c0_i32_0 = arith.constant 0 : i32
    %c0_i32_1 = arith.constant 0 : i32
    return %c0_i32, %c0_i32_0 : i32, i32
  }
  func.func @transform_6(%arg0: i32, %arg1: i32, %arg2: i32) -> (i32, i32) {
    %c0_i32 = arith.constant 0 : i32
    %c0_i32_0 = arith.constant 0 : i32
    %c0_i32_1 = arith.constant 0 : i32
    return %c0_i32, %c0_i32_0 : i32, i32
  }
  func.func @transform_7(%arg0: i32, %arg1: i32, %arg2: i32) -> (i32, i32) {
    %c0_i32 = arith.constant 0 : i32
    %c0_i32_0 = arith.constant 0 : i32
    %c0_i32_1 = arith.constant 0 : i32
    return %c0_i32, %c0_i32_0 : i32, i32
  }
  func.func @transform_8(%arg0: i32, %arg1: i32, %arg2: i32) -> (i32, i32) {
    %c0_i32 = arith.constant 0 : i32
    %c0_i32_0 = arith.constant 0 : i32
    %c0_i32_1 = arith.constant 0 : i32
    return %c0_i32, %c0_i32_0 : i32, i32
  }
  func.func @transform_9(%arg0: i32, %arg1: i32, %arg2: i32) -> (i32, i32) {
    %c0_i32 = arith.constant 0 : i32
    %c0_i32_0 = arith.constant 0 : i32
    %c0_i32_1 = arith.constant 0 : i32
    return %c0_i32, %c0_i32_0 : i32, i32
  }
  func.func @transform_10(%arg0: i32, %arg1: i32, %arg2: i32) -> (i32, i32) {
    %c0_i32 = arith.constant 0 : i32
    %c0_i32_0 = arith.constant 0 : i32
    %c0_i32_1 = arith.constant 0 : i32
    return %c0_i32, %c0_i32_0 : i32, i32
  }
  func.func @transform_11(%arg0: i32, %arg1: i32, %arg2: i32) -> (i32, i32) {
    %c0_i32 = arith.constant 0 : i32
    %c0_i32_0 = arith.constant 0 : i32
    %c0_i32_1 = arith.constant 0 : i32
    return %c0_i32, %c0_i32_0 : i32, i32
  }
  func.func @transform_12(%arg0: i32, %arg1: i32, %arg2: i32) -> (i32, i32) {
    %c0_i32 = arith.constant 0 : i32
    %c0_i32_0 = arith.constant 0 : i32
    %c0_i32_1 = arith.constant 0 : i32
    return %c0_i32, %c0_i32_0 : i32, i32
  }
  func.func @transform_13(%arg0: i32, %arg1: i32, %arg2: i32) -> (i32, i32) {
    %c0_i32 = arith.constant 0 : i32
    %c0_i32_0 = arith.constant 0 : i32
    %c0_i32_1 = arith.constant 0 : i32
    return %c0_i32, %c0_i32_0 : i32, i32
  }
  func.func @transform_14(%arg0: i32, %arg1: i32, %arg2: i32) -> (i32, i32) {
    %c0_i32 = arith.constant 0 : i32
    %c0_i32_0 = arith.constant 0 : i32
    %c0_i32_1 = arith.constant 0 : i32
    return %c0_i32, %c0_i32_0 : i32, i32
  }
  func.func @transform_15(%arg0: i32, %arg1: i32, %arg2: i32) -> (i32, i32) {
    %c0_i32 = arith.constant 0 : i32
    %c0_i32_0 = arith.constant 0 : i32
    %c0_i32_1 = arith.constant 0 : i32
    return %c0_i32, %c0_i32_0 : i32, i32
  }
  func.func @transform_16(%arg0: i32, %arg1: i32, %arg2: i32) -> (i32, i32) {
    %c0_i32 = arith.constant 0 : i32
    %c0_i32_0 = arith.constant 0 : i32
    %c0_i32_1 = arith.constant 0 : i32
    return %c0_i32, %c0_i32_0 : i32, i32
  }
  func.func @transform_17(%arg0: i32, %arg1: i32, %arg2: i32) -> (i32, i32, i32) {
    %0 = arith.muli %arg2, %arg1 : i32
    %c0_i32 = arith.constant 0 : i32
    %c0_i32_0 = arith.constant 0 : i32
    return %arg0, %0, %c0_i32 : i32, i32, i32
  }
}

</mosaic_0001>

<llo_original>
// kernel: tpu_custom_call.1
$region0: #{tpu_custom_call.1}
  #allocation0 [shape = 'u32[]', space=smem, size = 0x4, offset = 0x4, fixed_abs, tag = 'smem constant byte address 0x4 - core index']
  #allocation1 [shape = 'u32[144,128]{1,0:T(1,128)}', space=vmem, size = 0x12000, scoped, tag = 'internal scratch']
  #allocation2 [shape = 'f32[32,32]{1,0:T(8,128)}', space=vmem, size = 0x4000, scoped, tag = 'scratch operand']
  #allocation3 [shape = 'bf16[32,32]{1,0:T(16,128)(2,1)}', space=vmem, size = 0x2000, scoped, tag = 'scratch operand']
  %s0 = inlined_call_operand.vmem [shape: bf16[2,8,32], index: 0, kind: input, shape index: {}]
  %s1 = inlined_call_operand.vmem [shape: bf16[32,32], index: 1, kind: input, shape index: {}]
  %s2 = inlined_call_operand.vmem [shape: f32[1,32], index: 2, kind: input, shape index: {}]
  %s3 = inlined_call_operand.vmem [shape: bf16[32,64], index: 3, kind: input, shape index: {}]
  %s4 = inlined_call_operand.vmem [shape: f32[1,64], index: 4, kind: input, shape index: {}]
  %s5 = inlined_call_operand.vmem [shape: bf16[32,32], index: 5, kind: input, shape index: {}]
  %s6 = inlined_call_operand.vmem [shape: f32[1,32], index: 6, kind: input, shape index: {}]
  %s7 = inlined_call_operand.vmem [shape: f32[1,32], index: 7, kind: input, shape index: {}]
  %s8 = inlined_call_operand.vmem [shape: f32[1,32], index: 8, kind: input, shape index: {}]
  %s9 = inlined_call_operand.vmem [shape: bf16[32,64], index: 9, kind: input, shape index: {}]
  %s10 = inlined_call_operand.vmem [shape: f32[1,64], index: 10, kind: input, shape index: {}]
  %s11 = inlined_call_operand.vmem [shape: bf16[64,32], index: 11, kind: input, shape index: {}]
  %s12 = inlined_call_operand.vmem [shape: f32[1,32], index: 12, kind: input, shape index: {}]
  %s13 = inlined_call_operand.vmem [shape: f32[1,32], index: 13, kind: input, shape index: {}]
  %s14 = inlined_call_operand.vmem [shape: f32[1,32], index: 14, kind: input, shape index: {}]
  %s15 = inlined_call_operand.vmem [shape: f32[32,2], index: 15, kind: input, shape index: {}]
  %s16 = inlined_call_operand.vmem [shape: f32[2,32], index: 16, kind: input, shape index: {}]
  %s17 = inlined_call_operand.hbm [shape: f32[2,8,32], index: 17, kind: output, shape index: {}]
  %s18 = sld [smem:[#allocation0]]
  $region117: #{tpu_custom_call.1} parent=0
    _
  %s20 = ssub.s32 1, %s18
  %s21 = scalar_select 0, %s20, %s18
  $region1: #{tpu_custom_call.1} parent=0
    #allocation4 [shape = 'u8[8192]{0}', space=vmem, size = 0x2000, scoped, tag = 'output window, operand 0']
    #allocation5 [shape = 's32[2]{0}', space=sflag, size = 0x8, scoped, tag = 'scoped memory for tpu_custom_call.1']
    %22 = vsyncpa [#allocation5], 0
    %s23 = scalar_lea.sflag [#allocation5], 1
    %24 = vsyncpa %s23, 0
    loop: start=0, step=1, limit=6
    $region2: #{tpu_custom_call.1} parent=1 // loop_pre_header
      _
    $region3: #{tpu_custom_call.1} parent=1 // loop_header
      %s26 = sphi 0, %s30
      %p27 = scmp.ge.s32.totalorder %s26, 6
      %s33 = sphi 0, %s52
      %s34 = sphi 0, %s48
      %s35 = sphi 0, %s44
      %s36 = sphi 0, %s33
      %s37 = sphi 0, %s34
      %s38 = sphi 0, %s35
      %s39 = sphi 0, %s36
      %s40 = sphi 0, %s37
      %s41 = sphi 0, %s38
      %s57 = sphi 0, %s59
      %s60 = sphi 0, %s57
      %s61 = sphi 0, %s60
      %s77 = sphi 0, %s61
      %s81 = sphi 0, %s81
      %s83 = sphi 0, %s81
      %s84 = sphi 0, %s83
      %s98 = sphi 0, %s84
      %s102 = sphi 0, %s102
      %s104 = sphi 0, %s102
      %s105 = sphi 0, %s104
      %s119 = sphi 0, %s105
      %s123 = sphi 0, %s123
      %s125 = sphi 0, %s123
      %s126 = sphi 0, %s125
      %s140 = sphi 0, %s126
      %s144 = sphi 0, %s144
      %s146 = sphi 0, %s144
      %s147 = sphi 0, %s146
      %s161 = sphi 0, %s147
      %s165 = sphi 0, %s165
      %s167 = sphi 0, %s165
      %s168 = sphi 0, %s167
      %s182 = sphi 0, %s168
      %s186 = sphi 0, %s186
      %s188 = sphi 0, %s186
      %s189 = sphi 0, %s188
      %s203 = sphi 0, %s189
      %s207 = sphi 0, %s207
      %s209 = sphi 0, %s207
      %s210 = sphi 0, %s209
      %s224 = sphi 0, %s210
      %s228 = sphi 0, %s228
      %s230 = sphi 0, %s228
      %s231 = sphi 0, %s230
      %s245 = sphi 0, %s231
      %s249 = sphi 0, %s249
      %s251 = sphi 0, %s249
      %s252 = sphi 0, %s251
      %s266 = sphi 0, %s252
      %s270 = sphi 0, %s270
      %s272 = sphi 0, %s270
      %s273 = sphi 0, %s272
      %s287 = sphi 0, %s273
      %s291 = sphi 0, %s291
      %s293 = sphi 0, %s291
      %s294 = sphi 0, %s293
      %s308 = sphi 0, %s294
      %s312 = sphi 0, %s312
      %s314 = sphi 0, %s312
      %s315 = sphi 0, %s314
      %s329 = sphi 0, %s315
      %s333 = sphi 0, %s333
      %s335 = sphi 0, %s333
      %s336 = sphi 0, %s335
      %s350 = sphi 0, %s336
      %s354 = sphi 0, %s354
      %s356 = sphi 0, %s354
      %s357 = sphi 0, %s356
      %s371 = sphi 0, %s357
      %s375 = sphi 0, %s375
      %s377 = sphi 0, %s375
      %s378 = sphi 0, %s377
      %s392 = sphi 0, %s378
      %s396 = sphi 0, %s396
      %s398 = sphi 0, %s396
      %s399 = sphi 0, %s398
      %s413 = sphi 0, %s399
      %s423 = sphi 0, %s425
      %s426 = sphi 0, %s423
      %s427 = sphi 0, %s426
      %s443 = sphi 0, %s427
    $region4: #{tpu_custom_call.1} parent=1 // loop_header_branch
      %29 = sbr.rel (%p27) target = $region8
    $region5: #{tpu_custom_call.1} parent=1 // loop_body
      %s31 = ssub.s32 %s26, 1
      %s32 = ssub.s32 %s26, 2
      %s42 = sadd.s32 1, %s35
      %p43 = scmp.ge.s32.totalorder %s42, 1
      %s44 = scalar_select %p43, 0, %s42
      %s45 = sadd.s32 1, %s34
      %s46 = scalar_select %p43, %s45, %s34
      %p47 = scmp.ge.s32.totalorder %s46, 2
      %s48 = scalar_select %p47, 0, %s46
      %s49 = sadd.s32 1, %s33
      %s50 = scalar_select %p47, %s49, %s33
      %p51 = scmp.ge.s32.totalorder %s50, 2
      %s52 = scalar_select %p51, 0, %s50
      %s53 = ssub.s32 %s33, %s52
      %s54 = ssub.s32 %s35, %s44
      %s55 = sor.u32 %s53, %s54
      %p56 = scmp.eq.s32.totalorder %s55, 0
      %s58 = sadd.s32 %s57, 1
      %s59 = scalar_select %p56, %s57, %s58
      %p62 = pneg %p56
      %p63 = scmp.eq.s32.totalorder %s26, 3
      %p64 = por %p62, %p63
      %p65 = scmp.ne.s32.totalorder %s57, %s60
      %p66 = scmp.eq.s32.totalorder %s26, 0
      %p67 = por %p65, %p66
      %p68 = scmp.ne.s32.totalorder %s57, %s60
      %p69 = scmp.eq.s32.totalorder %s31, 3
      %p70 = por %p68, %p69
      %p71 = scmp.ne.s32.totalorder %s60, %s61
      %p72 = scmp.eq.s32.totalorder %s31, 0
      %p73 = por %p71, %p72
      %p74 = scmp.ne.s32.totalorder %s60, %s61
      %p75 = scmp.eq.s32.totalorder %s32, 3
      %p76 = por %p74, %p75
      %p78 = scmp.ne.s32.totalorder %s61, %s77
      %p79 = scmp.eq.s32.totalorder %s32, 0
      %p80 = por %p78, %p79
      %s82 = sadd.s32 %s81, 1
      %p85 = scmp.eq.s32.totalorder %s26, 3
      %p86 = scmp.ne.s32.totalorder %s81, %s83
      %p87 = scmp.eq.s32.totalorder %s26, 0
      %p88 = por %p86, %p87
      %p89 = scmp.ne.s32.totalorder %s81, %s83
      %p90 = scmp.eq.s32.totalorder %s31, 3
      %p91 = por %p89, %p90
      %p92 = scmp.ne.s32.totalorder %s83, %s84
      %p93 = scmp.eq.s32.totalorder %s31, 0
      %p94 = por %p92, %p93
      %p95 = scmp.ne.s32.totalorder %s83, %s84
      %p96 = scmp.eq.s32.totalorder %s32, 3
      %p97 = por %p95, %p96
      %p99 = scmp.ne.s32.totalorder %s84, %s98
      %p100 = scmp.eq.s32.totalorder %s32, 0
      %p101 = por %p99, %p100
      %s103 = sadd.s32 %s102, 1
      %p106 = scmp.eq.s32.totalorder %s26, 3
      %p107 = scmp.ne.s32.totalorder %s102, %s104
      %p108 = scmp.eq.s32.totalorder %s26, 0
      %p109 = por %p107, %p108
      %p110 = scmp.ne.s32.totalorder %s102, %s104
      %p111 = scmp.eq.s32.totalorder %s31, 3
      %p112 = por %p110, %p111
      %p113 = scmp.ne.s32.totalorder %s104, %s105
      %p114 = scmp.eq.s32.totalorder %s31, 0
      %p115 = por %p113, %p114
      %p116 = scmp.ne.s32.totalorder %s104, %s105
      %p117 = scmp.eq.s32.totalorder %s32, 3
      %p118 = por %p116, %p117
      %p120 = scmp.ne.s32.totalorder %s105, %s119
      %p121 = scmp.eq.s32.totalorder %s32, 0
      %p122 = por %p120, %p121
      %s124 = sadd.s32 %s123, 1
      %p127 = scmp.eq.s32.totalorder %s26, 3
      %p128 = scmp.ne.s32.totalorder %s123, %s125
      %p129 = scmp.eq.s32.totalorder %s26, 0
      %p130 = por %p128, %p129
      %p131 = scmp.ne.s32.totalorder %s123, %s125
      %p132 = scmp.eq.s32.totalorder %s31, 3
      %p133 = por %p131, %p132
      %p134 = scmp.ne.s32.totalorder %s125, %s126
      %p135 = scmp.eq.s32.totalorder %s31, 0
      %p136 = por %p134, %p135
      %p137 = scmp.ne.s32.totalorder %s125, %s126
      %p138 = scmp.eq.s32.totalorder %s32, 3
      %p139 = por %p137, %p138
      %p141 = scmp.ne.s32.totalorder %s126, %s140
      %p142 = scmp.eq.s32.totalorder %s32, 0
      %p143 = por %p141, %p142
      %s145 = sadd.s32 %s144, 1
      %p148 = scmp.eq.s32.totalorder %s26, 3
      %p149 = scmp.ne.s32.totalorder %s144, %s146
      %p150 = scmp.eq.s32.totalorder %s26, 0
      %p151 = por %p149, %p150
      %p152 = scmp.ne.s32.totalorder %s144, %s146
      %p153 = scmp.eq.s32.totalorder %s31, 3
      %p154 = por %p152, %p153
      %p155 = scmp.ne.s32.totalorder %s146, %s147
      %p156 = scmp.eq.s32.totalorder %s31, 0
      %p157 = por %p155, %p156
      %p158 = scmp.ne.s32.totalorder %s146, %s147
      %p159 = scmp.eq.s32.totalorder %s32, 3
      %p160 = por %p158, %p159
      %p162 = scmp.ne.s32.totalorder %s147, %s161
      %p163 = scmp.eq.s32.totalorder %s32, 0
      %p164 = por %p162, %p163
      %s166 = sadd.s32 %s165, 1
      %p169 = scmp.eq.s32.totalorder %s26, 3
      %p170 = scmp.ne.s32.totalorder %s165, %s167
      %p171 = scmp.eq.s32.totalorder %s26, 0
      %p172 = por %p170, %p171
      %p173 = scmp.ne.s32.totalorder %s165, %s167
      %p174 = scmp.eq.s32.totalorder %s31, 3
      %p175 = por %p173, %p174
      %p176 = scmp.ne.s32.totalorder %s167, %s168
      %p177 = scmp.eq.s32.totalorder %s31, 0
      %p178 = por %p176, %p177
      %p179 = scmp.ne.s32.totalorder %s167, %s168
      %p180 = scmp.eq.s32.totalorder %s32, 3
      %p181 = por %p179, %p180
      %p183 = scmp.ne.s32.totalorder %s168, %s182
      %p184 = scmp.eq.s32.totalorder %s32, 0
      %p185 = por %p183, %p184
      %s187 = sadd.s32 %s186, 1
      %p190 = scmp.eq.s32.totalorder %s26, 3
      %p191 = scmp.ne.s32.totalorder %s186, %s188
      %p192 = scmp.eq.s32.totalorder %s26, 0
      %p193 = por %p191, %p192
      %p194 = scmp.ne.s32.totalorder %s186, %s188
      %p195 = scmp.eq.s32.totalorder %s31, 3
      %p196 = por %p194, %p195
      %p197 = scmp.ne.s32.totalorder %s188, %s189
      %p198 = scmp.eq.s32.totalorder %s31, 0
      %p199 = por %p197, %p198
      %p200 = scmp.ne.s32.totalorder %s188, %s189
      %p201 = scmp.eq.s32.totalorder %s32, 3
      %p202 = por %p200, %p201
      %p204 = scmp.ne.s32.totalorder %s189, %s203
      %p205 = scmp.eq.s32.totalorder %s32, 0
      %p206 = por %p204, %p205
      %s208 = sadd.s32 %s207, 1
      %p211 = scmp.eq.s32.totalorder %s26, 3
      %p212 = scmp.ne.s32.totalorder %s207, %s209
      %p213 = scmp.eq.s32.totalorder %s26, 0
      %p214 = por %p212, %p213
      %p215 = scmp.ne.s32.totalorder %s207, %s209
      %p216 = scmp.eq.s32.totalorder %s31, 3
      %p217 = por %p215, %p216
      %p218 = scmp.ne.s32.totalorder %s209, %s210
      %p219 = scmp.eq.s32.totalorder %s31, 0
      %p220 = por %p218, %p219
      %p221 = scmp.ne.s32.totalorder %s209, %s210
      %p222 = scmp.eq.s32.totalorder %s32, 3
      %p223 = por %p221, %p222
      %p225 = scmp.ne.s32.totalorder %s210, %s224
      %p226 = scmp.eq.s32.totalorder %s32, 0
      %p227 = por %p225, %p226
      %s229 = sadd.s32 %s228, 1
      %p232 = scmp.eq.s32.totalorder %s26, 3
      %p233 = scmp.ne.s32.totalorder %s228, %s230
      %p234 = scmp.eq.s32.totalorder %s26, 0
      %p235 = por %p233, %p234
      %p236 = scmp.ne.s32.totalorder %s228, %s230
      %p237 = scmp.eq.s32.totalorder %s31, 3
      %p238 = por %p236, %p237
      %p239 = scmp.ne.s32.totalorder %s230, %s231
      %p240 = scmp.eq.s32.totalorder %s31, 0
      %p241 = por %p239, %p240
      %p242 = scmp.ne.s32.totalorder %s230, %s231
      %p243 = scmp.eq.s32.totalorder %s32, 3
      %p244 = por %p242, %p243
      %p246 = scmp.ne.s32.totalorder %s231, %s245
      %p247 = scmp.eq.s32.totalorder %s32, 0
      %p248 = por %p246, %p247
      %s250 = sadd.s32 %s249, 1
      %p253 = scmp.eq.s32.totalorder %s26, 3
      %p254 = scmp.ne.s32.totalorder %s249, %s251
      %p255 = scmp.eq.s32.totalorder %s26, 0
      %p256 = por %p254, %p255
      %p257 = scmp.ne.s32.totalorder %s249, %s251
      %p258 = scmp.eq.s32.totalorder %s31, 3
      %p259 = por %p257, %p258
      %p260 = scmp.ne.s32.totalorder %s251, %s252
      %p261 = scmp.eq.s32.totalorder %s31, 0
      %p262 = por %p260, %p261
      %p263 = scmp.ne.s32.totalorder %s251, %s252
      %p264 = scmp.eq.s32.totalorder %s32, 3
      %p265 = por %p263, %p264
      %p267 = scmp.ne.s32.totalorder %s252, %s266
      %p268 = scmp.eq.s32.totalorder %s32, 0
      %p269 = por %p267, %p268
      %s271 = sadd.s32 %s270, 1
      %p274 = scmp.eq.s32.totalorder %s26, 3
      %p275 = scmp.ne.s32.totalorder %s270, %s272
      %p276 = scmp.eq.s32.totalorder %s26, 0
      %p277 = por %p275, %p276
      %p278 = scmp.ne.s32.totalorder %s270, %s272
      %p279 = scmp.eq.s32.totalorder %s31, 3
      %p280 = por %p278, %p279
      %p281 = scmp.ne.s32.totalorder %s272, %s273
      %p282 = scmp.eq.s32.totalorder %s31, 0
      %p283 = por %p281, %p282
      %p284 = scmp.ne.s32.totalorder %s272, %s273
      %p285 = scmp.eq.s32.totalorder %s32, 3
      %p286 = por %p284, %p285
      %p288 = scmp.ne.s32.totalorder %s273, %s287
      %p289 = scmp.eq.s32.totalorder %s32, 0
      %p290 = por %p288, %p289
      %s292 = sadd.s32 %s291, 1
      %p295 = scmp.eq.s32.totalorder %s26, 3
      %p296 = scmp.ne.s32.totalorder %s291, %s293
      %p297 = scmp.eq.s32.totalorder %s26, 0
      %p298 = por %p296, %p297
      %p299 = scmp.ne.s32.totalorder %s291, %s293
      %p300 = scmp.eq.s32.totalorder %s31, 3
      %p301 = por %p299, %p300
      %p302 = scmp.ne.s32.totalorder %s293, %s294
      %p303 = scmp.eq.s32.totalorder %s31, 0
      %p304 = por %p302, %p303
      %p305 = scmp.ne.s32.totalorder %s293, %s294
      %p306 = scmp.eq.s32.totalorder %s32, 3
      %p307 = por %p305, %p306
      %p309 = scmp.ne.s32.totalorder %s294, %s308
      %p310 = scmp.eq.s32.totalorder %s32, 0
      %p311 = por %p309, %p310
      %s313 = sadd.s32 %s312, 1
      %p316 = scmp.eq.s32.totalorder %s26, 3
      %p317 = scmp.ne.s32.totalorder %s312, %s314
      %p318 = scmp.eq.s32.totalorder %s26, 0
      %p319 = por %p317, %p318
      %p320 = scmp.ne.s32.totalorder %s312, %s314
      %p321 = scmp.eq.s32.totalorder %s31, 3
      %p322 = por %p320, %p321
      %p323 = scmp.ne.s32.totalorder %s314, %s315
      %p324 = scmp.eq.s32.totalorder %s31, 0
      %p325 = por %p323, %p324
      %p326 = scmp.ne.s32.totalorder %s314, %s315
      %p327 = scmp.eq.s32.totalorder %s32, 3
      %p328 = por %p326, %p327
      %p330 = scmp.ne.s32.totalorder %s315, %s329
      %p331 = scmp.eq.s32.totalorder %s32, 0
      %p332 = por %p330, %p331
      %s334 = sadd.s32 %s333, 1
      %p337 = scmp.eq.s32.totalorder %s26, 3
      %p338 = scmp.ne.s32.totalorder %s333, %s335
      %p339 = scmp.eq.s32.totalorder %s26, 0
      %p340 = por %p338, %p339
      %p341 = scmp.ne.s32.totalorder %s333, %s335
      %p342 = scmp.eq.s32.totalorder %s31, 3
      %p343 = por %p341, %p342
      %p344 = scmp.ne.s32.totalorder %s335, %s336
      %p345 = scmp.eq.s32.totalorder %s31, 0
      %p346 = por %p344, %p345
      %p347 = scmp.ne.s32.totalorder %s335, %s336
      %p348 = scmp.eq.s32.totalorder %s32, 3
      %p349 = por %p347, %p348
      %p351 = scmp.ne.s32.totalorder %s336, %s350
      %p352 = scmp.eq.s32.totalorder %s32, 0
      %p353 = por %p351, %p352
      %s355 = sadd.s32 %s354, 1
      %p358 = scmp.eq.s32.totalorder %s26, 3
      %p359 = scmp.ne.s32.totalorder %s354, %s356
      %p360 = scmp.eq.s32.totalorder %s26, 0
      %p361 = por %p359, %p360
      %p362 = scmp.ne.s32.totalorder %s354, %s356
      %p363 = scmp.eq.s32.totalorder %s31, 3
      %p364 = por %p362, %p363
      %p365 = scmp.ne.s32.totalorder %s356, %s357
      %p366 = scmp.eq.s32.totalorder %s31, 0
      %p367 = por %p365, %p366
      %p368 = scmp.ne.s32.totalorder %s356, %s357
      %p369 = scmp.eq.s32.totalorder %s32, 3
      %p370 = por %p368, %p369
      %p372 = scmp.ne.s32.totalorder %s357, %s371
      %p373 = scmp.eq.s32.totalorder %s32, 0
      %p374 = por %p372, %p373
      %s376 = sadd.s32 %s375, 1
      %p379 = scmp.eq.s32.totalorder %s26, 3
      %p380 = scmp.ne.s32.totalorder %s375, %s377
      %p381 = scmp.eq.s32.totalorder %s26, 0
      %p382 = por %p380, %p381
      %p383 = scmp.ne.s32.totalorder %s375, %s377
      %p384 = scmp.eq.s32.totalorder %s31, 3
      %p385 = por %p383, %p384
      %p386 = scmp.ne.s32.totalorder %s377, %s378
      %p387 = scmp.eq.s32.totalorder %s31, 0
      %p388 = por %p386, %p387
      %p389 = scmp.ne.s32.totalorder %s377, %s378
      %p390 = scmp.eq.s32.totalorder %s32, 3
      %p391 = por %p389, %p390
      %p393 = scmp.ne.s32.totalorder %s378, %s392
      %p394 = scmp.eq.s32.totalorder %s32, 0
      %p395 = por %p393, %p394
      %s397 = sadd.s32 %s396, 1
      %p400 = scmp.eq.s32.totalorder %s26, 3
      %p401 = scmp.ne.s32.totalorder %s396, %s398
      %p402 = scmp.eq.s32.totalorder %s26, 0
      %p403 = por %p401, %p402
      %p404 = scmp.ne.s32.totalorder %s396, %s398
      %p405 = scmp.eq.s32.totalorder %s31, 3
      %p406 = por %p404, %p405
      %p407 = scmp.ne.s32.totalorder %s398, %s399
      %p408 = scmp.eq.s32.totalorder %s31, 0
      %p409 = por %p407, %p408
      %p410 = scmp.ne.s32.totalorder %s398, %s399
      %p411 = scmp.eq.s32.totalorder %s32, 3
      %p412 = por %p410, %p411
      %p414 = scmp.ne.s32.totalorder %s399, %s413
      %p415 = scmp.eq.s32.totalorder %s32, 0
      %p416 = por %p414, %p415
      %s417 = smul.u32 %s35, %s34
      %s418 = smul.u32 %s44, %s48
      %s419 = ssub.s32 %s33, %s52
      %s420 = ssub.s32 %s417, %s418
      %s421 = sor.u32 %s419, %s420
      %p422 = scmp.eq.s32.totalorder %s421, 0
      %s424 = sadd.s32 %s423, 1
      %s425 = scalar_select %p422, %s423, %s424
      %p428 = pneg %p422
      %p429 = scmp.eq.s32.totalorder %s26, 3
      %p430 = por %p428, %p429
      %p431 = scmp.ne.s32.totalorder %s423, %s426
      %p432 = scmp.eq.s32.totalorder %s26, 0
      %p433 = por %p431, %p432
      %p434 = scmp.ne.s32.totalorder %s423, %s426
      %p435 = scmp.eq.s32.totalorder %s31, 3
      %p436 = por %p434, %p435
      %p437 = scmp.ne.s32.totalorder %s426, %s427
      %p438 = scmp.eq.s32.totalorder %s31, 0
      %p439 = por %p437, %p438
      %p440 = scmp.ne.s32.totalorder %s426, %s427
      %p441 = scmp.eq.s32.totalorder %s32, 3
      %p442 = por %p440, %p441
      %p444 = scmp.ne.s32.totalorder %s427, %s443
      %p445 = scmp.eq.s32.totalorder %s32, 0
      %p446 = por %p444, %p445
      %p447 = scmp.le.s32.totalorder 1, %s26
      %p448 = scmp.lt.s32.totalorder %s26, 5
      %p449 = pnand %p447, %p448
      %p450 = pneg %p449
      // Predicated region
      $region9: #{tpu_custom_call.1} parent=5 // pred_check
        _
      $region10: #{tpu_custom_call.1} parent=5 // pred_check_branch
        %452 = sbr.rel (%p449) target = $region12
      $region11: #{tpu_custom_call.1} parent=5 // pred_region
        %s453 = ssub.s32 %s26, 1
        // Predicated region
        $region13: #{tpu_custom_call.1} parent=11 // pred_check
          %p454 = pneg %p94
        $region14: #{tpu_custom_call.1} parent=11 // pred_check_branch
          %456 = sbr.rel (%p454) target = $region16
        $region15: #{tpu_custom_call.1} parent=11 // pred_region
          _
        $region16: #{tpu_custom_call.1} parent=11 // pred_fallthru
          _
        // Predicated region
        $region17: #{tpu_custom_call.1} parent=11 // pred_check
          %p457 = pneg %p115
        $region18: #{tpu_custom_call.1} parent=11 // pred_check_branch
          %459 = sbr.rel (%p457) target = $region20
        $region19: #{tpu_custom_call.1} parent=11 // pred_region
          _
        $region20: #{tpu_custom_call.1} parent=11 // pred_fallthru
          _
        // Predicated region
        $region21: #{tpu_custom_call.1} parent=11 // pred_check
          %p460 = pneg %p136
        $region22: #{tpu_custom_call.1} parent=11 // pred_check_branch
          %462 = sbr.rel (%p460) target = $region24
        $region23: #{tpu_custom_call.1} parent=11 // pred_region
          _
        $region24: #{tpu_custom_call.1} parent=11 // pred_fallthru
          _
        // Predicated region
        $region25: #{tpu_custom_call.1} parent=11 // pred_check
          %p463 = pneg %p157
        $region26: #{tpu_custom_call.1} parent=11 // pred_check_branch
          %465 = sbr.rel (%p463) target = $region28
        $region27: #{tpu_custom_call.1} parent=11 // pred_region
          _
        $region28: #{tpu_custom_call.1} parent=11 // pred_fallthru
          _
        // Predicated region
        $region29: #{tpu_custom_call.1} parent=11 // pred_check
          %p466 = pneg %p178
        $region30: #{tpu_custom_call.1} parent=11 // pred_check_branch
          %468 = sbr.rel (%p466) target = $region32
        $region31: #{tpu_custom_call.1} parent=11 // pred_region
          _
        $region32: #{tpu_custom_call.1} parent=11 // pred_fallthru
          _
        // Predicated region
        $region33: #{tpu_custom_call.1} parent=11 // pred_check
          %p469 = pneg %p199
        $region34: #{tpu_custom_call.1} parent=11 // pred_check_branch
          %471 = sbr.rel (%p469) target = $region36
        $region35: #{tpu_custom_call.1} parent=11 // pred_region
          _
        $region36: #{tpu_custom_call.1} parent=11 // pred_fallthru
          _
        // Predicated region
        $region37: #{tpu_custom_call.1} parent=11 // pred_check
          %p472 = pneg %p220
        $region38: #{tpu_custom_call.1} parent=11 // pred_check_branch
          %474 = sbr.rel (%p472) target = $region40
        $region39: #{tpu_custom_call.1} parent=11 // pred_region
          _
        $region40: #{tpu_custom_call.1} parent=11 // pred_fallthru
          _
        // Predicated region
        $region41: #{tpu_custom_call.1} parent=11 // pred_check
          %p475 = pneg %p241
        $region42: #{tpu_custom_call.1} parent=11 // pred_check_branch
          %477 = sbr.rel (%p475) target = $region44
        $region43: #{tpu_custom_call.1} parent=11 // pred_region
          _
        $region44: #{tpu_custom_call.1} parent=11 // pred_fallthru
          _
        // Predicated region
        $region45: #{tpu_custom_call.1} parent=11 // pred_check
          %p478 = pneg %p262
        $region46: #{tpu_custom_call.1} parent=11 // pred_check_branch
          %480 = sbr.rel (%p478) target = $region48
        $region47: #{tpu_custom_call.1} parent=11 // pred_region
          _
        $region48: #{tpu_custom_call.1} parent=11 // pred_fallthru
          _
        // Predicated region
        $region49: #{tpu_custom_call.1} parent=11 // pred_check
          %p481 = pneg %p283
        $region50: #{tpu_custom_call.1} parent=11 // pred_check_branch
          %483 = sbr.rel (%p481) target = $region52
        $region51: #{tpu_custom_call.1} parent=11 // pred_region
          _
        $region52: #{tpu_custom_call.1} parent=11 // pred_fallthru
          _
        // Predicated region
        $region53: #{tpu_custom_call.1} parent=11 // pred_check
          %p484 = pneg %p304
        $region54: #{tpu_custom_call.1} parent=11 // pred_check_branch
          %486 = sbr.rel (%p484) target = $region56
        $region55: #{tpu_custom_call.1} parent=11 // pred_region
          _
        $region56: #{tpu_custom_call.1} parent=11 // pred_fallthru
          _
        // Predicated region
        $region57: #{tpu_custom_call.1} parent=11 // pred_check
          %p487 = pneg %p325
        $region58: #{tpu_custom_call.1} parent=11 // pred_check_branch
          %489 = sbr.rel (%p487) target = $region60
        $region59: #{tpu_custom_call.1} parent=11 // pred_region
          _
        $region60: #{tpu_custom_call.1} parent=11 // pred_fallthru
          _
        // Predicated region
        $region61: #{tpu_custom_call.1} parent=11 // pred_check
          %p490 = pneg %p346
        $region62: #{tpu_custom_call.1} parent=11 // pred_check_branch
          %492 = sbr.rel (%p490) target = $region64
        $region63: #{tpu_custom_call.1} parent=11 // pred_region
          _
        $region64: #{tpu_custom_call.1} parent=11 // pred_fallthru
          _
        // Predicated region
        $region65: #{tpu_custom_call.1} parent=11 // pred_check
          %p493 = pneg %p367
        $region66: #{tpu_custom_call.1} parent=11 // pred_check_branch
          %495 = sbr.rel (%p493) target = $region68
        $region67: #{tpu_custom_call.1} parent=11 // pred_region
          _
        $region68: #{tpu_custom_call.1} parent=11 // pred_fallthru
          _
        // Predicated region
        $region69: #{tpu_custom_call.1} parent=11 // pred_check
          %p496 = pneg %p388
        $region70: #{tpu_custom_call.1} parent=11 // pred_check_branch
          %498 = sbr.rel (%p496) target = $region72
        $region71: #{tpu_custom_call.1} parent=11 // pred_region
          _
        $region72: #{tpu_custom_call.1} parent=11 // pred_fallthru
          _
        // Predicated region
        $region73: #{tpu_custom_call.1} parent=11 // pred_check
          %p499 = pneg %p409
        $region74: #{tpu_custom_call.1} parent=11 // pred_check_branch
          %501 = sbr.rel (%p499) target = $region76
        $region75: #{tpu_custom_call.1} parent=11 // pred_region
          _
        $region76: #{tpu_custom_call.1} parent=11 // pred_fallthru
          _
      $region12: #{tpu_custom_call.1} parent=5 // pred_fallthru
        _
      %p502 = scmp.lt.s32.totalorder %s26, 4
      // Predicated region
      $region77: #{tpu_custom_call.1} parent=5 // pred_check
        %p503 = pneg %p502
      $region78: #{tpu_custom_call.1} parent=5 // pred_check_branch
        %505 = sbr.rel (%p503) target = $region80
      $region79: #{tpu_custom_call.1} parent=5 // pred_region
        // Predicated region
        $region81: #{tpu_custom_call.1} parent=79 // pred_check
          %p506 = pneg %p67
        $region82: #{tpu_custom_call.1} parent=79 // pred_check_branch
          %508 = sbr.rel (%p506) target = $region84
        $region83: #{tpu_custom_call.1} parent=79 // pred_region
          %p509 = scmp.lt.s32.totalorder %s33, 1
          %s510 = scalar_select %p509, %s33, 1
          %p511 = scmp.lt.s32.totalorder %s35, 0
          %s512 = scalar_select %p511, %s35, 0
          %s513 = sadd.s32 %s512, %s510
          %s514 = smul.addr %s513, 4
          %s515 = scalar_lea.vmem %s0, %s514
        $region84: #{tpu_custom_call.1} parent=79 // pred_fallthru
          _
      $region80: #{tpu_custom_call.1} parent=5 // pred_fallthru
        _
      %p516 = scmp.le.s32.totalorder 1, %s26
      %p517 = scmp.lt.s32.totalorder %s26, 5
      %p518 = pnand %p516, %p517
      %p519 = pneg %p518
      // Predicated region
      $region85: #{tpu_custom_call.1} parent=5 // pred_check
        _
      $region86: #{tpu_custom_call.1} parent=5 // pred_check_branch
        %521 = sbr.rel (%p518) target = $region88
      $region87: #{tpu_custom_call.1} parent=5 // pred_region
        %s522 = ssub.s32 %s26, 1
        %p523 = scmp.lt.s32.totalorder %s36, 1
        %s524 = scalar_select %p523, %s36, 1
        %p525 = scmp.lt.s32.totalorder %s38, 0
        %s526 = scalar_select %p525, %s38, 0
        %s527 = sadd.s32 %s526, %s524
        %s528 = smul.addr %s527, 4
        %s529 = scalar_lea.vmem %s0, %s528
        %p530 = pneg %p73
        %p531 = pneg %p70
        %p532 = pneg %p94
        %p533 = pneg %p91
        %p534 = pneg %p115
        %p535 = pneg %p112
        %p536 = pneg %p136
        %p537 = pneg %p133
        %p538 = pneg %p157
        %p539 = pneg %p154
        %p540 = pneg %p178
        %p541 = pneg %p175
        %p542 = pneg %p199
        %p543 = pneg %p196
        %p544 = pneg %p220
        %p545 = pneg %p217
        %p546 = pneg %p241
        %p547 = pneg %p238
        %p548 = pneg %p262
        %p549 = pneg %p259
        %p550 = pneg %p283
        %p551 = pneg %p280
        %p552 = pneg %p304
        %p553 = pneg %p301
        %p554 = pneg %p325
        %p555 = pneg %p322
        %p556 = pneg %p346
        %p557 = pneg %p343
        %p558 = pneg %p367
        %p559 = pneg %p364
        %p560 = pneg %p388
        %p561 = pneg %p385
        %p562 = pneg %p409
        %p563 = pneg %p406
        %p564 = pneg %p439
        %p565 = pneg %p436
        %s566 = sand.u32 %s426, 1
        %s567 = scalar_lea.sflag [#allocation5], %s566
        %s568 = sand.u32 %s426, 1
        %s569 = smul.addr %s568, 8
        %s570 = scalar_lea.vmem [#allocation4], %s569
        %p571 = scmp.lt.s32.totalorder %s36, 1
        %s572 = scalar_select %p571, %s36, 1
        %p573 = scmp.lt.s32.totalorder %s38, 0
        %s574 = scalar_select %p573, %s38, 0
        %s575 = sadd.s32 %s574, %s572
        %s576 = smul.addr %s575, 4
        %s577 = scalar_lea.vmem %s0, %s576
        %s578 = smul.u32 %s38, %s37
        %v580 = vld [vmem:[%s577] sm:$0xf]
        %p581 = scmp.eq.s32.totalorder %s37, 0
        %p582 = scmp.eq.s32.totalorder %s38, 0
        %p583 = pnand %p581, %p582
        %p584 = pneg %p583
        // Predicated region
        $region89: #{tpu_custom_call.1} parent=87 // pred_check
          _
        $region90: #{tpu_custom_call.1} parent=87 // pred_check_branch
          %586 = sbr.rel (%p583) target = $region92
        $region91: #{tpu_custom_call.1} parent=87 // pred_region
          %vm587 = vcmask 261120
          %588 = vst.msk [vmem:[#allocation2] sm:$0xff] %vm587, 0.0
          %589 = vst.msk [vmem:[#allocation2 + $0x8] sm:$0xff] %vm587, 0.0
          %590 = vst.msk [vmem:[#allocation2 + $0x10] sm:$0xff] %vm587, 0.0
          %591 = vst.msk [vmem:[#allocation2 + $0x18] sm:$0xff] %vm587, 0.0
        $region92: #{tpu_custom_call.1} parent=87 // pred_fallthru
          _
        // Predicated region
        $region93: #{tpu_custom_call.1} parent=87 // pred_check
          %p592 = pneg %p581
        $region94: #{tpu_custom_call.1} parent=87 // pred_check_branch
          %594 = sbr.rel (%p592) target = $region96
        $region95: #{tpu_custom_call.1} parent=87 // pred_region
          %v595 = vld [vmem:[%s3] sm:$0xf]
          %v596 = vld [vmem:[%s3 + $0x4] sm:$0xf]
          %v597 = vld [vmem:[%s3 + $0x8] sm:$0xf]
          %v598 = vld [vmem:[%s3 + $0xc] sm:$0xf]
          %v599 = vld [vmem:[%s4] sm:$0x1]
          %v601 = vlaneseq
          %v602 = vshrl.u32 %v601, 7
          %v603 = vsub.s32 0, %v602
          %v604 = vrot.slane %v599, %v603
          %v610 = vunpack.c.l.b16 %v595
          %v611 = vunpack.c.l.b16 %v596
          %v612 = vunpack.c.l.b16 %v597
          %v613 = vunpack.c.l.b16 %v598
          %v614 = vpack.c.b16 %v611, %v610
          %v615 = vpack.c.b16 %v613, %v612
          %vm618 = vcmask 261120
          %v620 = vsel %vm618, %v580, 0
          %622 = vmatprep.subr.bf16.mxu0 0
          %623 = vmatpush1.bf16.msra.mxu0 %v614
          %624 = vmatprep.subr.bf16.mxu0 0
          %625 = vmatpush1.bf16.msra.mxu0 %v615
          %626 = vmatprep.subr.bf16.mxu0 0
          %627 = vmatpush1.bf16.msra.mxu0 0
          %628 = vmatprep.subr.bf16.mxu0 0
          %629 = vmatpush1.bf16.msra.mxu0 0
          %630 = vmatprep.subr.bf16.mxu0 0
          %631 = vmatpush1.bf16.msra.mxu0 0
          %632 = vmatprep.subr.bf16.mxu0 0
          %633 = vmatpush1.bf16.msra.mxu0 0
          %634 = vmatprep.subr.bf16.mxu0 0
          %635 = vmatpush1.bf16.msra.mxu0 0
          %636 = vmatprep.subr.bf16.mxu0 0
          %637 = vmatpush1.bf16.msra.mxu0 0
          %638 = vmatprep.subr.bf16.mxu0 0
          %639 = vmatpush1.bf16.msra.mxu0 0
          %640 = vmatprep.subr.bf16.mxu0 0
          %641 = vmatpush1.bf16.msra.mxu0 0
          %642 = vmatprep.subr.bf16.mxu0 0
          %643 = vmatpush1.bf16.msra.mxu0 0
          %644 = vmatprep.subr.bf16.mxu0 0
          %645 = vmatpush1.bf16.msra.mxu0 0
          %646 = vmatprep.subr.bf16.mxu0 0
          %647 = vmatpush1.bf16.msra.mxu0 0
          %648 = vmatprep.subr.bf16.mxu0 0
          %649 = vmatpush1.bf16.msra.mxu0 0
          %650 = vmatprep.subr.bf16.mxu0 0
          %651 = vmatpush1.bf16.msra.mxu0 0
          %652 = vmatprep.subr.bf16.mxu0 0
          %653 = vmatpush1.bf16.msra.mxu0 0
          %654 = vmatprep.mubr.bf16.mxu0 0
          %655 = vmatmul.mubr.bf16.gmra.mrb[0].mxu0 %v620
          %v656 = vpop.f32.mrb[0].mxu0
          %v657 = vadd.f32 %v604, %v656
          %v658 = vpop.f32.mrb[0].mxu0
          %v659 = vpop.f32.mrb[0].mxu0
          %v660 = vpop.f32.mrb[0].mxu0
          %661 = vdwg.mxu0
          %vm662 = vcmp.gt.f32.partialorder %v657, 0.0
          %v663 = vmin.f32 %v657, 0.0
          %v664 = vmul.f32 %v663, 1.442695
          %v665 = vpow.pop %v664
          %v666 = vsub.f32 %v665, 1.0
          %v667 = vsel %vm662, %v657, %v666
          %v668 = vmul.f32 %v667, %v667
          %v669 = vld [vmem:[%s15] sm:$0xff]
          %v670 = vld [vmem:[%s15 + $0x8] sm:$0xff]
          %v671 = vld [vmem:[%s15 + $0x10] sm:$0xff]
          %v672 = vld [vmem:[%s15 + $0x18] sm:$0xff]
          %v674 = vsel %vm618, %v668, 0
          %676 = vmatprep.subr.mxu0 0.0
          %677 = vmatpush1.msra.mxu0 %v669
          %678 = vmatprep.subr.mxu0 0.0
          %679 = vmatpush1.msra.mxu0 %v670
          %680 = vmatprep.subr.mxu0 0.0
          %681 = vmatpush1.msra.mxu0 %v671
          %682 = vmatprep.subr.mxu0 0.0
          %683 = vmatpush1.msra.mxu0 %v672
          %684 = vmatprep.subr.mxu0 0.0
          %685 = vmatpush1.msra.mxu0 0.0
          %686 = vmatprep.subr.mxu0 0.0
          %687 = vmatpush1.msra.mxu0 0.0
          %688 = vmatprep.subr.mxu0 0.0
          %689 = vmatpush1.msra.mxu0 0.0
          %690 = vmatprep.subr.mxu0 0.0
          %691 = vmatpush1.msra.mxu0 0.0
          %692 = vmatprep.subr.mxu0 0.0
          %693 = vmatpush1.msra.mxu0 0.0
          %694 = vmatprep.subr.mxu0 0.0
          %695 = vmatpush1.msra.mxu0 0.0
          %696 = vmatprep.subr.mxu0 0.0
          %697 = vmatpush1.msra.mxu0 0.0
          %698 = vmatprep.subr.mxu0 0.0
          %699 = vmatpush1.msra.mxu0 0.0
          %700 = vmatprep.subr.mxu0 0.0
          %701 = vmatpush1.msra.mxu0 0.0
          %702 = vmatprep.subr.mxu0 0.0
          %703 = vmatpush1.msra.mxu0 0.0
          %704 = vmatprep.subr.mxu0 0.0
          %705 = vmatpush1.msra.mxu0 0.0
          %706 = vmatprep.subr.mxu0 0.0
          %707 = vmatpush1.msra.mxu0 0.0
          %708 = vmatprep.subr.mxu0 0.0
          %709 = vmatpush1.msra.mxu0 0.0
          %710 = vmatprep.subr.mxu0 0.0
          %711 = vmatpush1.msra.mxu0 0.0
          %712 = vmatprep.subr.mxu0 0.0
          %713 = vmatpush1.msra.mxu0 0.0
          %714 = vmatprep.subr.mxu0 0.0
          %715 = vmatpush1.msra.mxu0 0.0
          %716 = vmatprep.subr.mxu0 0.0
          %717 = vmatpush1.msra.mxu0 0.0
          %718 = vmatprep.subr.mxu0 0.0
          %719 = vmatpush1.msra.mxu0 0.0
          %720 = vmatprep.subr.mxu0 0.0
          %721 = vmatpush1.msra.mxu0 0.0
          %722 = vmatprep.subr.mxu0 0.0
          %723 = vmatpush1.msra.mxu0 0.0
          %724 = vmatprep.subr.mxu0 0.0
          %725 = vmatpush1.msra.mxu0 0.0
          %726 = vmatprep.subr.mxu0 0.0
          %727 = vmatpush1.msra.mxu0 0.0
          %728 = vmatprep.subr.mxu0 0.0
          %729 = vmatpush1.msra.mxu0 0.0
          %730 = vmatprep.subr.mxu0 0.0
          %731 = vmatpush1.msra.mxu0 0.0
          %732 = vmatprep.subr.mxu0 0.0
          %733 = vmatpush1.msra.mxu0 0.0
          %734 = vmatprep.subr.mxu0 0.0
          %735 = vmatpush1.msra.mxu0 0.0
          %736 = vmatprep.subr.mxu0 0.0
          %737 = vmatpush1.msra.mxu0 0.0
          %738 = vmatprep.subr.mxu0 0.0
          %739 = vmatpush1.msra.mxu0 0.0
          %740 = vmatprep.mubr.f32.mxu0 0.0
          %741 = vmatmul.mubr.f32.gmra.mrb[0].mxu0 %v674
          %v742 = vpop.f32.mrb[0].mxu0
          %v743 = vadd.f32 1e-12, %v742
          %v744 = vpop.f32.mrb[0].mxu0
          %745 = vdwg.mxu0
          %v746 = vrsqrt.pop %v743
          %v747 = vld [vmem:[%s16] sm:$0x3]
          %vm748 = vcmask 15360
          %v750 = vsel %vm748, %v746, 0
          %vm752 = vcmask 1041408
          %v754 = vsel %vm752, %v747, 0
          %756 = vmatprep.subr.mxu0 0.0
          %757 = vmatpush1.msra.mxu0 %v754
          %758 = vmatprep.subr.mxu0 0.0
          %759 = vmatpush1.msra.mxu0 0.0
          %760 = vmatprep.subr.mxu0 0.0
          %761 = vmatpush1.msra.mxu0 0.0
          %762 = vmatprep.subr.mxu0 0.0
          %763 = vmatpush1.msra.mxu0 0.0
          %764 = vmatprep.subr.mxu0 0.0
          %765 = vmatpush1.msra.mxu0 0.0
          %766 = vmatprep.subr.mxu0 0.0
          %767 = vmatpush1.msra.mxu0 0.0
          %768 = vmatprep.subr.mxu0 0.0
          %769 = vmatpush1.msra.mxu0 0.0
          %770 = vmatprep.subr.mxu0 0.0
          %771 = vmatpush1.msra.mxu0 0.0
          %772 = vmatprep.subr.mxu0 0.0
          %773 = vmatpush1.msra.mxu0 0.0
          %774 = vmatprep.subr.mxu0 0.0
          %775 = vmatpush1.msra.mxu0 0.0
          %776 = vmatprep.subr.mxu0 0.0
          %777 = vmatpush1.msra.mxu0 0.0
          %778 = vmatprep.subr.mxu0 0.0
          %779 = vmatpush1.msra.mxu0 0.0
          %780 = vmatprep.subr.mxu0 0.0
          %781 = vmatpush1.msra.mxu0 0.0
          %782 = vmatprep.subr.mxu0 0.0
          %783 = vmatpush1.msra.mxu0 0.0
          %784 = vmatprep.subr.mxu0 0.0
          %785 = vmatpush1.msra.mxu0 0.0
          %786 = vmatprep.subr.mxu0 0.0
          %787 = vmatpush1.msra.mxu0 0.0
          %788 = vmatprep.subr.mxu0 0.0
          %789 = vmatpush1.msra.mxu0 0.0
          %790 = vmatprep.subr.mxu0 0.0
          %791 = vmatpush1.msra.mxu0 0.0
          %792 = vmatprep.subr.mxu0 0.0
          %793 = vmatpush1.msra.mxu0 0.0
          %794 = vmatprep.subr.mxu0 0.0
          %795 = vmatpush1.msra.mxu0 0.0
          %796 = vmatprep.subr.mxu0 0.0
          %797 = vmatpush1.msra.mxu0 0.0
          %798 = vmatprep.subr.mxu0 0.0
          %799 = vmatpush1.msra.mxu0 0.0
          %800 = vmatprep.subr.mxu0 0.0
          %801 = vmatpush1.msra.mxu0 0.0
          %802 = vmatprep.subr.mxu0 0.0
          %803 = vmatpush1.msra.mxu0 0.0
          %804 = vmatprep.subr.mxu0 0.0
          %805 = vmatpush1.msra.mxu0 0.0
          %806 = vmatprep.subr.mxu0 0.0
          %807 = vmatpush1.msra.mxu0 0.0
          %808 = vmatprep.subr.mxu0 0.0
          %809 = vmatpush1.msra.mxu0 0.0
          %810 = vmatprep.subr.mxu0 0.0
          %811 = vmatpush1.msra.mxu0 0.0
          %812 = vmatprep.subr.mxu0 0.0
          %813 = vmatpush1.msra.mxu0 0.0
          %814 = vmatprep.subr.mxu0 0.0
          %815 = vmatpush1.msra.mxu0 0.0
          %816 = vmatprep.subr.mxu0 0.0
          %817 = vmatpush1.msra.mxu0 0.0
          %818 = vmatprep.subr.mxu0 0.0
          %819 = vmatpush1.msra.mxu0 0.0
          %820 = vmatprep.mubr.f32.mxu0 0.0
          %821 = vmatmul.mubr.f32.gmra.mrb[0].mxu0 %v750
          %v822 = vpop.f32.mrb[0].mxu0
          %v823 = vadd.f32 0.0, %v822
          %v824 = vpop.f32.mrb[0].mxu0
          %825 = vdwg.mxu0
          %v826 = vmul.f32 %v667, %v823
          %v827 = vld [vmem:[#allocation2] sm:$0xff]
          %v828 = vld [vmem:[#allocation2 + $0x8] sm:$0xff]
          %v829 = vld [vmem:[#allocation2 + $0x10] sm:$0xff]
          %v830 = vld [vmem:[#allocation2 + $0x18] sm:$0xff]
          %v831 = vpack.c.bf16 %v826, %v826
          %v832 = vpack.c.bf16 %v657, %v657
          %833 = vxpose.xlu0.c.b16.start [1/8] %v831, 128
          %834 = vxpose.xlu0.c.b16.cont [2/8] 0, 128
          %835 = vxpose.xlu0.c.b16.cont [3/8] 0, 128
          %836 = vxpose.xlu0.c.b16.cont [4/8] 0, 128
          %837 = vxpose.xlu0.c.b16.cont [5/8] 0, 128
          %838 = vxpose.xlu0.c.b16.cont [6/8] 0, 128
          %839 = vxpose.xlu0.c.b16.cont [7/8] 0, 128
          %840 = vxpose.xlu0.c.b16.end [8/8] 0, 128
          %v841 = vpop.trf.xlu0
          %v842 = vpop.trf.xlu0
          %v843 = vpop.trf.xlu0
          %v844 = vpop.trf.xlu0
          %v845 = vpop.trf.xlu0
          %v846 = vpop.trf.xlu0
          %v847 = vpop.trf.xlu0
          %v848 = vpop.trf.xlu0
          %850 = vrot.lane.b32.xlu0 %v832, 96
          %v851 = vpop.permute.xlu0 %850
          %vm852 = vcmask 64512
          %v854 = vsel %vm852, %v841, 0
          %v857 = vsel %vm852, %v842, 0
          %vm859 = vcmask 1043456
          %v861 = vsel %vm859, %v851, 0
          %863 = vmatprep.subr.bf16.mxu0 0
          %864 = vmatpush1.bf16.msra.mxu0 %v861
          %865 = vmatprep.subr.bf16.mxu0 0
          %866 = vmatpush1.bf16.msra.mxu0 0
          %867 = vmatprep.subr.bf16.mxu0 0
          %868 = vmatpush1.bf16.msra.mxu0 0
          %869 = vmatprep.subr.bf16.mxu0 0
          %870 = vmatpush1.bf16.msra.mxu0 0
          %871 = vmatprep.subr.bf16.mxu0 0
          %872 = vmatpush1.bf16.msra.mxu0 0
          %873 = vmatprep.subr.bf16.mxu0 0
          %874 = vmatpush1.bf16.msra.mxu0 0
          %875 = vmatprep.subr.bf16.mxu0 0
          %876 = vmatpush1.bf16.msra.mxu0 0
          %877 = vmatprep.subr.bf16.mxu0 0
          %878 = vmatpush1.bf16.msra.mxu0 0
          %879 = vmatprep.subr.bf16.mxu0 0
          %880 = vmatpush1.bf16.msra.mxu0 0
          %881 = vmatprep.subr.bf16.mxu0 0
          %882 = vmatpush1.bf16.msra.mxu0 0
          %883 = vmatprep.subr.bf16.mxu0 0
          %884 = vmatpush1.bf16.msra.mxu0 0
          %885 = vmatprep.subr.bf16.mxu0 0
          %886 = vmatpush1.bf16.msra.mxu0 0
          %887 = vmatprep.subr.bf16.mxu0 0
          %888 = vmatpush1.bf16.msra.mxu0 0
          %889 = vmatprep.subr.bf16.mxu0 0
          %890 = vmatpush1.bf16.msra.mxu0 0
          %891 = vmatprep.subr.bf16.mxu0 0
          %892 = vmatpush1.bf16.msra.mxu0 0
          %893 = vmatprep.subr.bf16.mxu0 0
          %894 = vmatpush1.bf16.msra.mxu0 0
          %895 = vmatprep.mubr.bf16.mxu0 0
          %896 = vmatmul.mubr.bf16.gmra.mrb[0].mxu0 %v854
          %v897 = vpop.f32.mrb[0].mxu0
          %v898 = vadd.f32 0.0, %v897
          %v899 = vpop.f32.mrb[0].mxu0
          %v900 = vpop.f32.mrb[0].mxu0
          %v901 = vadd.f32 0.0, %v900
          %v902 = vpop.f32.mrb[0].mxu0
          %903 = vmatprep.mubr.bf16.mxu0 0
          %904 = vmatmul.mubr.bf16.gmra.mrb[0].mxu0 %v857
          %v905 = vpop.f32.mrb[0].mxu0
          %v906 = vadd.f32 0.0, %v905
          %v907 = vpop.f32.mrb[0].mxu0
          %v908 = vpop.f32.mrb[0].mxu0
          %v909 = vadd.f32 0.0, %v908
          %v910 = vpop.f32.mrb[0].mxu0
          %911 = vdwg.mxu0
          %v912 = vadd.f32 %v827, %v898
          %v913 = vadd.f32 %v828, %v901
          %v914 = vadd.f32 %v829, %v906
          %v915 = vadd.f32 %v830, %v909
          %916 = vst.msk [vmem:[#allocation2] sm:$0xff] %vm618, %v912
          %917 = vst.msk [vmem:[#allocation2 + $0x8] sm:$0xff] %vm618, %v913
          %918 = vst.msk [vmem:[#allocation2 + $0x10] sm:$0xff] %vm618, %v914
          %919 = vst.msk [vmem:[#allocation2 + $0x18] sm:$0xff] %vm618, %v915
          // Predicated region
          $region97: #{tpu_custom_call.1} parent=95 // pred_check
            %p920 = pneg %p582
          $region98: #{tpu_custom_call.1} parent=95 // pred_check_branch
            %922 = sbr.rel (%p920) target = $region100
          $region99: #{tpu_custom_call.1} parent=95 // pred_region
            %v923 = vld [vmem:[%s15] sm:$0xff]
            %v924 = vld [vmem:[%s15 + $0x8] sm:$0xff]
            %v925 = vld [vmem:[%s15 + $0x10] sm:$0xff]
            %v926 = vld [vmem:[%s15 + $0x18] sm:$0xff]
            %v927 = vld [vmem:[%s16] sm:$0x3]
            %v929 = vsel %vm748, %v923, 0
            %v932 = vsel %vm748, %v924, 0
            %v935 = vsel %vm748, %v925, 0
            %v938 = vsel %vm748, %v926, 0
            %v941 = vsel %vm752, %v927, 0
            %943 = vmatprep.subr.mxu0 0.0
            %944 = vmatpush1.msra.mxu0 %v941
            %945 = vmatprep.subr.mxu0 0.0
            %946 = vmatpush1.msra.mxu0 0.0
            %947 = vmatprep.subr.mxu0 0.0
            %948 = vmatpush1.msra.mxu0 0.0
            %949 = vmatprep.subr.mxu0 0.0
            %950 = vmatpush1.msra.mxu0 0.0
            %951 = vmatprep.subr.mxu0 0.0
            %952 = vmatpush1.msra.mxu0 0.0
            %953 = vmatprep.subr.mxu0 0.0
            %954 = vmatpush1.msra.mxu0 0.0
            %955 = vmatprep.subr.mxu0 0.0
            %956 = vmatpush1.msra.mxu0 0.0
            %957 = vmatprep.subr.mxu0 0.0
            %958 = vmatpush1.msra.mxu0 0.0
            %959 = vmatprep.subr.mxu0 0.0
            %960 = vmatpush1.msra.mxu0 0.0
            %961 = vmatprep.subr.mxu0 0.0
            %962 = vmatpush1.msra.mxu0 0.0
            %963 = vmatprep.subr.mxu0 0.0
            %964 = vmatpush1.msra.mxu0 0.0
            %965 = vmatprep.subr.mxu0 0.0
            %966 = vmatpush1.msra.mxu0 0.0
            %967 = vmatprep.subr.mxu0 0.0
            %968 = vmatpush1.msra.mxu0 0.0
            %969 = vmatprep.subr.mxu0 0.0
            %970 = vmatpush1.msra.mxu0 0.0
            %971 = vmatprep.subr.mxu0 0.0
            %972 = vmatpush1.msra.mxu0 0.0
            %973 = vmatprep.subr.mxu0 0.0
            %974 = vmatpush1.msra.mxu0 0.0
            %975 = vmatprep.subr.mxu0 0.0
            %976 = vmatpush1.msra.mxu0 0.0
            %977 = vmatprep.subr.mxu0 0.0
            %978 = vmatpush1.msra.mxu0 0.0
            %979 = vmatprep.subr.mxu0 0.0
            %980 = vmatpush1.msra.mxu0 0.0
            %981 = vmatprep.subr.mxu0 0.0
            %982 = vmatpush1.msra.mxu0 0.0
            %983 = vmatprep.subr.mxu0 0.0
            %984 = vmatpush1.msra.mxu0 0.0
            %985 = vmatprep.subr.mxu0 0.0
            %986 = vmatpush1.msra.mxu0 0.0
            %987 = vmatprep.subr.mxu0 0.0
            %988 = vmatpush1.msra.mxu0 0.0
            %989 = vmatprep.subr.mxu0 0.0
            %990 = vmatpush1.msra.mxu0 0.0
            %991 = vmatprep.subr.mxu0 0.0
            %992 = vmatpush1.msra.mxu0 0.0
            %993 = vmatprep.subr.mxu0 0.0
            %994 = vmatpush1.msra.mxu0 0.0
            %995 = vmatprep.subr.mxu0 0.0
            %996 = vmatpush1.msra.mxu0 0.0
            %997 = vmatprep.subr.mxu0 0.0
            %998 = vmatpush1.msra.mxu0 0.0
            %999 = vmatprep.subr.mxu0 0.0
            %1000 = vmatpush1.msra.mxu0 0.0
            %1001 = vmatprep.subr.mxu0 0.0
            %1002 = vmatpush1.msra.mxu0 0.0
            %1003 = vmatprep.subr.mxu0 0.0
            %1004 = vmatpush1.msra.mxu0 0.0
            %1005 = vmatprep.subr.mxu0 0.0
            %1006 = vmatpush1.msra.mxu0 0.0
            %1007 = vmatprep.mubr.f32.mxu0 0.0
            %1008 = vmatmul.mubr.f32.gmra.mrb[0].mxu0 %v929
            %v1009 = vpop.f32.mrb[0].mxu0
            %v1010 = vadd.f32 0.0, %v1009
            %v1011 = vpop.f32.mrb[0].mxu0
            %1012 = vmatprep.mubr.f32.mxu0 0.0
            %1013 = vmatmul.mubr.f32.gmra.mrb[0].mxu0 %v932
            %v1014 = vpop.f32.mrb[0].mxu0
            %v1015 = vadd.f32 0.0, %v1014
            %v1016 = vpop.f32.mrb[0].mxu0
            %1017 = vmatprep.mubr.f32.mxu0 0.0
            %1018 = vmatmul.mubr.f32.gmra.mrb[0].mxu0 %v935
            %v1019 = vpop.f32.mrb[0].mxu0
            %v1020 = vadd.f32 0.0, %v1019
            %v1021 = vpop.f32.mrb[0].mxu0
            %1022 = vmatprep.mubr.f32.mxu0 0.0
            %1023 = vmatmul.mubr.f32.gmra.mrb[0].mxu0 %v938
            %v1024 = vpop.f32.mrb[0].mxu0
            %v1025 = vadd.f32 0.0, %v1024
            %v1026 = vpop.f32.mrb[0].mxu0
            %1027 = vdwg.mxu0
            %v1028 = vld [vmem:[#allocation2] sm:$0xff]
            %v1029 = vld [vmem:[#allocation2 + $0x8] sm:$0xff]
            %v1030 = vld [vmem:[#allocation2 + $0x10] sm:$0xff]
            %v1031 = vld [vmem:[#allocation2 + $0x18] sm:$0xff]
            %v1032 = vmul.f32 %v1028, %v1010
            %v1033 = vmul.f32 %v1029, %v1015
            %v1034 = vmul.f32 %v1030, %v1020
            %v1035 = vmul.f32 %v1031, %v1025
            %v1036 = vpack.c.bf16 %v1033, %v1032
            %v1037 = vpack.c.bf16 %v1035, %v1034
            %1038 = vst.msk [vmem:[#allocation3] sm:$0xff] %vm618, %v1036
            %1039 = vst.msk [vmem:[#allocation3 + $0x8] sm:$0xff] %vm618, %v1037
          $region100: #{tpu_custom_call.1} parent=95 // pred_fallthru
            _
        $region96: #{tpu_custom_call.1} parent=87 // pred_fallthru
          _
        %p1040 = scmp.eq.s32.totalorder %s37, 1
        // Predicated region
        $region101: #{tpu_custom_call.1} parent=87 // pred_check
          %p1041 = pneg %p1040
        $region102: #{tpu_custom_call.1} parent=87 // pred_check_branch
          %1043 = sbr.rel (%p1041) target = $region104
        $region103: #{tpu_custom_call.1} parent=87 // pred_region
          %v1044 = vunpack.c.l.bf16 %v580
          %v1045 = vld [vmem:[%s1] sm:$0xf]
          %v1046 = vld [vmem:[%s1 + $0x4] sm:$0xf]
          %v1047 = vld [vmem:[%s1 + $0x8] sm:$0xf]
          %v1048 = vld [vmem:[%s1 + $0xc] sm:$0xf]
          %v1049 = vld [vmem:[%s2] sm:$0x1]
          %v1051 = vlaneseq
          %v1052 = vshrl.u32 %v1051, 7
          %v1053 = vsub.s32 0, %v1052
          %v1054 = vrot.slane %v1049, %v1053
          %v1060 = vunpack.c.l.b16 %v1045
          %v1061 = vunpack.c.l.b16 %v1046
          %v1062 = vunpack.c.l.b16 %v1047
          %v1063 = vunpack.c.l.b16 %v1048
          %v1064 = vpack.c.b16 %v1061, %v1060
          %v1065 = vpack.c.b16 %v1063, %v1062
          %vm1068 = vcmask 261120
          %v1070 = vsel %vm1068, %v580, 0
          %1072 = vmatprep.subr.bf16.mxu0 0
          %1073 = vmatpush1.bf16.msra.mxu0 %v1064
          %1074 = vmatprep.subr.bf16.mxu0 0
          %1075 = vmatpush1.bf16.msra.mxu0 %v1065
          %1076 = vmatprep.subr.bf16.mxu0 0
          %1077 = vmatpush1.bf16.msra.mxu0 0
          %1078 = vmatprep.subr.bf16.mxu0 0
          %1079 = vmatpush1.bf16.msra.mxu0 0
          %1080 = vmatprep.subr.bf16.mxu0 0
          %1081 = vmatpush1.bf16.msra.mxu0 0
          %1082 = vmatprep.subr.bf16.mxu0 0
          %1083 = vmatpush1.bf16.msra.mxu0 0
          %1084 = vmatprep.subr.bf16.mxu0 0
          %1085 = vmatpush1.bf16.msra.mxu0 0
          %1086 = vmatprep.subr.bf16.mxu0 0
          %1087 = vmatpush1.bf16.msra.mxu0 0
          %1088 = vmatprep.subr.bf16.mxu0 0
          %1089 = vmatpush1.bf16.msra.mxu0 0
          %1090 = vmatprep.subr.bf16.mxu0 0
          %1091 = vmatpush1.bf16.msra.mxu0 0
          %1092 = vmatprep.subr.bf16.mxu0 0
          %1093 = vmatpush1.bf16.msra.mxu0 0
          %1094 = vmatprep.subr.bf16.mxu0 0
          %1095 = vmatpush1.bf16.msra.mxu0 0
          %1096 = vmatprep.subr.bf16.mxu0 0
          %1097 = vmatpush1.bf16.msra.mxu0 0
          %1098 = vmatprep.subr.bf16.mxu0 0
          %1099 = vmatpush1.bf16.msra.mxu0 0
          %1100 = vmatprep.subr.bf16.mxu0 0
          %1101 = vmatpush1.bf16.msra.mxu0 0
          %1102 = vmatprep.subr.bf16.mxu0 0
          %1103 = vmatpush1.bf16.msra.mxu0 0
          %1104 = vmatprep.mubr.bf16.mxu0 0
          %1105 = vmatmul.mubr.bf16.gmra.mrb[0].mxu0 %v1070
          %v1106 = vpop.f32.mrb[0].mxu0
          %v1107 = vadd.f32 %v1054, %v1106
          %v1108 = vpop.f32.mrb[0].mxu0
          %v1109 = vpop.f32.mrb[0].mxu0
          %v1110 = vpop.f32.mrb[0].mxu0
          %1111 = vdwg.mxu0
          %vm1112 = vcmp.gt.f32.partialorder %v1107, 0.0
          %v1113 = vmin.f32 %v1107, 0.0
          %v1114 = vmul.f32 %v1113, 1.442695
          %v1115 = vpow.pop %v1114
          %v1116 = vsub.f32 %v1115, 1.0
          %v1117 = vsel %vm1112, %v1107, %v1116
          %v1118 = vmul.f32 %v1117, %v1117
          %v1119 = vld [vmem:[%s15] sm:$0xff]
          %v1120 = vld [vmem:[%s15 + $0x8] sm:$0xff]
          %v1121 = vld [vmem:[%s15 + $0x10] sm:$0xff]
          %v1122 = vld [vmem:[%s15 + $0x18] sm:$0xff]
          %v1124 = vsel %vm1068, %v1118, 0
          %1126 = vmatprep.subr.mxu0 0.0
          %1127 = vmatpush1.msra.mxu0 %v1119
          %1128 = vmatprep.subr.mxu0 0.0
          %1129 = vmatpush1.msra.mxu0 %v1120
          %1130 = vmatprep.subr.mxu0 0.0
          %1131 = vmatpush1.msra.mxu0 %v1121
          %1132 = vmatprep.subr.mxu0 0.0
          %1133 = vmatpush1.msra.mxu0 %v1122
          %1134 = vmatprep.subr.mxu0 0.0
          %1135 = vmatpush1.msra.mxu0 0.0
          %1136 = vmatprep.subr.mxu0 0.0
          %1137 = vmatpush1.msra.mxu0 0.0
          %1138 = vmatprep.subr.mxu0 0.0
          %1139 = vmatpush1.msra.mxu0 0.0
          %1140 = vmatprep.subr.mxu0 0.0
          %1141 = vmatpush1.msra.mxu0 0.0
          %1142 = vmatprep.subr.mxu0 0.0
          %1143 = vmatpush1.msra.mxu0 0.0
          %1144 = vmatprep.subr.mxu0 0.0
          %1145 = vmatpush1.msra.mxu0 0.0
          %1146 = vmatprep.subr.mxu0 0.0
          %1147 = vmatpush1.msra.mxu0 0.0
          %1148 = vmatprep.subr.mxu0 0.0
          %1149 = vmatpush1.msra.mxu0 0.0
          %1150 = vmatprep.subr.mxu0 0.0
          %1151 = vmatpush1.msra.mxu0 0.0
          %1152 = vmatprep.subr.mxu0 0.0
          %1153 = vmatpush1.msra.mxu0 0.0
          %1154 = vmatprep.subr.mxu0 0.0
          %1155 = vmatpush1.msra.mxu0 0.0
          %1156 = vmatprep.subr.mxu0 0.0
          %1157 = vmatpush1.msra.mxu0 0.0
          %1158 = vmatprep.subr.mxu0 0.0
          %1159 = vmatpush1.msra.mxu0 0.0
          %1160 = vmatprep.subr.mxu0 0.0
          %1161 = vmatpush1.msra.mxu0 0.0
          %1162 = vmatprep.subr.mxu0 0.0
          %1163 = vmatpush1.msra.mxu0 0.0
          %1164 = vmatprep.subr.mxu0 0.0
          %1165 = vmatpush1.msra.mxu0 0.0
          %1166 = vmatprep.subr.mxu0 0.0
          %1167 = vmatpush1.msra.mxu0 0.0
          %1168 = vmatprep.subr.mxu0 0.0
          %1169 = vmatpush1.msra.mxu0 0.0
          %1170 = vmatprep.subr.mxu0 0.0
          %1171 = vmatpush1.msra.mxu0 0.0
          %1172 = vmatprep.subr.mxu0 0.0
          %1173 = vmatpush1.msra.mxu0 0.0
          %1174 = vmatprep.subr.mxu0 0.0
          %1175 = vmatpush1.msra.mxu0 0.0
          %1176 = vmatprep.subr.mxu0 0.0
          %1177 = vmatpush1.msra.mxu0 0.0
          %1178 = vmatprep.subr.mxu0 0.0
          %1179 = vmatpush1.msra.mxu0 0.0
          %1180 = vmatprep.subr.mxu0 0.0
          %1181 = vmatpush1.msra.mxu0 0.0
          %1182 = vmatprep.subr.mxu0 0.0
          %1183 = vmatpush1.msra.mxu0 0.0
          %1184 = vmatprep.subr.mxu0 0.0
          %1185 = vmatpush1.msra.mxu0 0.0
          %1186 = vmatprep.subr.mxu0 0.0
          %1187 = vmatpush1.msra.mxu0 0.0
          %1188 = vmatprep.subr.mxu0 0.0
          %1189 = vmatpush1.msra.mxu0 0.0
          %1190 = vmatprep.mubr.f32.mxu0 0.0
          %1191 = vmatmul.mubr.f32.gmra.mrb[0].mxu0 %v1124
          %v1192 = vpop.f32.mrb[0].mxu0
          %v1193 = vadd.f32 1e-12, %v1192
          %v1194 = vpop.f32.mrb[0].mxu0
          %1195 = vdwg.mxu0
          %v1196 = vrsqrt.pop %v1193
          %v1197 = vld [vmem:[%s16] sm:$0x3]
          %vm1198 = vcmask 15360
          %v1200 = vsel %vm1198, %v1196, 0
          %vm1202 = vcmask 1041408
          %v1204 = vsel %vm1202, %v1197, 0
          %1206 = vmatprep.subr.mxu0 0.0
          %1207 = vmatpush1.msra.mxu0 %v1204
          %1208 = vmatprep.subr.mxu0 0.0
          %1209 = vmatpush1.msra.mxu0 0.0
          %1210 = vmatprep.subr.mxu0 0.0
          %1211 = vmatpush1.msra.mxu0 0.0
          %1212 = vmatprep.subr.mxu0 0.0
          %1213 = vmatpush1.msra.mxu0 0.0
          %1214 = vmatprep.subr.mxu0 0.0
          %1215 = vmatpush1.msra.mxu0 0.0
          %1216 = vmatprep.subr.mxu0 0.0
          %1217 = vmatpush1.msra.mxu0 0.0
          %1218 = vmatprep.subr.mxu0 0.0
          %1219 = vmatpush1.msra.mxu0 0.0
          %1220 = vmatprep.subr.mxu0 0.0
          %1221 = vmatpush1.msra.mxu0 0.0
          %1222 = vmatprep.subr.mxu0 0.0
          %1223 = vmatpush1.msra.mxu0 0.0
          %1224 = vmatprep.subr.mxu0 0.0
          %1225 = vmatpush1.msra.mxu0 0.0
          %1226 = vmatprep.subr.mxu0 0.0
          %1227 = vmatpush1.msra.mxu0 0.0
          %1228 = vmatprep.subr.mxu0 0.0
          %1229 = vmatpush1.msra.mxu0 0.0
          %1230 = vmatprep.subr.mxu0 0.0
          %1231 = vmatpush1.msra.mxu0 0.0
          %1232 = vmatprep.subr.mxu0 0.0
          %1233 = vmatpush1.msra.mxu0 0.0
          %1234 = vmatprep.subr.mxu0 0.0
          %1235 = vmatpush1.msra.mxu0 0.0
          %1236 = vmatprep.subr.mxu0 0.0
          %1237 = vmatpush1.msra.mxu0 0.0
          %1238 = vmatprep.subr.mxu0 0.0
          %1239 = vmatpush1.msra.mxu0 0.0
          %1240 = vmatprep.subr.mxu0 0.0
          %1241 = vmatpush1.msra.mxu0 0.0
          %1242 = vmatprep.subr.mxu0 0.0
          %1243 = vmatpush1.msra.mxu0 0.0
          %1244 = vmatprep.subr.mxu0 0.0
          %1245 = vmatpush1.msra.mxu0 0.0
          %1246 = vmatprep.subr.mxu0 0.0
          %1247 = vmatpush1.msra.mxu0 0.0
          %1248 = vmatprep.subr.mxu0 0.0
          %1249 = vmatpush1.msra.mxu0 0.0
          %1250 = vmatprep.subr.mxu0 0.0
          %1251 = vmatpush1.msra.mxu0 0.0
          %1252 = vmatprep.subr.mxu0 0.0
          %1253 = vmatpush1.msra.mxu0 0.0
          %1254 = vmatprep.subr.mxu0 0.0
          %1255 = vmatpush1.msra.mxu0 0.0
          %1256 = vmatprep.subr.mxu0 0.0
          %1257 = vmatpush1.msra.mxu0 0.0
          %1258 = vmatprep.subr.mxu0 0.0
          %1259 = vmatpush1.msra.mxu0 0.0
          %1260 = vmatprep.subr.mxu0 0.0
          %1261 = vmatpush1.msra.mxu0 0.0
          %1262 = vmatprep.subr.mxu0 0.0
          %1263 = vmatpush1.msra.mxu0 0.0
          %1264 = vmatprep.subr.mxu0 0.0
          %1265 = vmatpush1.msra.mxu0 0.0
          %1266 = vmatprep.subr.mxu0 0.0
          %1267 = vmatpush1.msra.mxu0 0.0
          %1268 = vmatprep.subr.mxu0 0.0
          %1269 = vmatpush1.msra.mxu0 0.0
          %1270 = vmatprep.mubr.f32.mxu0 0.0
          %1271 = vmatmul.mubr.f32.gmra.mrb[0].mxu0 %v1200
          %v1272 = vpop.f32.mrb[0].mxu0
          %v1273 = vadd.f32 0.0, %v1272
          %v1274 = vpop.f32.mrb[0].mxu0
          %1275 = vdwg.mxu0
          %v1276 = vmul.f32 %v1273, 0.25
          %v1277 = vmul.f32 %v1117, %v1276
          %v1278 = vpack.c.bf16 %v1277, %v1277
          %v1279 = vld [vmem:[#allocation3] sm:$0xff]
          %v1280 = vld [vmem:[#allocation3 + $0x8] sm:$0xff]
          %v1282 = vsel %vm1068, %v1278, 0
          %1284 = vmatprep.subr.bf16.mxu0 0
          %1285 = vmatpush1.bf16.msra.mxu0 %v1279
          %1286 = vmatprep.subr.bf16.mxu0 0
          %1287 = vmatpush1.bf16.msra.mxu0 %v1280
          %1288 = vmatprep.subr.bf16.mxu0 0
          %1289 = vmatpush1.bf16.msra.mxu0 0
          %1290 = vmatprep.subr.bf16.mxu0 0
          %1291 = vmatpush1.bf16.msra.mxu0 0
          %1292 = vmatprep.subr.bf16.mxu0 0
          %1293 = vmatpush1.bf16.msra.mxu0 0
          %1294 = vmatprep.subr.bf16.mxu0 0
          %1295 = vmatpush1.bf16.msra.mxu0 0
          %1296 = vmatprep.subr.bf16.mxu0 0
          %1297 = vmatpush1.bf16.msra.mxu0 0
          %1298 = vmatprep.subr.bf16.mxu0 0
          %1299 = vmatpush1.bf16.msra.mxu0 0
          %1300 = vmatprep.subr.bf16.mxu0 0
          %1301 = vmatpush1.bf16.msra.mxu0 0
          %1302 = vmatprep.subr.bf16.mxu0 0
          %1303 = vmatpush1.bf16.msra.mxu0 0
          %1304 = vmatprep.subr.bf16.mxu0 0
          %1305 = vmatpush1.bf16.msra.mxu0 0
          %1306 = vmatprep.subr.bf16.mxu0 0
          %1307 = vmatpush1.bf16.msra.mxu0 0
          %1308 = vmatprep.subr.bf16.mxu0 0
          %1309 = vmatpush1.bf16.msra.mxu0 0
          %1310 = vmatprep.subr.bf16.mxu0 0
          %1311 = vmatpush1.bf16.msra.mxu0 0
          %1312 = vmatprep.subr.bf16.mxu0 0
          %1313 = vmatpush1.bf16.msra.mxu0 0
          %1314 = vmatprep.subr.bf16.mxu0 0
          %1315 = vmatpush1.bf16.msra.mxu0 0
          %1316 = vmatprep.mubr.bf16.mxu0 0
          %1317 = vmatmul.mubr.bf16.gmra.mrb[0].mxu0 %v1282
          %v1318 = vpop.f32.mrb[0].mxu0
          %v1319 = vadd.f32 0.0, %v1318
          %v1320 = vpop.f32.mrb[0].mxu0
          %v1321 = vpop.f32.mrb[0].mxu0
          %v1322 = vpop.f32.mrb[0].mxu0
          %1323 = vdwg.mxu0
          %v1324 = vpack.c.bf16 %v1319, %v1319
          %v1325 = vld [vmem:[%s5] sm:$0xf]
          %v1326 = vld [vmem:[%s5 + $0x4] sm:$0xf]
          %v1327 = vld [vmem:[%s5 + $0x8] sm:$0xf]
          %v1328 = vld [vmem:[%s5 + $0xc] sm:$0xf]
          %v1329 = vld [vmem:[%s6] sm:$0x1]
          %v1331 = vlaneseq
          %v1332 = vshrl.u32 %v1331, 7
          %v1333 = vsub.s32 0, %v1332
          %v1334 = vrot.slane %v1329, %v1333
          %v1340 = vunpack.c.l.b16 %v1325
          %v1341 = vunpack.c.l.b16 %v1326
          %v1342 = vunpack.c.l.b16 %v1327
          %v1343 = vunpack.c.l.b16 %v1328
          %v1344 = vpack.c.b16 %v1341, %v1340
          %v1345 = vpack.c.b16 %v1343, %v1342
          %v1349 = vsel %vm1068, %v1324, 0
          %1351 = vmatprep.subr.bf16.mxu0 0
          %1352 = vmatpush1.bf16.msra.mxu0 %v1344
          %1353 = vmatprep.subr.bf16.mxu0 0
          %1354 = vmatpush1.bf16.msra.mxu0 %v1345
          %1355 = vmatprep.subr.bf16.mxu0 0
          %1356 = vmatpush1.bf16.msra.mxu0 0
          %1357 = vmatprep.subr.bf16.mxu0 0
          %1358 = vmatpush1.bf16.msra.mxu0 0
          %1359 = vmatprep.subr.bf16.mxu0 0
          %1360 = vmatpush1.bf16.msra.mxu0 0
          %1361 = vmatprep.subr.bf16.mxu0 0
          %1362 = vmatpush1.bf16.msra.mxu0 0
          %1363 = vmatprep.subr.bf16.mxu0 0
          %1364 = vmatpush1.bf16.msra.mxu0 0
          %1365 = vmatprep.subr.bf16.mxu0 0
          %1366 = vmatpush1.bf16.msra.mxu0 0
          %1367 = vmatprep.subr.bf16.mxu0 0
          %1368 = vmatpush1.bf16.msra.mxu0 0
          %1369 = vmatprep.subr.bf16.mxu0 0
          %1370 = vmatpush1.bf16.msra.mxu0 0
          %1371 = vmatprep.subr.bf16.mxu0 0
          %1372 = vmatpush1.bf16.msra.mxu0 0
          %1373 = vmatprep.subr.bf16.mxu0 0
          %1374 = vmatpush1.bf16.msra.mxu0 0
          %1375 = vmatprep.subr.bf16.mxu0 0
          %1376 = vmatpush1.bf16.msra.mxu0 0
          %1377 = vmatprep.subr.bf16.mxu0 0
          %1378 = vmatpush1.bf16.msra.mxu0 0
          %1379 = vmatprep.subr.bf16.mxu0 0
          %1380 = vmatpush1.bf16.msra.mxu0 0
          %1381 = vmatprep.subr.bf16.mxu0 0
          %1382 = vmatpush1.bf16.msra.mxu0 0
          %1383 = vmatprep.mubr.bf16.mxu0 0
          %1384 = vmatmul.mubr.bf16.gmra.mrb[0].mxu0 %v1349
          %v1385 = vpop.f32.mrb[0].mxu0
          %v1386 = vadd.f32 %v1334, %v1385
          %v1387 = vpop.f32.mrb[0].mxu0
          %v1388 = vpop.f32.mrb[0].mxu0
          %v1389 = vpop.f32.mrb[0].mxu0
          %1390 = vdwg.mxu0
          %v1391 = vadd.f32 %v1386, %v1044
          %v1392 = vld [vmem:[%s7] sm:$0x1]
          %v1393 = vld [vmem:[%s8] sm:$0x1]
          %v1394 = vsel %vm1068, %v1391, 0.0
          %1395 = vadd.xlane.f32.xlu0 %v1394
          %v1396 = vpop.xlane.xlu0 %1395
          %v1397 = vrcp.pop 32.0
          %v1398 = vmul.f32 %v1396, %v1397
          %v1399 = vsub.f32 %v1391, %v1398
          %v1400 = vmul.f32 %v1399, %v1399
          %v1401 = vsel %vm1068, %v1400, 0.0
          %1402 = vadd.xlane.f32.xlu0 %v1401
          %v1403 = vpop.xlane.xlu0 %1402
          %v1404 = vmul.f32 %v1403, %v1397
          %v1405 = vadd.f32 %v1404, 1e-12
          %v1406 = vrsqrt.pop %v1405
          %v1407 = vmul.f32 %v1399, %v1406
          %v1409 = vlaneseq
          %v1410 = vshrl.u32 %v1409, 7
          %v1411 = vsub.s32 0, %v1410
          %v1412 = vrot.slane %v1392, %v1411
          %v1414 = vmul.f32 %v1407, %v1412
          %v1416 = vlaneseq
          %v1417 = vshrl.u32 %v1416, 7
          %v1418 = vsub.s32 0, %v1417
          %v1419 = vrot.slane %v1393, %v1418
          %v1421 = vadd.f32 %v1414, %v1419
          %v1422 = vpack.c.bf16 %v1421, %v1421
          %v1423 = vld [vmem:[%s9] sm:$0xf]
          %v1424 = vld [vmem:[%s9 + $0x4] sm:$0xf]
          %v1425 = vld [vmem:[%s9 + $0x8] sm:$0xf]
          %v1426 = vld [vmem:[%s9 + $0xc] sm:$0xf]
          %v1427 = vld [vmem:[%s10] sm:$0x1]
          %v1429 = vlaneseq
          %v1430 = vshrl.u32 %v1429, 7
          %v1431 = vsub.s32 0, %v1430
          %v1432 = vrot.slane %v1427, %v1431
          %v1438 = vunpack.c.l.b16 %v1423
          %v1439 = vunpack.c.l.b16 %v1424
          %v1440 = vunpack.c.l.b16 %v1425
          %v1441 = vunpack.c.l.b16 %v1426
          %v1442 = vpack.c.b16 %v1439, %v1438
          %v1443 = vpack.c.b16 %v1441, %v1440
          %v1447 = vsel %vm1068, %v1422, 0
          %1449 = vmatprep.subr.bf16.mxu0 0
          %1450 = vmatpush1.bf16.msra.mxu0 %v1442
          %1451 = vmatprep.subr.bf16.mxu0 0
          %1452 = vmatpush1.bf16.msra.mxu0 %v1443
          %1453 = vmatprep.subr.bf16.mxu0 0
          %1454 = vmatpush1.bf16.msra.mxu0 0
          %1455 = vmatprep.subr.bf16.mxu0 0
          %1456 = vmatpush1.bf16.msra.mxu0 0
          %1457 = vmatprep.subr.bf16.mxu0 0
          %1458 = vmatpush1.bf16.msra.mxu0 0
          %1459 = vmatprep.subr.bf16.mxu0 0
          %1460 = vmatpush1.bf16.msra.mxu0 0
          %1461 = vmatprep.subr.bf16.mxu0 0
          %1462 = vmatpush1.bf16.msra.mxu0 0
          %1463 = vmatprep.subr.bf16.mxu0 0
          %1464 = vmatpush1.bf16.msra.mxu0 0
          %1465 = vmatprep.subr.bf16.mxu0 0
          %1466 = vmatpush1.bf16.msra.mxu0 0
          %1467 = vmatprep.subr.bf16.mxu0 0
          %1468 = vmatpush1.bf16.msra.mxu0 0
          %1469 = vmatprep.subr.bf16.mxu0 0
          %1470 = vmatpush1.bf16.msra.mxu0 0
          %1471 = vmatprep.subr.bf16.mxu0 0
          %1472 = vmatpush1.bf16.msra.mxu0 0
          %1473 = vmatprep.subr.bf16.mxu0 0
          %1474 = vmatpush1.bf16.msra.mxu0 0
          %1475 = vmatprep.subr.bf16.mxu0 0
          %1476 = vmatpush1.bf16.msra.mxu0 0
          %1477 = vmatprep.subr.bf16.mxu0 0
          %1478 = vmatpush1.bf16.msra.mxu0 0
          %1479 = vmatprep.subr.bf16.mxu0 0
          %1480 = vmatpush1.bf16.msra.mxu0 0
          %1481 = vmatprep.mubr.bf16.mxu0 0
          %1482 = vmatmul.mubr.bf16.gmra.mrb[0].mxu0 %v1447
          %v1483 = vpop.f32.mrb[0].mxu0
          %v1484 = vadd.f32 %v1432, %v1483
          %v1485 = vpop.f32.mrb[0].mxu0
          %v1486 = vpop.f32.mrb[0].mxu0
          %v1487 = vpop.f32.mrb[0].mxu0
          %1488 = vdwg.mxu0
          %v1489 = vmul.f32 %v1484, 0.5
          %v1490 = vmul.f32 %v1484, 0.70710677
          %v1491 = verf.f32.pop %v1490
          %v1492 = vadd.f32 %v1491, 1.0
          %v1493 = vmul.f32 %v1489, %v1492
          %v1494 = vpack.c.bf16 %v1493, %v1493
          %v1495 = vld [vmem:[%s11] sm:$0xf]
          %v1496 = vld [vmem:[%s11 + $0x4] sm:$0xf]
          %v1497 = vld [vmem:[%s11 + $0x8] sm:$0xf]
          %v1498 = vld [vmem:[%s11 + $0xc] sm:$0xf]
          %v1499 = vld [vmem:[%s11 + $0x10] sm:$0xf]
          %v1500 = vld [vmem:[%s11 + $0x14] sm:$0xf]
          %v1501 = vld [vmem:[%s11 + $0x18] sm:$0xf]
          %v1502 = vld [vmem:[%s11 + $0x1c] sm:$0xf]
          %v1503 = vld [vmem:[%s12] sm:$0x1]
          %v1505 = vlaneseq
          %v1506 = vshrl.u32 %v1505, 7
          %v1507 = vsub.s32 0, %v1506
          %v1508 = vrot.slane %v1503, %v1507
          %v1518 = vunpack.c.l.b16 %v1495
          %v1519 = vunpack.c.l.b16 %v1496
          %v1520 = vunpack.c.l.b16 %v1497
          %v1521 = vunpack.c.l.b16 %v1498
          %v1522 = vunpack.c.l.b16 %v1499
          %v1523 = vunpack.c.l.b16 %v1500
          %v1524 = vunpack.c.l.b16 %v1501
          %v1525 = vunpack.c.l.b16 %v1502
          %v1526 = vpack.c.b16 %v1519, %v1518
          %v1527 = vpack.c.b16 %v1521, %v1520
          %v1528 = vpack.c.b16 %v1523, %v1522
          %v1529 = vpack.c.b16 %v1525, %v1524
          %vm1534 = vcmask 523264
          %v1536 = vsel %vm1534, %v1494, 0
          %1538 = vmatprep.subr.bf16.mxu0 0
          %1539 = vmatpush1.bf16.msra.mxu0 %v1526
          %1540 = vmatprep.subr.bf16.mxu0 0
          %1541 = vmatpush1.bf16.msra.mxu0 %v1527
          %1542 = vmatprep.subr.bf16.mxu0 0
          %1543 = vmatpush1.bf16.msra.mxu0 %v1528
          %1544 = vmatprep.subr.bf16.mxu0 0
          %1545 = vmatpush1.bf16.msra.mxu0 %v1529
          %1546 = vmatprep.subr.bf16.mxu0 0
          %1547 = vmatpush1.bf16.msra.mxu0 0
          %1548 = vmatprep.subr.bf16.mxu0 0
          %1549 = vmatpush1.bf16.msra.mxu0 0
          %1550 = vmatprep.subr.bf16.mxu0 0
          %1551 = vmatpush1.bf16.msra.mxu0 0
          %1552 = vmatprep.subr.bf16.mxu0 0
          %1553 = vmatpush1.bf16.msra.mxu0 0
          %1554 = vmatprep.subr.bf16.mxu0 0
          %1555 = vmatpush1.bf16.msra.mxu0 0
          %1556 = vmatprep.subr.bf16.mxu0 0
          %1557 = vmatpush1.bf16.msra.mxu0 0
          %1558 = vmatprep.subr.bf16.mxu0 0
          %1559 = vmatpush1.bf16.msra.mxu0 0
          %1560 = vmatprep.subr.bf16.mxu0 0
          %1561 = vmatpush1.bf16.msra.mxu0 0
          %1562 = vmatprep.subr.bf16.mxu0 0
          %1563 = vmatpush1.bf16.msra.mxu0 0
          %1564 = vmatprep.subr.bf16.mxu0 0
          %1565 = vmatpush1.bf16.msra.mxu0 0
          %1566 = vmatprep.subr.bf16.mxu0 0
          %1567 = vmatpush1.bf16.msra.mxu0 0
          %1568 = vmatprep.subr.bf16.mxu0 0
          %1569 = vmatpush1.bf16.msra.mxu0 0
          %1570 = vmatprep.mubr.bf16.mxu0 0
          %1571 = vmatmul.mubr.bf16.gmra.mrb[0].mxu0 %v1536
          %v1572 = vpop.f32.mrb[0].mxu0
          %v1573 = vadd.f32 %v1508, %v1572
          %v1574 = vpop.f32.mrb[0].mxu0
          %v1575 = vpop.f32.mrb[0].mxu0
          %v1576 = vpop.f32.mrb[0].mxu0
          %1577 = vdwg.mxu0
          %v1578 = vadd.f32 %v1573, %v1421
          %v1579 = vld [vmem:[%s13] sm:$0x1]
          %v1580 = vld [vmem:[%s14] sm:$0x1]
          %v1581 = vsel %vm1068, %v1578, 0.0
          %1582 = vadd.xlane.f32.xlu0 %v1581
          %v1583 = vpop.xlane.xlu0 %1582
          %v1584 = vmul.f32 %v1583, %v1397
          %v1585 = vsub.f32 %v1578, %v1584
          %v1586 = vmul.f32 %v1585, %v1585
          %v1587 = vsel %vm1068, %v1586, 0.0
          %1588 = vadd.xlane.f32.xlu0 %v1587
          %v1589 = vpop.xlane.xlu0 %1588
          %v1590 = vmul.f32 %v1589, %v1397
          %v1591 = vadd.f32 %v1590, 1e-12
          %v1592 = vrsqrt.pop %v1591
          %v1593 = vmul.f32 %v1585, %v1592
          %v1595 = vlaneseq
          %v1596 = vshrl.u32 %v1595, 7
          %v1597 = vsub.s32 0, %v1596
          %v1598 = vrot.slane %v1579, %v1597
          %v1600 = vmul.f32 %v1593, %v1598
          %v1602 = vlaneseq
          %v1603 = vshrl.u32 %v1602, 7
          %v1604 = vsub.s32 0, %v1603
          %v1605 = vrot.slane %v1580, %v1604
          %v1607 = vadd.f32 %v1600, %v1605
          %1608 = vst.msk [vmem:[%s570] sm:$0xff] %vm1068, %v1607
        $region104: #{tpu_custom_call.1} parent=87 // pred_fallthru
          _
        %s1609 = sand.u32 %s426, 1
        %s1610 = scalar_lea.sflag [#allocation5], %s1609
        %s1611 = sand.u32 %s426, 1
        %s1612 = smul.addr %s1611, 8
        %s1613 = scalar_lea.vmem [#allocation4], %s1612
        // Predicated region
        $region105: #{tpu_custom_call.1} parent=87 // pred_check
          %p1614 = pneg %p436
        $region106: #{tpu_custom_call.1} parent=87 // pred_check_branch
          %1616 = sbr.rel (%p1614) target = $region108
        $region107: #{tpu_custom_call.1} parent=87 // pred_region
          %s1617 = smul.u32 %s38, %s37
          %s1619 = ssub.s32 128, 128
          %1620 = vsyncadd %s1610, %s1619
          %s1621 = sadd.s32 %s1617, %s36
          %s1622 = smul.addr %s1621, 128
          %s1623 = scalar_lea.hbm %s17, %s1622
          %s1625 = sshll.u32 %s1613, 4
          %s1626 = int_to_ptr.vmem [resolvable:$true] %s1625
          %1628 = dma.vmem_to_hbm [thread:$0]  %s1626, 128, %s1623, %s1610
        $region108: #{tpu_custom_call.1} parent=87 // pred_fallthru
          _
      $region88: #{tpu_custom_call.1} parent=5 // pred_fallthru
        _
      %p1629 = scmp.le.s32.totalorder 2, %s26
      // Predicated region
      $region109: #{tpu_custom_call.1} parent=5 // pred_check
        %p1630 = pneg %p1629
      $region110: #{tpu_custom_call.1} parent=5 // pred_check_branch
        %1632 = sbr.rel (%p1630) target = $region112
      $region111: #{tpu_custom_call.1} parent=5 // pred_region
        %s1633 = ssub.s32 %s26, 2
        // Predicated region
        $region113: #{tpu_custom_call.1} parent=111 // pred_check
          %p1634 = pneg %p442
        $region114: #{tpu_custom_call.1} parent=111 // pred_check_branch
          %1636 = sbr.rel (%p1634) target = $region116
        $region115: #{tpu_custom_call.1} parent=111 // pred_region
          %s1637 = sand.u32 %s427, 1
          %s1638 = scalar_lea.sflag [#allocation5], %s1637
          %s1639 = sand.u32 %s427, 1
          %s1640 = smul.addr %s1639, 8
          %s1641 = scalar_lea.vmem [#allocation4], %s1640
          %1642 = dma.done %s1638, 128
        $region116: #{tpu_custom_call.1} parent=111 // pred_fallthru
          _
      $region112: #{tpu_custom_call.1} parent=5 // pred_fallthru
        _
    $region6: #{tpu_custom_call.1} parent=1 // loop_footer
      %s30 = sadd.s32 1, %s26
    $region7: #{tpu_custom_call.1} parent=1 // loop_footer_branch
      %25 = sbr.rel target = $region3
    $region8: #{tpu_custom_call.1} parent=1 // loop_exit
      _
    %1643 = vsyncpa [#allocation5], 1
    %s1644 = scalar_lea.sflag [#allocation5], 1
    %1645 = vsyncpa %s1644, 1

// kernel: tpu_custom_call.1
$region0: #{tpu_custom_call.1}
  #allocation0 [shape = 'u32[]', space=smem, size = 0x4, offset = 0x4, fixed_abs, tag = 'smem constant byte address 0x4 - core index']
  #allocation1 [shape = 'u32[144,128]{1,0:T(1,128)}', space=vmem, size = 0x12000, scoped, tag = 'internal scratch']
  #allocation2 [shape = 'f32[32,32]{1,0:T(8,128)}', space=vmem, size = 0x4000, scoped, tag = 'scratch operand']
  #allocation3 [shape = 'bf16[32,32]{1,0:T(16,128)(2,1)}', space=vmem, size = 0x2000, scoped, tag = 'scratch operand']
  %s0 = inlined_call_operand.vmem [shape: bf16[2,8,32], index: 0, kind: input, shape index: {}]
  %s1 = inlined_call_operand.vmem [shape: bf16[32,32], index: 1, kind: input, shape index: {}]
  %s2 = inlined_call_operand.vmem [shape: f32[1,32], index: 2, kind: input, shape index: {}]
  %s3 = inlined_call_operand.vmem [shape: bf16[32,64], index: 3, kind: input, shape index: {}]
  %s4 = inlined_call_operand.vmem [shape: f32[1,64], index: 4, kind: input, shape index: {}]
  %s5 = inlined_call_operand.vmem [shape: bf16[32,32], index: 5, kind: input, shape index: {}]
  %s6 = inlined_call_operand.vmem [shape: f32[1,32], index: 6, kind: input, shape index: {}]
  %s7 = inlined_call_operand.vmem [shape: f32[1,32], index: 7, kind: input, shape index: {}]
  %s8 = inlined_call_operand.vmem [shape: f32[1,32], index: 8, kind: input, shape index: {}]
  %s9 = inlined_call_operand.vmem [shape: bf16[32,64], index: 9, kind: input, shape index: {}]
  %s10 = inlined_call_operand.vmem [shape: f32[1,64], index: 10, kind: input, shape index: {}]
  %s11 = inlined_call_operand.vmem [shape: bf16[64,32], index: 11, kind: input, shape index: {}]
  %s12 = inlined_call_operand.vmem [shape: f32[1,32], index: 12, kind: input, shape index: {}]
  %s13 = inlined_call_operand.vmem [shape: f32[1,32], index: 13, kind: input, shape index: {}]
  %s14 = inlined_call_operand.vmem [shape: f32[1,32], index: 14, kind: input, shape index: {}]
  %s15 = inlined_call_operand.vmem [shape: f32[32,2], index: 15, kind: input, shape index: {}]
  %s16 = inlined_call_operand.vmem [shape: f32[2,32], index: 16, kind: input, shape index: {}]
  %s17 = inlined_call_operand.hbm [shape: f32[2,8,32], index: 17, kind: output, shape index: {}]
  %s18 = sld [smem:[#allocation0]]
  $region117: #{tpu_custom_call.1} parent=0
    _
  %s20 = ssub.s32 1, %s18
  %s21 = scalar_select 0, %s20, %s18
  $region1: #{tpu_custom_call.1} parent=0
    #allocation4 [shape = 'u8[8192]{0}', space=vmem, size = 0x2000, scoped, tag = 'output window, operand 0']
    #allocation5 [shape = 's32[2]{0}', space=sflag, size = 0x8, scoped, tag = 'scoped memory for tpu_custom_call.1']
    %22 = vsyncpa [#allocation5], 0
    %s23 = scalar_lea.sflag [#allocation5], 1
    %24 = vsyncpa %s23, 0
    loop: start=0, step=1, limit=6
    $region2: #{tpu_custom_call.1} parent=1 // loop_pre_header
      _
    $region3: #{tpu_custom_call.1} parent=1 // loop_header
      %s26 = sphi 0, %s30
      %p27 = scmp.ge.s32.totalorder %s26, 6
      %s33 = sphi 0, %s52
      %s34 = sphi 0, %s48
      %s35 = sphi 0, %s44
      %s36 = sphi 0, %s33
      %s37 = sphi 0, %s34
      %s38 = sphi 0, %s35
      %s39 = sphi 0, %s36
      %s40 = sphi 0, %s37
      %s41 = sphi 0, %s38
      %s57 = sphi 0, %s59
      %s60 = sphi 0, %s57
      %s61 = sphi 0, %s60
      %s77 = sphi 0, %s61
      %s81 = sphi 0, %s81
      %s83 = sphi 0, %s81
      %s84 = sphi 0, %s83
      %s98 = sphi 0, %s84
      %s102 = sphi 0, %s102
      %s104 = sphi 0, %s102
      %s105 = sphi 0, %s104
      %s119 = sphi 0, %s105
      %s123 = sphi 0, %s123
      %s125 = sphi 0, %s123
      %s126 = sphi 0, %s125
      %s140 = sphi 0, %s126
      %s144 = sphi 0, %s144
      %s146 = sphi 0, %s144
      %s147 = sphi 0, %s146
      %s161 = sphi 0, %s147
      %s165 = sphi 0, %s165
      %s167 = sphi 0, %s165
      %s168 = sphi 0, %s167
      %s182 = sphi 0, %s168
      %s186 = sphi 0, %s186
      %s188 = sphi 0, %s186
      %s189 = sphi 0, %s188
      %s203 = sphi 0, %s189
      %s207 = sphi 0, %s207
      %s209 = sphi 0, %s207
      %s210 = sphi 0, %s209
      %s224 = sphi 0, %s210
      %s228 = sphi 0, %s228
      %s230 = sphi 0, %s228
      %s231 = sphi 0, %s230
      %s245 = sphi 0, %s231
      %s249 = sphi 0, %s249
      %s251 = sphi 0, %s249
      %s252 = sphi 0, %s251
      %s266 = sphi 0, %s252
      %s270 = sphi 0, %s270
      %s272 = sphi 0, %s270
      %s273 = sphi 0, %s272
      %s287 = sphi 0, %s273
      %s291 = sphi 0, %s291
      %s293 = sphi 0, %s291
      %s294 = sphi 0, %s293
      %s308 = sphi 0, %s294
      %s312 = sphi 0, %s312
      %s314 = sphi 0, %s312
      %s315 = sphi 0, %s314
      %s329 = sphi 0, %s315
      %s333 = sphi 0, %s333
      %s335 = sphi 0, %s333
      %s336 = sphi 0, %s335
      %s350 = sphi 0, %s336
      %s354 = sphi 0, %s354
      %s356 = sphi 0, %s354
      %s357 = sphi 0, %s356
      %s371 = sphi 0, %s357
      %s375 = sphi 0, %s375
      %s377 = sphi 0, %s375
      %s378 = sphi 0, %s377
      %s392 = sphi 0, %s378
      %s396 = sphi 0, %s396
      %s398 = sphi 0, %s396
      %s399 = sphi 0, %s398
      %s413 = sphi 0, %s399
      %s423 = sphi 0, %s425
      %s426 = sphi 0, %s423
      %s427 = sphi 0, %s426
      %s443 = sphi 0, %s427
    $region4: #{tpu_custom_call.1} parent=1 // loop_header_branch
      %29 = sbr.rel (%p27) target = $region8
    $region5: #{tpu_custom_call.1} parent=1 // loop_body
      %s31 = ssub.s32 %s26, 1
      %s32 = ssub.s32 %s26, 2
      %s42 = sadd.s32 1, %s35
      %p43 = scmp.ge.s32.totalorder %s42, 1
      %s44 = scalar_select %p43, 0, %s42
      %s45 = sadd.s32 1, %s34
      %s46 = scalar_select %p43, %s45, %s34
      %p47 = scmp.ge.s32.totalorder %s46, 2
      %s48 = scalar_select %p47, 0, %s46
      %s49 = sadd.s32 1, %s33
      %s50 = scalar_select %p47, %s49, %s33
      %p51 = scmp.ge.s32.totalorder %s50, 2
      %s52 = scalar_select %p51, 0, %s50
      %s53 = ssub.s32 %s33, %s52
      %s54 = ssub.s32 %s35, %s44
      %s55 = sor.u32 %s53, %s54
      %p56 = scmp.eq.s32.totalorder %s55, 0
      %s58 = sadd.s32 %s57, 1
      %s59 = scalar_select %p56, %s57, %s58
      %p62 = pneg %p56
      %p63 = scmp.eq.s32.totalorder %s26, 3
      %p64 = por %p62, %p63
      %p65 = scmp.ne.s32.totalorder %s57, %s60
      %p66 = scmp.eq.s32.totalorder %s26, 0
      %p67 = por %p65, %p66
      %p68 = scmp.ne.s32.totalorder %s57, %s60
      %p69 = scmp.eq.s32.totalorder %s31, 3
      %p70 = por %p68, %p69
      %p71 = scmp.ne.s32.totalorder %s60, %s61
      %p72 = scmp.eq.s32.totalorder %s31, 0
      %p73 = por %p71, %p72
      %p74 = scmp.ne.s32.totalorder %s60, %s61
      %p75 = scmp.eq.s32.totalorder %s32, 3
      %p76 = por %p74, %p75
      %p78 = scmp.ne.s32.totalorder %s61, %s77
      %p79 = scmp.eq.s32.totalorder %s32, 0
      %p80 = por %p78, %p79
      %s82 = sadd.s32 %s81, 1
      %p85 = scmp.eq.s32.totalorder %s26, 3
      %p86 = scmp.ne.s32.totalorder %s81, %s83
      %p87 = scmp.eq.s32.totalorder %s26, 0
      %p88 = por %p86, %p87
      %p89 = scmp.ne.s32.totalorder %s81, %s83
      %p90 = scmp.eq.s32.totalorder %s31, 3
      %p91 = por %p89, %p90
      %p92 = scmp.ne.s32.totalorder %s83, %s84
      %p93 = scmp.eq.s32.totalorder %s31, 0
      %p94 = por %p92, %p93
      %p95 = scmp.ne.s32.totalorder %s83, %s84
      %p96 = scmp.eq.s32.totalorder %s32, 3
      %p97 = por %p95, %p96
      %p99 = scmp.ne.s32.totalorder %s84, %s98
      %p100 = scmp.eq.s32.totalorder %s32, 0
      %p101 = por %p99, %p100
      %s103 = sadd.s32 %s102, 1
      %p106 = scmp.eq.s32.totalorder %s26, 3
      %p107 = scmp.ne.s32.totalorder %s102, %s104
      %p108 = scmp.eq.s32.totalorder %s26, 0
      %p109 = por %p107, %p108
      %p110 = scmp.ne.s32.totalorder %s102, %s104
      %p111 = scmp.eq.s32.totalorder %s31, 3
      %p112 = por %p110, %p111
      %p113 = scmp.ne.s32.totalorder %s104, %s105
      %p114 = scmp.eq.s32.totalorder %s31, 0
      %p115 = por %p113, %p114
      %p116 = scmp.ne.s32.totalorder %s104, %s105
      %p117 = scmp.eq.s32.totalorder %s32, 3
      %p118 = por %p116, %p117
      %p120 = scmp.ne.s32.totalorder %s105, %s119
      %p121 = scmp.eq.s32.totalorder %s32, 0
      %p122 = por %p120, %p121
      %s124 = sadd.s32 %s123, 1
      %p127 = scmp.eq.s32.totalorder %s26, 3
      %p128 = scmp.ne.s32.totalorder %s123, %s125
      %p129 = scmp.eq.s32.totalorder %s26, 0
      %p130 = por %p128, %p129
      %p131 = scmp.ne.s32.totalorder %s123, %s125
      %p132 = scmp.eq.s32.totalorder %s31, 3
      %p133 = por %p131, %p132
      %p134 = scmp.ne.s32.totalorder %s125, %s126
      %p135 = scmp.eq.s32.totalorder %s31, 0
      %p136 = por %p134, %p135
      %p137 = scmp.ne.s32.totalorder %s125, %s126
      %p138 = scmp.eq.s32.totalorder %s32, 3
      %p139 = por %p137, %p138
      %p141 = scmp.ne.s32.totalorder %s126, %s140
      %p142 = scmp.eq.s32.totalorder %s32, 0
      %p143 = por %p141, %p142
      %s145 = sadd.s32 %s144, 1
      %p148 = scmp.eq.s32.totalorder %s26, 3
      %p149 = scmp.ne.s32.totalorder %s144, %s146
      %p150 = scmp.eq.s32.totalorder %s26, 0
      %p151 = por %p149, %p150
      %p152 = scmp.ne.s32.totalorder %s144, %s146
      %p153 = scmp.eq.s32.totalorder %s31, 3
      %p154 = por %p152, %p153
      %p155 = scmp.ne.s32.totalorder %s146, %s147
      %p156 = scmp.eq.s32.totalorder %s31, 0
      %p157 = por %p155, %p156
      %p158 = scmp.ne.s32.totalorder %s146, %s147
      %p159 = scmp.eq.s32.totalorder %s32, 3
      %p160 = por %p158, %p159
      %p162 = scmp.ne.s32.totalorder %s147, %s161
      %p163 = scmp.eq.s32.totalorder %s32, 0
      %p164 = por %p162, %p163
      %s166 = sadd.s32 %s165, 1
      %p169 = scmp.eq.s32.totalorder %s26, 3
      %p170 = scmp.ne.s32.totalorder %s165, %s167
      %p171 = scmp.eq.s32.totalorder %s26, 0
      %p172 = por %p170, %p171
      %p173 = scmp.ne.s32.totalorder %s165, %s167
      %p174 = scmp.eq.s32.totalorder %s31, 3
      %p175 = por %p173, %p174
      %p176 = scmp.ne.s32.totalorder %s167, %s168
      %p177 = scmp.eq.s32.totalorder %s31, 0
      %p178 = por %p176, %p177
      %p179 = scmp.ne.s32.totalorder %s167, %s168
      %p180 = scmp.eq.s32.totalorder %s32, 3
      %p181 = por %p179, %p180
      %p183 = scmp.ne.s32.totalorder %s168, %s182
      %p184 = scmp.eq.s32.totalorder %s32, 0
      %p185 = por %p183, %p184
      %s187 = sadd.s32 %s186, 1
      %p190 = scmp.eq.s32.totalorder %s26, 3
      %p191 = scmp.ne.s32.totalorder %s186, %s188
      %p192 = scmp.eq.s32.totalorder %s26, 0
      %p193 = por %p191, %p192
      %p194 = scmp.ne.s32.totalorder %s186, %s188
      %p195 = scmp.eq.s32.totalorder %s31, 3
      %p196 = por %p194, %p195
      %p197 = scmp.ne.s32.totalorder %s188, %s189
      %p198 = scmp.eq.s32.totalorder %s31, 0
      %p199 = por %p197, %p198
      %p200 = scmp.ne.s32.totalorder %s188, %s189
      %p201 = scmp.eq.s32.totalorder %s32, 3
      %p202 = por %p200, %p201
      %p204 = scmp.ne.s32.totalorder %s189, %s203
      %p205 = scmp.eq.s32.totalorder %s32, 0
      %p206 = por %p204, %p205
      %s208 = sadd.s32 %s207, 1
      %p211 = scmp.eq.s32.totalorder %s26, 3
      %p212 = scmp.ne.s32.totalorder %s207, %s209
      %p213 = scmp.eq.s32.totalorder %s26, 0
      %p214 = por %p212, %p213
      %p215 = scmp.ne.s32.totalorder %s207, %s209
      %p216 = scmp.eq.s32.totalorder %s31, 3
      %p217 = por %p215, %p216
      %p218 = scmp.ne.s32.totalorder %s209, %s210
      %p219 = scmp.eq.s32.totalorder %s31, 0
      %p220 = por %p218, %p219
      %p221 = scmp.ne.s32.totalorder %s209, %s210
      %p222 = scmp.eq.s32.totalorder %s32, 3
      %p223 = por %p221, %p222
      %p225 = scmp.ne.s32.totalorder %s210, %s224
      %p226 = scmp.eq.s32.totalorder %s32, 0
      %p227 = por %p225, %p226
      %s229 = sadd.s32 %s228, 1
      %p232 = scmp.eq.s32.totalorder %s26, 3
      %p233 = scmp.ne.s32.totalorder %s228, %s230
      %p234 = scmp.eq.s32.totalorder %s26, 0
      %p235 = por %p233, %p234
      %p236 = scmp.ne.s32.totalorder %s228, %s230
      %p237 = scmp.eq.s32.totalorder %s31, 3
      %p238 = por %p236, %p237
      %p239 = scmp.ne.s32.totalorder %s230, %s231
      %p240 = scmp.eq.s32.totalorder %s31, 0
      %p241 = por %p239, %p240
      %p242 = scmp.ne.s32.totalorder %s230, %s231
      %p243 = scmp.eq.s32.totalorder %s32, 3
      %p244 = por %p242, %p243
      %p246 = scmp.ne.s32.totalorder %s231, %s245
      %p247 = scmp.eq.s32.totalorder %s32, 0
      %p248 = por %p246, %p247
      %s250 = sadd.s32 %s249, 1
      %p253 = scmp.eq.s32.totalorder %s26, 3
      %p254 = scmp.ne.s32.totalorder %s249, %s251
      %p255 = scmp.eq.s32.totalorder %s26, 0
      %p256 = por %p254, %p255
      %p257 = scmp.ne.s32.totalorder %s249, %s251
      %p258 = scmp.eq.s32.totalorder %s31, 3
      %p259 = por %p257, %p258
      %p260 = scmp.ne.s32.totalorder %s251, %s252
      %p261 = scmp.eq.s32.totalorder %s31, 0
      %p262 = por %p260, %p261
      %p263 = scmp.ne.s32.totalorder %s251, %s252
      %p264 = scmp.eq.s32.totalorder %s32, 3
      %p265 = por %p263, %p264
      %p267 = scmp.ne.s32.totalorder %s252, %s266
      %p268 = scmp.eq.s32.totalorder %s32, 0
      %p269 = por %p267, %p268
      %s271 = sadd.s32 %s270, 1
      %p274 = scmp.eq.s32.totalorder %s26, 3
      %p275 = scmp.ne.s32.totalorder %s270, %s272
      %p276 = scmp.eq.s32.totalorder %s26, 0
      %p277 = por %p275, %p276
      %p278 = scmp.ne.s32.totalorder %s270, %s272
      %p279 = scmp.eq.s32.totalorder %s31, 3
      %p280 = por %p278, %p279
      %p281 = scmp.ne.s32.totalorder %s272, %s273
      %p282 = scmp.eq.s32.totalorder %s31, 0
      %p283 = por %p281, %p282
      %p284 = scmp.ne.s32.totalorder %s272, %s273
      %p285 = scmp.eq.s32.totalorder %s32, 3
      %p286 = por %p284, %p285
      %p288 = scmp.ne.s32.totalorder %s273, %s287
      %p289 = scmp.eq.s32.totalorder %s32, 0
      %p290 = por %p288, %p289
      %s292 = sadd.s32 %s291, 1
      %p295 = scmp.eq.s32.totalorder %s26, 3
      %p296 = scmp.ne.s32.totalorder %s291, %s293
      %p297 = scmp.eq.s32.totalorder %s26, 0
      %p298 = por %p296, %p297
      %p299 = scmp.ne.s32.totalorder %s291, %s293
      %p300 = scmp.eq.s32.totalorder %s31, 3
      %p301 = por %p299, %p300
      %p302 = scmp.ne.s32.totalorder %s293, %s294
      %p303 = scmp.eq.s32.totalorder %s31, 0
      %p304 = por %p302, %p303
      %p305 = scmp.ne.s32.totalorder %s293, %s294
      %p306 = scmp.eq.s32.totalorder %s32, 3
      %p307 = por %p305, %p306
      %p309 = scmp.ne.s32.totalorder %s294, %s308
      %p310 = scmp.eq.s32.totalorder %s32, 0
      %p311 = por %p309, %p310
      %s313 = sadd.s32 %s312, 1
      %p316 = scmp.eq.s32.totalorder %s26, 3
      %p317 = scmp.ne.s32.totalorder %s312, %s314
      %p318 = scmp.eq.s32.totalorder %s26, 0
      %p319 = por %p317, %p318
      %p320 = scmp.ne.s32.totalorder %s312, %s314
      %p321 = scmp.eq.s32.totalorder %s31, 3
      %p322 = por %p320, %p321
      %p323 = scmp.ne.s32.totalorder %s314, %s315
      %p324 = scmp.eq.s32.totalorder %s31, 0
      %p325 = por %p323, %p324
      %p326 = scmp.ne.s32.totalorder %s314, %s315
      %p327 = scmp.eq.s32.totalorder %s32, 3
      %p328 = por %p326, %p327
      %p330 = scmp.ne.s32.totalorder %s315, %s329
      %p331 = scmp.eq.s32.totalorder %s32, 0
      %p332 = por %p330, %p331
      %s334 = sadd.s32 %s333, 1
      %p337 = scmp.eq.s32.totalorder %s26, 3
      %p338 = scmp.ne.s32.totalorder %s333, %s335
      %p339 = scmp.eq.s32.totalorder %s26, 0
      %p340 = por %p338, %p339
      %p341 = scmp.ne.s32.totalorder %s333, %s335
      %p342 = scmp.eq.s32.totalorder %s31, 3
      %p343 = por %p341, %p342
      %p344 = scmp.ne.s32.totalorder %s335, %s336
      %p345 = scmp.eq.s32.totalorder %s31, 0
      %p346 = por %p344, %p345
      %p347 = scmp.ne.s32.totalorder %s335, %s336
      %p348 = scmp.eq.s32.totalorder %s32, 3
      %p349 = por %p347, %p348
      %p351 = scmp.ne.s32.totalorder %s336, %s350
      %p352 = scmp.eq.s32.totalorder %s32, 0
      %p353 = por %p351, %p352
      %s355 = sadd.s32 %s354, 1
      %p358 = scmp.eq.s32.totalorder %s26, 3
      %p359 = scmp.ne.s32.totalorder %s354, %s356
      %p360 = scmp.eq.s32.totalorder %s26, 0
      %p361 = por %p359, %p360
      %p362 = scmp.ne.s32.totalorder %s354, %s356
      %p363 = scmp.eq.s32.totalorder %s31, 3
      %p364 = por %p362, %p363
      %p365 = scmp.ne.s32.totalorder %s356, %s357
      %p366 = scmp.eq.s32.totalorder %s31, 0
      %p367 = por %p365, %p366
      %p368 = scmp.ne.s32.totalorder %s356, %s357
      %p369 = scmp.eq.s32.totalorder %s32, 3
      %p370 = por %p368, %p369
      %p372 = scmp.ne.s32.totalorder %s357, %s371
      %p373 = scmp.eq.s32.totalorder %s32, 0
      %p374 = por %p372, %p373
      %s376 = sadd.s32 %s375, 1
      %p379 = scmp.eq.s32.totalorder %s26, 3
      %p380 = scmp.ne.s32.totalorder %s375, %s377
      %p381 = scmp.eq.s32.totalorder %s26, 0
      %p382 = por %p380, %p381
      %p383 = scmp.ne.s32.totalorder %s375, %s377
      %p384 = scmp.eq.s32.totalorder %s31, 3
      %p385 = por %p383, %p384
      %p386 = scmp.ne.s32.totalorder %s377, %s378
      %p387 = scmp.eq.s32.totalorder %s31, 0
      %p388 = por %p386, %p387
      %p389 = scmp.ne.s32.totalorder %s377, %s378
      %p390 = scmp.eq.s32.totalorder %s32, 3
      %p391 = por %p389, %p390
      %p393 = scmp.ne.s32.totalorder %s378, %s392
      %p394 = scmp.eq.s32.totalorder %s32, 0
      %p395 = por %p393, %p394
      %s397 = sadd.s32 %s396, 1
      %p400 = scmp.eq.s32.totalorder %s26, 3
      %p401 = scmp.ne.s32.totalorder %s396, %s398
      %p402 = scmp.eq.s32.totalorder %s26, 0
      %p403 = por %p401, %p402
      %p404 = scmp.ne.s32.totalorder %s396, %s398
      %p405 = scmp.eq.s32.totalorder %s31, 3
      %p406 = por %p404, %p405
      %p407 = scmp.ne.s32.totalorder %s398, %s399
      %p408 = scmp.eq.s32.totalorder %s31, 0
      %p409 = por %p407, %p408
      %p410 = scmp.ne.s32.totalorder %s398, %s399
      %p411 = scmp.eq.s32.totalorder %s32, 3
      %p412 = por %p410, %p411
      %p414 = scmp.ne.s32.totalorder %s399, %s413
      %p415 = scmp.eq.s32.totalorder %s32, 0
      %p416 = por %p414, %p415
      %s417 = smul.u32 %s35, %s34
      %s418 = smul.u32 %s44, %s48
      %s419 = ssub.s32 %s33, %s52
      %s420 = ssub.s32 %s417, %s418
      %s421 = sor.u32 %s419, %s420
      %p422 = scmp.eq.s32.totalorder %s421, 0
      %s424 = sadd.s32 %s423, 1
      %s425 = scalar_select %p422, %s423, %s424
      %p428 = pneg %p422
      %p429 = scmp.eq.s32.totalorder %s26, 3
      %p430 = por %p428, %p429
      %p431 = scmp.ne.s32.totalorder %s423, %s426
      %p432 = scmp.eq.s32.totalorder %s26, 0
      %p433 = por %p431, %p432
      %p434 = scmp.ne.s32.totalorder %s423, %s426
      %p435 = scmp.eq.s32.totalorder %s31, 3
      %p436 = por %p434, %p435
      %p437 = scmp.ne.s32.totalorder %s426, %s427
      %p438 = scmp.eq.s32.totalorder %s31, 0
      %p439 = por %p437, %p438
      %p440 = scmp.ne.s32.totalorder %s426, %s427
      %p441 = scmp.eq.s32.totalorder %s32, 3
      %p442 = por %p440, %p441
      %p444 = scmp.ne.s32.totalorder %s427, %s443
      %p445 = scmp.eq.s32.totalorder %s32, 0
      %p446 = por %p444, %p445
      %p447 = scmp.le.s32.totalorder 1, %s26
      %p448 = scmp.lt.s32.totalorder %s26, 5
      %p449 = pnand %p447, %p448
      %p450 = pneg %p449
      // Predicated region
      $region9: #{tpu_custom_call.1} parent=5 // pred_check
        _
      $region10: #{tpu_custom_call.1} parent=5 // pred_check_branch
        %452 = sbr.rel (%p449) target = $region12
      $region11: #{tpu_custom_call.1} parent=5 // pred_region
        %s453 = ssub.s32 %s26, 1
        // Predicated region
        $region13: #{tpu_custom_call.1} parent=11 // pred_check
          %p454 = pneg %p94
        $region14: #{tpu_custom_call.1} parent=11 // pred_check_branch
          %456 = sbr.rel (%p454) target = $region16
        $region15: #{tpu_custom_call.1} parent=11 // pred_region
          _
        $region16: #{tpu_custom_call.1} parent=11 // pred_fallthru
          _
        // Predicated region
        $region17: #{tpu_custom_call.1} parent=11 // pred_check
          %p457 = pneg %p115
        $region18: #{tpu_custom_call.1} parent=11 // pred_check_branch
          %459 = sbr.rel (%p457) target = $region20
        $region19: #{tpu_custom_call.1} parent=11 // pred_region
          _
        $region20: #{tpu_custom_call.1} parent=11 // pred_fallthru
          _
        // Predicated region
        $region21: #{tpu_custom_call.1} parent=11 // pred_check
          %p460 = pneg %p136
        $region22: #{tpu_custom_call.1} parent=11 // pred_check_branch
          %462 = sbr.rel (%p460) target = $region24
        $region23: #{tpu_custom_call.1} parent=11 // pred_region
          _
        $region24: #{tpu_custom_call.1} parent=11 // pred_fallthru
          _
        // Predicated region
        $region25: #{tpu_custom_call.1} parent=11 // pred_check
          %p463 = pneg %p157
        $region26: #{tpu_custom_call.1} parent=11 // pred_check_branch
          %465 = sbr.rel (%p463) target = $region28
        $region27: #{tpu_custom_call.1} parent=11 // pred_region
          _
        $region28: #{tpu_custom_call.1} parent=11 // pred_fallthru
          _
        // Predicated region
        $region29: #{tpu_custom_call.1} parent=11 // pred_check
          %p466 = pneg %p178
        $region30: #{tpu_custom_call.1} parent=11 // pred_check_branch
          %468 = sbr.rel (%p466) target = $region32
        $region31: #{tpu_custom_call.1} parent=11 // pred_region
          _
        $region32: #{tpu_custom_call.1} parent=11 // pred_fallthru
          _
        // Predicated region
        $region33: #{tpu_custom_call.1} parent=11 // pred_check
          %p469 = pneg %p199
        $region34: #{tpu_custom_call.1} parent=11 // pred_check_branch
          %471 = sbr.rel (%p469) target = $region36
        $region35: #{tpu_custom_call.1} parent=11 // pred_region
          _
        $region36: #{tpu_custom_call.1} parent=11 // pred_fallthru
          _
        // Predicated region
        $region37: #{tpu_custom_call.1} parent=11 // pred_check
          %p472 = pneg %p220
        $region38: #{tpu_custom_call.1} parent=11 // pred_check_branch
          %474 = sbr.rel (%p472) target = $region40
        $region39: #{tpu_custom_call.1} parent=11 // pred_region
          _
        $region40: #{tpu_custom_call.1} parent=11 // pred_fallthru
          _
        // Predicated region
        $region41: #{tpu_custom_call.1} parent=11 // pred_check
          %p475 = pneg %p241
        $region42: #{tpu_custom_call.1} parent=11 // pred_check_branch
          %477 = sbr.rel (%p475) target = $region44
        $region43: #{tpu_custom_call.1} parent=11 // pred_region
          _
        $region44: #{tpu_custom_call.1} parent=11 // pred_fallthru
          _
        // Predicated region
        $region45: #{tpu_custom_call.1} parent=11 // pred_check
          %p478 = pneg %p262
        $region46: #{tpu_custom_call.1} parent=11 // pred_check_branch
          %480 = sbr.rel (%p478) target = $region48
        $region47: #{tpu_custom_call.1} parent=11 // pred_region
          _
        $region48: #{tpu_custom_call.1} parent=11 // pred_fallthru
          _
        // Predicated region
        $region49: #{tpu_custom_call.1} parent=11 // pred_check
          %p481 = pneg %p283
        $region50: #{tpu_custom_call.1} parent=11 // pred_check_branch
          %483 = sbr.rel (%p481) target = $region52
        $region51: #{tpu_custom_call.1} parent=11 // pred_region
          _
        $region52: #{tpu_custom_call.1} parent=11 // pred_fallthru
          _
        // Predicated region
        $region53: #{tpu_custom_call.1} parent=11 // pred_check
          %p484 = pneg %p304
        $region54: #{tpu_custom_call.1} parent=11 // pred_check_branch
          %486 = sbr.rel (%p484) target = $region56
        $region55: #{tpu_custom_call.1} parent=11 // pred_region
          _
        $region56: #{tpu_custom_call.1} parent=11 // pred_fallthru
          _
        // Predicated region
        $region57: #{tpu_custom_call.1} parent=11 // pred_check
          %p487 = pneg %p325
        $region58: #{tpu_custom_call.1} parent=11 // pred_check_branch
          %489 = sbr.rel (%p487) target = $region60
        $region59: #{tpu_custom_call.1} parent=11 // pred_region
          _
        $region60: #{tpu_custom_call.1} parent=11 // pred_fallthru
          _
        // Predicated region
        $region61: #{tpu_custom_call.1} parent=11 // pred_check
          %p490 = pneg %p346
        $region62: #{tpu_custom_call.1} parent=11 // pred_check_branch
          %492 = sbr.rel (%p490) target = $region64
        $region63: #{tpu_custom_call.1} parent=11 // pred_region
          _
        $region64: #{tpu_custom_call.1} parent=11 // pred_fallthru
          _
        // Predicated region
        $region65: #{tpu_custom_call.1} parent=11 // pred_check
          %p493 = pneg %p367
        $region66: #{tpu_custom_call.1} parent=11 // pred_check_branch
          %495 = sbr.rel (%p493) target = $region68
        $region67: #{tpu_custom_call.1} parent=11 // pred_region
          _
        $region68: #{tpu_custom_call.1} parent=11 // pred_fallthru
          _
        // Predicated region
        $region69: #{tpu_custom_call.1} parent=11 // pred_check
          %p496 = pneg %p388
        $region70: #{tpu_custom_call.1} parent=11 // pred_check_branch
          %498 = sbr.rel (%p496) target = $region72
        $region71: #{tpu_custom_call.1} parent=11 // pred_region
          _
        $region72: #{tpu_custom_call.1} parent=11 // pred_fallthru
          _
        // Predicated region
        $region73: #{tpu_custom_call.1} parent=11 // pred_check
          %p499 = pneg %p409
        $region74: #{tpu_custom_call.1} parent=11 // pred_check_branch
          %501 = sbr.rel (%p499) target = $region76
        $region75: #{tpu_custom_call.1} parent=11 // pred_region
          _
        $region76: #{tpu_custom_call.1} parent=11 // pred_fallthru
          _
      $region12: #{tpu_custom_call.1} parent=5 // pred_fallthru
        _
      %p502 = scmp.lt.s32.totalorder %s26, 4
      // Predicated region
      $region77: #{tpu_custom_call.1} parent=5 // pred_check
        %p503 = pneg %p502
      $region78: #{tpu_custom_call.1} parent=5 // pred_check_branch
        %505 = sbr.rel (%p503) target = $region80
      $region79: #{tpu_custom_call.1} parent=5 // pred_region
        // Predicated region
        $region81: #{tpu_custom_call.1} parent=79 // pred_check
          %p506 = pneg %p67
        $region82: #{tpu_custom_call.1} parent=79 // pred_check_branch
          %508 = sbr.rel (%p506) target = $region84
        $region83: #{tpu_custom_call.1} parent=79 // pred_region
          %p509 = scmp.lt.s32.totalorder %s33, 1
          %s510 = scalar_select %p509, %s33, 1
          %p511 = scmp.lt.s32.totalorder %s35, 0
          %s512 = scalar_select %p511, %s35, 0
          %s513 = sadd.s32 %s512, %s510
          %s514 = smul.addr %s513, 4
          %s515 = scalar_lea.vmem %s0, %s514
        $region84: #{tpu_custom_call.1} parent=79 // pred_fallthru
          _
      $region80: #{tpu_custom_call.1} parent=5 // pred_fallthru
        _
      %p516 = scmp.le.s32.totalorder 1, %s26
      %p517 = scmp.lt.s32.totalorder %s26, 5
      %p518 = pnand %p516, %p517
      %p519 = pneg %p518
      // Predicated region
      $region85: #{tpu_custom_call.1} parent=5 // pred_check
        _
      $region86: #{tpu_custom_call.1} parent=5 // pred_check_branch
        %521 = sbr.rel (%p518) target = $region88
      $region87: #{tpu_custom_call.1} parent=5 // pred_region
        %s522 = ssub.s32 %s26, 1
        %p523 = scmp.lt.s32.totalorder %s36, 1
        %s524 = scalar_select %p523, %s36, 1
        %p525 = scmp.lt.s32.totalorder %s38, 0
        %s526 = scalar_select %p525, %s38, 0
        %s527 = sadd.s32 %s526, %s524
        %s528 = smul.addr %s527, 4
        %s529 = scalar_lea.vmem %s0, %s528
        %p530 = pneg %p73
        %p531 = pneg %p70
        %p532 = pneg %p94
        %p533 = pneg %p91
        %p534 = pneg %p115
        %p535 = pneg %p112
        %p536 = pneg %p136
        %p537 = pneg %p133
        %p538 = pneg %p157
        %p539 = pneg %p154
        %p540 = pneg %p178
        %p541 = pneg %p175
        %p542 = pneg %p199
        %p543 = pneg %p196
        %p544 = pneg %p220
        %p545 = pneg %p217
        %p546 = pneg %p241
        %p547 = pneg %p238
        %p548 = pneg %p262
        %p549 = pneg %p259
        %p550 = pneg %p283
        %p551 = pneg %p280
        %p552 = pneg %p304
        %p553 = pneg %p301
        %p554 = pneg %p325
        %p555 = pneg %p322
        %p556 = pneg %p346
        %p557 = pneg %p343
        %p558 = pneg %p367
        %p559 = pneg %p364
        %p560 = pneg %p388
        %p561 = pneg %p385
        %p562 = pneg %p409
        %p563 = pneg %p406
        %p564 = pneg %p439
        %p565 = pneg %p436
        %s566 = sand.u32 %s426, 1
        %s567 = scalar_lea.sflag [#allocation5], %s566
        %s568 = sand.u32 %s426, 1
        %s569 = smul.addr %s568, 8
        %s570 = scalar_lea.vmem [#allocation4], %s569
        %p571 = scmp.lt.s32.totalorder %s36, 1
        %s572 = scalar_select %p571, %s36, 1
        %p573 = scmp.lt.s32.totalorder %s38, 0
        %s574 = scalar_select %p573, %s38, 0
        %s575 = sadd.s32 %s574, %s572
        %s576 = smul.addr %s575, 4
        %s577 = scalar_lea.vmem %s0, %s576
        %s578 = smul.u32 %s38, %s37
        %v580 = vld [vmem:[%s577] sm:$0xf]
        %p581 = scmp.eq.s32.totalorder %s37, 0
        %p582 = scmp.eq.s32.totalorder %s38, 0
        %p583 = pnand %p581, %p582
        %p584 = pneg %p583
        // Predicated region
        $region89: #{tpu_custom_call.1} parent=87 // pred_check
          _
        $region90: #{tpu_custom_call.1} parent=87 // pred_check_branch
          %586 = sbr.rel (%p583) target = $region92
        $region91: #{tpu_custom_call.1} parent=87 // pred_region
          %vm587 = vcmask 261120
          %588 = vst.msk [vmem:[#allocation2] sm:$0xff] %vm587, 0.0
          %589 = vst.msk [vmem:[#allocation2 + $0x8] sm:$0xff] %vm587, 0.0
          %590 = vst.msk [vmem:[#allocation2 + $0x10] sm:$0xff] %vm587, 0.0
          %591 = vst.msk [vmem:[#allocation2 + $0x18] sm:$0xff] %vm587, 0.0
        $region92: #{tpu_custom_call.1} parent=87 // pred_fallthru
          _
        // Predicated region
        $region93: #{tpu_custom_call.1} parent=87 // pred_check
          %p592 = pneg %p581
        $region94: #{tpu_custom_call.1} parent=87 // pred_check_branch
          %594 = sbr.rel (%p592) target = $region96
        $region95: #{tpu_custom_call.1} parent=87 // pred_region
          %v595 = vld [vmem:[%s3] sm:$0xf]
          %v596 = vld [vmem:[%s3 + $0x4] sm:$0xf]
          %v597 = vld [vmem:[%s3 + $0x8] sm:$0xf]
          %v598 = vld [vmem:[%s3 + $0xc] sm:$0xf]
          %v599 = vld [vmem:[%s4] sm:$0x1]
          %v601 = vlaneseq
          %v602 = vshrl.u32 %v601, 7
          %v603 = vsub.s32 0, %v602
          %v604 = vrot.slane %v599, %v603
          %v610 = vunpack.c.l.b16 %v595
          %v611 = vunpack.c.l.b16 %v596
          %v612 = vunpack.c.l.b16 %v597
          %v613 = vunpack.c.l.b16 %v598
          %v614 = vpack.c.b16 %v611, %v610
          %v615 = vpack.c.b16 %v613, %v612
          %vm618 = vcmask 261120
          %v620 = vsel %vm618, %v580, 0
          %622 = vmatprep.subr.bf16.mxu0 0
          %623 = vmatpush1.bf16.msra.mxu0 %v614
          %624 = vmatprep.subr.bf16.mxu0 0
          %625 = vmatpush1.bf16.msra.mxu0 %v615
          %626 = vmatprep.subr.bf16.mxu0 0
          %627 = vmatpush1.bf16.msra.mxu0 0
          %628 = vmatprep.subr.bf16.mxu0 0
          %629 = vmatpush1.bf16.msra.mxu0 0
          %630 = vmatprep.subr.bf16.mxu0 0
          %631 = vmatpush1.bf16.msra.mxu0 0
          %632 = vmatprep.subr.bf16.mxu0 0
          %633 = vmatpush1.bf16.msra.mxu0 0
          %634 = vmatprep.subr.bf16.mxu0 0
          %635 = vmatpush1.bf16.msra.mxu0 0
          %636 = vmatprep.subr.bf16.mxu0 0
          %637 = vmatpush1.bf16.msra.mxu0 0
          %638 = vmatprep.subr.bf16.mxu0 0
          %639 = vmatpush1.bf16.msra.mxu0 0
          %640 = vmatprep.subr.bf16.mxu0 0
          %641 = vmatpush1.bf16.msra.mxu0 0
          %642 = vmatprep.subr.bf16.mxu0 0
          %643 = vmatpush1.bf16.msra.mxu0 0
          %644 = vmatprep.subr.bf16.mxu0 0
          %645 = vmatpush1.bf16.msra.mxu0 0
          %646 = vmatprep.subr.bf16.mxu0 0
          %647 = vmatpush1.bf16.msra.mxu0 0
          %648 = vmatprep.subr.bf16.mxu0 0
          %649 = vmatpush1.bf16.msra.mxu0 0
          %650 = vmatprep.subr.bf16.mxu0 0
          %651 = vmatpush1.bf16.msra.mxu0 0
          %652 = vmatprep.subr.bf16.mxu0 0
          %653 = vmatpush1.bf16.msra.mxu0 0
          %654 = vmatprep.mubr.bf16.mxu0 0
          %655 = vmatmul.mubr.bf16.gmra.mrb[0].mxu0 %v620
          %v656 = vpop.f32.mrb[0].mxu0
          %v657 = vadd.f32 %v604, %v656
          %v658 = vpop.f32.mrb[0].mxu0
          %v659 = vpop.f32.mrb[0].mxu0
          %v660 = vpop.f32.mrb[0].mxu0
          %661 = vdwg.mxu0
          %vm662 = vcmp.gt.f32.partialorder %v657, 0.0
          %v663 = vmin.f32 %v657, 0.0
          %v664 = vmul.f32 %v663, 1.442695
          %v665 = vpow.pop %v664
          %v666 = vsub.f32 %v665, 1.0
          %v667 = vsel %vm662, %v657, %v666
          %v668 = vmul.f32 %v667, %v667
          %v669 = vld [vmem:[%s15] sm:$0xff]
          %v670 = vld [vmem:[%s15 + $0x8] sm:$0xff]
          %v671 = vld [vmem:[%s15 + $0x10] sm:$0xff]
          %v672 = vld [vmem:[%s15 + $0x18] sm:$0xff]
          %v674 = vsel %vm618, %v668, 0
          %676 = vmatprep.subr.mxu0 0.0
          %677 = vmatpush1.msra.mxu0 %v669
          %678 = vmatprep.subr.mxu0 0.0
          %679 = vmatpush1.msra.mxu0 %v670
          %680 = vmatprep.subr.mxu0 0.0
          %681 = vmatpush1.msra.mxu0 %v671
          %682 = vmatprep.subr.mxu0 0.0
          %683 = vmatpush1.msra.mxu0 %v672
          %684 = vmatprep.subr.mxu0 0.0
          %685 = vmatpush1.msra.mxu0 0.0
          %686 = vmatprep.subr.mxu0 0.0
          %687 = vmatpush1.msra.mxu0 0.0
          %688 = vmatprep.subr.mxu0 0.0
          %689 = vmatpush1.msra.mxu0 0.0
          %690 = vmatprep.subr.mxu0 0.0
          %691 = vmatpush1.msra.mxu0 0.0
          %692 = vmatprep.subr.mxu0 0.0
          %693 = vmatpush1.msra.mxu0 0.0
          %694 = vmatprep.subr.mxu0 0.0
          %695 = vmatpush1.msra.mxu0 0.0
          %696 = vmatprep.subr.mxu0 0.0
          %697 = vmatpush1.msra.mxu0 0.0
          %698 = vmatprep.subr.mxu0 0.0
          %699 = vmatpush1.msra.mxu0 0.0
          %700 = vmatprep.subr.mxu0 0.0
          %701 = vmatpush1.msra.mxu0 0.0
          %702 = vmatprep.subr.mxu0 0.0
          %703 = vmatpush1.msra.mxu0 0.0
          %704 = vmatprep.subr.mxu0 0.0
          %705 = vmatpush1.msra.mxu0 0.0
          %706 = vmatprep.subr.mxu0 0.0
          %707 = vmatpush1.msra.mxu0 0.0
          %708 = vmatprep.subr.mxu0 0.0
          %709 = vmatpush1.msra.mxu0 0.0
          %710 = vmatprep.subr.mxu0 0.0
          %711 = vmatpush1.msra.mxu0 0.0
          %712 = vmatprep.subr.mxu0 0.0
          %713 = vmatpush1.msra.mxu0 0.0
          %714 = vmatprep.subr.mxu0 0.0
          %715 = vmatpush1.msra.mxu0 0.0
          %716 = vmatprep.subr.mxu0 0.0
          %717 = vmatpush1.msra.mxu0 0.0
          %718 = vmatprep.subr.mxu0 0.0
          %719 = vmatpush1.msra.mxu0 0.0
          %720 = vmatprep.subr.mxu0 0.0
          %721 = vmatpush1.msra.mxu0 0.0
          %722 = vmatprep.subr.mxu0 0.0
          %723 = vmatpush1.msra.mxu0 0.0
          %724 = vmatprep.subr.mxu0 0.0
          %725 = vmatpush1.msra.mxu0 0.0
          %726 = vmatprep.subr.mxu0 0.0
          %727 = vmatpush1.msra.mxu0 0.0
          %728 = vmatprep.subr.mxu0 0.0
          %729 = vmatpush1.msra.mxu0 0.0
          %730 = vmatprep.subr.mxu0 0.0
          %731 = vmatpush1.msra.mxu0 0.0
          %732 = vmatprep.subr.mxu0 0.0
          %733 = vmatpush1.msra.mxu0 0.0
          %734 = vmatprep.subr.mxu0 0.0
          %735 = vmatpush1.msra.mxu0 0.0
          %736 = vmatprep.subr.mxu0 0.0
          %737 = vmatpush1.msra.mxu0 0.0
          %738 = vmatprep.subr.mxu0 0.0
          %739 = vmatpush1.msra.mxu0 0.0
          %740 = vmatprep.mubr.f32.mxu0 0.0
          %741 = vmatmul.mubr.f32.gmra.mrb[0].mxu0 %v674
          %v742 = vpop.f32.mrb[0].mxu0
          %v743 = vadd.f32 1e-12, %v742
          %v744 = vpop.f32.mrb[0].mxu0
          %745 = vdwg.mxu0
          %v746 = vrsqrt.pop %v743
          %v747 = vld [vmem:[%s16] sm:$0x3]
          %vm748 = vcmask 15360
          %v750 = vsel %vm748, %v746, 0
          %vm752 = vcmask 1041408
          %v754 = vsel %vm752, %v747, 0
          %756 = vmatprep.subr.mxu0 0.0
          %757 = vmatpush1.msra.mxu0 %v754
          %758 = vmatprep.subr.mxu0 0.0
          %759 = vmatpush1.msra.mxu0 0.0
          %760 = vmatprep.subr.mxu0 0.0
          %761 = vmatpush1.msra.mxu0 0.0
          %762 = vmatprep.subr.mxu0 0.0
          %763 = vmatpush1.msra.mxu0 0.0
          %764 = vmatprep.subr.mxu0 0.0
          %765 = vmatpush1.msra.mxu0 0.0
          %766 = vmatprep.subr.mxu0 0.0
          %767 = vmatpush1.msra.mxu0 0.0
          %768 = vmatprep.subr.mxu0 0.0
          %769 = vmatpush1.msra.mxu0 0.0
          %770 = vmatprep.subr.mxu0 0.0
          %771 = vmatpush1.msra.mxu0 0.0
          %772 = vmatprep.subr.mxu0 0.0
          %773 = vmatpush1.msra.mxu0 0.0
          %774 = vmatprep.subr.mxu0 0.0
          %775 = vmatpush1.msra.mxu0 0.0
          %776 = vmatprep.subr.mxu0 0.0
          %777 = vmatpush1.msra.mxu0 0.0
          %778 = vmatprep.subr.mxu0 0.0
          %779 = vmatpush1.msra.mxu0 0.0
          %780 = vmatprep.subr.mxu0 0.0
          %781 = vmatpush1.msra.mxu0 0.0
          %782 = vmatprep.subr.mxu0 0.0
          %783 = vmatpush1.msra.mxu0 0.0
          %784 = vmatprep.subr.mxu0 0.0
          %785 = vmatpush1.msra.mxu0 0.0
          %786 = vmatprep.subr.mxu0 0.0
          %787 = vmatpush1.msra.mxu0 0.0
          %788 = vmatprep.subr.mxu0 0.0
          %789 = vmatpush1.msra.mxu0 0.0
          %790 = vmatprep.subr.mxu0 0.0
          %791 = vmatpush1.msra.mxu0 0.0
          %792 = vmatprep.subr.mxu0 0.0
          %793 = vmatpush1.msra.mxu0 0.0
          %794 = vmatprep.subr.mxu0 0.0
          %795 = vmatpush1.msra.mxu0 0.0
          %796 = vmatprep.subr.mxu0 0.0
          %797 = vmatpush1.msra.mxu0 0.0
          %798 = vmatprep.subr.mxu0 0.0
          %799 = vmatpush1.msra.mxu0 0.0
          %800 = vmatprep.subr.mxu0 0.0
          %801 = vmatpush1.msra.mxu0 0.0
          %802 = vmatprep.subr.mxu0 0.0
          %803 = vmatpush1.msra.mxu0 0.0
          %804 = vmatprep.subr.mxu0 0.0
          %805 = vmatpush1.msra.mxu0 0.0
          %806 = vmatprep.subr.mxu0 0.0
          %807 = vmatpush1.msra.mxu0 0.0
          %808 = vmatprep.subr.mxu0 0.0
          %809 = vmatpush1.msra.mxu0 0.0
          %810 = vmatprep.subr.mxu0 0.0
          %811 = vmatpush1.msra.mxu0 0.0
          %812 = vmatprep.subr.mxu0 0.0
          %813 = vmatpush1.msra.mxu0 0.0
          %814 = vmatprep.subr.mxu0 0.0
          %815 = vmatpush1.msra.mxu0 0.0
          %816 = vmatprep.subr.mxu0 0.0
          %817 = vmatpush1.msra.mxu0 0.0
          %818 = vmatprep.subr.mxu0 0.0
          %819 = vmatpush1.msra.mxu0 0.0
          %820 = vmatprep.mubr.f32.mxu0 0.0
          %821 = vmatmul.mubr.f32.gmra.mrb[0].mxu0 %v750
          %v822 = vpop.f32.mrb[0].mxu0
          %v823 = vadd.f32 0.0, %v822
          %v824 = vpop.f32.mrb[0].mxu0
          %825 = vdwg.mxu0
          %v826 = vmul.f32 %v667, %v823
          %v827 = vld [vmem:[#allocation2] sm:$0xff]
          %v828 = vld [vmem:[#allocation2 + $0x8] sm:$0xff]
          %v829 = vld [vmem:[#allocation2 + $0x10] sm:$0xff]
          %v830 = vld [vmem:[#allocation2 + $0x18] sm:$0xff]
          %v831 = vpack.c.bf16 %v826, %v826
          %v832 = vpack.c.bf16 %v657, %v657
          %833 = vxpose.xlu0.c.b16.start [1/8] %v831, 128
          %834 = vxpose.xlu0.c.b16.cont [2/8] 0, 128
          %835 = vxpose.xlu0.c.b16.cont [3/8] 0, 128
          %836 = vxpose.xlu0.c.b16.cont [4/8] 0, 128
          %837 = vxpose.xlu0.c.b16.cont [5/8] 0, 128
          %838 = vxpose.xlu0.c.b16.cont [6/8] 0, 128
          %839 = vxpose.xlu0.c.b16.cont [7/8] 0, 128
          %840 = vxpose.xlu0.c.b16.end [8/8] 0, 128
          %v841 = vpop.trf.xlu0
          %v842 = vpop.trf.xlu0
          %v843 = vpop.trf.xlu0
          %v844 = vpop.trf.xlu0
          %v845 = vpop.trf.xlu0
          %v846 = vpop.trf.xlu0
          %v847 = vpop.trf.xlu0
          %v848 = vpop.trf.xlu0
          %850 = vrot.lane.b32.xlu0 %v832, 96
          %v851 = vpop.permute.xlu0 %850
          %vm852 = vcmask 64512
          %v854 = vsel %vm852, %v841, 0
          %v857 = vsel %vm852, %v842, 0
          %vm859 = vcmask 1043456
          %v861 = vsel %vm859, %v851, 0
          %863 = vmatprep.subr.bf16.mxu0 0
          %864 = vmatpush1.bf16.msra.mxu0 %v861
          %865 = vmatprep.subr.bf16.mxu0 0
          %866 = vmatpush1.bf16.msra.mxu0 0
          %867 = vmatprep.subr.bf16.mxu0 0
          %868 = vmatpush1.bf16.msra.mxu0 0
          %869 = vmatprep.subr.bf16.mxu0 0
          %870 = vmatpush1.bf16.msra.mxu0 0
          %871 = vmatprep.subr.bf16.mxu0 0
          %872 = vmatpush1.bf16.msra.mxu0 0
          %873 = vmatprep.subr.bf16.mxu0 0
          %874 = vmatpush1.bf16.msra.mxu0 0
          %875 = vmatprep.subr.bf16.mxu0 0
          %876 = vmatpush1.bf16.msra.mxu0 0
          %877 = vmatprep.subr.bf16.mxu0 0
          %878 = vmatpush1.bf16.msra.mxu0 0
          %879 = vmatprep.subr.bf16.mxu0 0
          %880 = vmatpush1.bf16.msra.mxu0 0
          %881 = vmatprep.subr.bf16.mxu0 0
          %882 = vmatpush1.bf16.msra.mxu0 0
          %883 = vmatprep.subr.bf16.mxu0 0
          %884 = vmatpush1.bf16.msra.mxu0 0
          %885 = vmatprep.subr.bf16.mxu0 0
          %886 = vmatpush1.bf16.msra.mxu0 0
          %887 = vmatprep.subr.bf16.mxu0 0
          %888 = vmatpush1.bf16.msra.mxu0 0
          %889 = vmatprep.subr.bf16.mxu0 0
          %890 = vmatpush1.bf16.msra.mxu0 0
          %891 = vmatprep.subr.bf16.mxu0 0
          %892 = vmatpush1.bf16.msra.mxu0 0
          %893 = vmatprep.subr.bf16.mxu0 0
          %894 = vmatpush1.bf16.msra.mxu0 0
          %895 = vmatprep.mubr.bf16.mxu0 0
          %896 = vmatmul.mubr.bf16.gmra.mrb[0].mxu0 %v854
          %v897 = vpop.f32.mrb[0].mxu0
          %v898 = vadd.f32 0.0, %v897
          %v899 = vpop.f32.mrb[0].mxu0
          %v900 = vpop.f32.mrb[0].mxu0
          %v901 = vadd.f32 0.0, %v900
          %v902 = vpop.f32.mrb[0].mxu0
          %903 = vmatprep.mubr.bf16.mxu0 0
          %904 = vmatmul.mubr.bf16.gmra.mrb[0].mxu0 %v857
          %v905 = vpop.f32.mrb[0].mxu0
          %v906 = vadd.f32 0.0, %v905
          %v907 = vpop.f32.mrb[0].mxu0
          %v908 = vpop.f32.mrb[0].mxu0
          %v909 = vadd.f32 0.0, %v908
          %v910 = vpop.f32.mrb[0].mxu0
          %911 = vdwg.mxu0
          %v912 = vadd.f32 %v827, %v898
          %v913 = vadd.f32 %v828, %v901
          %v914 = vadd.f32 %v829, %v906
          %v915 = vadd.f32 %v830, %v909
          %916 = vst.msk [vmem:[#allocation2] sm:$0xff] %vm618, %v912
          %917 = vst.msk [vmem:[#allocation2 + $0x8] sm:$0xff] %vm618, %v913
          %918 = vst.msk [vmem:[#allocation2 + $0x10] sm:$0xff] %vm618, %v914
          %919 = vst.msk [vmem:[#allocation2 + $0x18] sm:$0xff] %vm618, %v915
          // Predicated region
          $region97: #{tpu_custom_call.1} parent=95 // pred_check
            %p920 = pneg %p582
          $region98: #{tpu_custom_call.1} parent=95 // pred_check_branch
            %922 = sbr.rel (%p920) target = $region100
          $region99: #{tpu_custom_call.1} parent=95 // pred_region
            %v923 = vld [vmem:[%s15] sm:$0xff]
            %v924 = vld [vmem:[%s15 + $0x8] sm:$0xff]
            %v925 = vld [vmem:[%s15 + $0x10] sm:$0xff]
            %v926 = vld [vmem:[%s15 + $0x18] sm:$0xff]
            %v927 = vld [vmem:[%s16] sm:$0x3]
            %v929 = vsel %vm748, %v923, 0
            %v932 = vsel %vm748, %v924, 0
            %v935 = vsel %vm748, %v925, 0
            %v938 = vsel %vm748, %v926, 0
            %v941 = vsel %vm752, %v927, 0
            %943 = vmatprep.subr.mxu0 0.0
            %944 = vmatpush1.msra.mxu0 %v941
            %945 = vmatprep.subr.mxu0 0.0
            %946 = vmatpush1.msra.mxu0 0.0
            %947 = vmatprep.subr.mxu0 0.0
            %948 = vmatpush1.msra.mxu0 0.0
            %949 = vmatprep.subr.mxu0 0.0
            %950 = vmatpush1.msra.mxu0 0.0
            %951 = vmatprep.subr.mxu0 0.0
            %952 = vmatpush1.msra.mxu0 0.0
            %953 = vmatprep.subr.mxu0 0.0
            %954 = vmatpush1.msra.mxu0 0.0
            %955 = vmatprep.subr.mxu0 0.0
            %956 = vmatpush1.msra.mxu0 0.0
            %957 = vmatprep.subr.mxu0 0.0
            %958 = vmatpush1.msra.mxu0 0.0
            %959 = vmatprep.subr.mxu0 0.0
            %960 = vmatpush1.msra.mxu0 0.0
            %961 = vmatprep.subr.mxu0 0.0
            %962 = vmatpush1.msra.mxu0 0.0
            %963 = vmatprep.subr.mxu0 0.0
            %964 = vmatpush1.msra.mxu0 0.0
            %965 = vmatprep.subr.mxu0 0.0
            %966 = vmatpush1.msra.mxu0 0.0
            %967 = vmatprep.subr.mxu0 0.0
            %968 = vmatpush1.msra.mxu0 0.0
            %969 = vmatprep.subr.mxu0 0.0
            %970 = vmatpush1.msra.mxu0 0.0
            %971 = vmatprep.subr.mxu0 0.0
            %972 = vmatpush1.msra.mxu0 0.0
            %973 = vmatprep.subr.mxu0 0.0
            %974 = vmatpush1.msra.mxu0 0.0
            %975 = vmatprep.subr.mxu0 0.0
            %976 = vmatpush1.msra.mxu0 0.0
            %977 = vmatprep.subr.mxu0 0.0
            %978 = vmatpush1.msra.mxu0 0.0
            %979 = vmatprep.subr.mxu0 0.0
            %980 = vmatpush1.msra.mxu0 0.0
            %981 = vmatprep.subr.mxu0 0.0
            %982 = vmatpush1.msra.mxu0 0.0
            %983 = vmatprep.subr.mxu0 0.0
            %984 = vmatpush1.msra.mxu0 0.0
            %985 = vmatprep.subr.mxu0 0.0
            %986 = vmatpush1.msra.mxu0 0.0
            %987 = vmatprep.subr.mxu0 0.0
            %988 = vmatpush1.msra.mxu0 0.0
            %989 = vmatprep.subr.mxu0 0.0
            %990 = vmatpush1.msra.mxu0 0.0
            %991 = vmatprep.subr.mxu0 0.0
            %992 = vmatpush1.msra.mxu0 0.0
            %993 = vmatprep.subr.mxu0 0.0
            %994 = vmatpush1.msra.mxu0 0.0
            %995 = vmatprep.subr.mxu0 0.0
            %996 = vmatpush1.msra.mxu0 0.0
            %997 = vmatprep.subr.mxu0 0.0
            %998 = vmatpush1.msra.mxu0 0.0
            %999 = vmatprep.subr.mxu0 0.0
            %1000 = vmatpush1.msra.mxu0 0.0
            %1001 = vmatprep.subr.mxu0 0.0
            %1002 = vmatpush1.msra.mxu0 0.0
            %1003 = vmatprep.subr.mxu0 0.0
            %1004 = vmatpush1.msra.mxu0 0.0
            %1005 = vmatprep.subr.mxu0 0.0
            %1006 = vmatpush1.msra.mxu0 0.0
            %1007 = vmatprep.mubr.f32.mxu0 0.0
            %1008 = vmatmul.mubr.f32.gmra.mrb[0].mxu0 %v929
            %v1009 = vpop.f32.mrb[0].mxu0
            %v1010 = vadd.f32 0.0, %v1009
            %v1011 = vpop.f32.mrb[0].mxu0
            %1012 = vmatprep.mubr.f32.mxu0 0.0
            %1013 = vmatmul.mubr.f32.gmra.mrb[0].mxu0 %v932
            %v1014 = vpop.f32.mrb[0].mxu0
            %v1015 = vadd.f32 0.0, %v1014
            %v1016 = vpop.f32.mrb[0].mxu0
            %1017 = vmatprep.mubr.f32.mxu0 0.0
            %1018 = vmatmul.mubr.f32.gmra.mrb[0].mxu0 %v935
            %v1019 = vpop.f32.mrb[0].mxu0
            %v1020 = vadd.f32 0.0, %v1019
            %v1021 = vpop.f32.mrb[0].mxu0
            %1022 = vmatprep.mubr.f32.mxu0 0.0
            %1023 = vmatmul.mubr.f32.gmra.mrb[0].mxu0 %v938
            %v1024 = vpop.f32.mrb[0].mxu0
            %v1025 = vadd.f32 0.0, %v1024
            %v1026 = vpop.f32.mrb[0].mxu0
            %1027 = vdwg.mxu0
            %v1028 = vld [vmem:[#allocation2] sm:$0xff]
            %v1029 = vld [vmem:[#allocation2 + $0x8] sm:$0xff]
            %v1030 = vld [vmem:[#allocation2 + $0x10] sm:$0xff]
            %v1031 = vld [vmem:[#allocation2 + $0x18] sm:$0xff]
            %v1032 = vmul.f32 %v1028, %v1010
            %v1033 = vmul.f32 %v1029, %v1015
            %v1034 = vmul.f32 %v1030, %v1020
            %v1035 = vmul.f32 %v1031, %v1025
            %v1036 = vpack.c.bf16 %v1033, %v1032
            %v1037 = vpack.c.bf16 %v1035, %v1034
            %1038 = vst.msk [vmem:[#allocation3] sm:$0xff] %vm618, %v1036
            %1039 = vst.msk [vmem:[#allocation3 + $0x8] sm:$0xff] %vm618, %v1037
          $region100: #{tpu_custom_call.1} parent=95 // pred_fallthru
            _
        $region96: #{tpu_custom_call.1} parent=87 // pred_fallthru
          _
        %p1040 = scmp.eq.s32.totalorder %s37, 1
        // Predicated region
        $region101: #{tpu_custom_call.1} parent=87 // pred_check
          %p1041 = pneg %p1040
        $region102: #{tpu_custom_call.1} parent=87 // pred_check_branch
          %1043 = sbr.rel (%p1041) target = $region104
        $region103: #{tpu_custom_call.1} parent=87 // pred_region
          %v1044 = vunpack.c.l.bf16 %v580
          %v1045 = vld [vmem:[%s1] sm:$0xf]
          %v1046 = vld [vmem:[%s1 + $0x4] sm:$0xf]
          %v1047 = vld [vmem:[%s1 + $0x8] sm:$0xf]
          %v1048 = vld [vmem:[%s1 + $0xc] sm:$0xf]
          %v1049 = vld [vmem:[%s2] sm:$0x1]
          %v1051 = vlaneseq
          %v1052 = vshrl.u32 %v1051, 7
          %v1053 = vsub.s32 0, %v1052
          %v1054 = vrot.slane %v1049, %v1053
          %v1060 = vunpack.c.l.b16 %v1045
          %v1061 = vunpack.c.l.b16 %v1046
          %v1062 = vunpack.c.l.b16 %v1047
          %v1063 = vunpack.c.l.b16 %v1048
          %v1064 = vpack.c.b16 %v1061, %v1060
          %v1065 = vpack.c.b16 %v1063, %v1062
          %vm1068 = vcmask 261120
          %v1070 = vsel %vm1068, %v580, 0
          %1072 = vmatprep.subr.bf16.mxu0 0
          %1073 = vmatpush1.bf16.msra.mxu0 %v1064
          %1074 = vmatprep.subr.bf16.mxu0 0
          %1075 = vmatpush1.bf16.msra.mxu0 %v1065
          %1076 = vmatprep.subr.bf16.mxu0 0
          %1077 = vmatpush1.bf16.msra.mxu0 0
          %1078 = vmatprep.subr.bf16.mxu0 0
          %1079 = vmatpush1.bf16.msra.mxu0 0
          %1080 = vmatprep.subr.bf16.mxu0 0
          %1081 = vmatpush1.bf16.msra.mxu0 0
          %1082 = vmatprep.subr.bf16.mxu0 0
          %1083 = vmatpush1.bf16.msra.mxu0 0
          %1084 = vmatprep.subr.bf16.mxu0 0
          %1085 = vmatpush1.bf16.msra.mxu0 0
          %1086 = vmatprep.subr.bf16.mxu0 0
          %1087 = vmatpush1.bf16.msra.mxu0 0
          %1088 = vmatprep.subr.bf16.mxu0 0
          %1089 = vmatpush1.bf16.msra.mxu0 0
          %1090 = vmatprep.subr.bf16.mxu0 0
          %1091 = vmatpush1.bf16.msra.mxu0 0
          %1092 = vmatprep.subr.bf16.mxu0 0
          %1093 = vmatpush1.bf16.msra.mxu0 0
          %1094 = vmatprep.subr.bf16.mxu0 0
          %1095 = vmatpush1.bf16.msra.mxu0 0
          %1096 = vmatprep.subr.bf16.mxu0 0
          %1097 = vmatpush1.bf16.msra.mxu0 0
          %1098 = vmatprep.subr.bf16.mxu0 0
          %1099 = vmatpush1.bf16.msra.mxu0 0
          %1100 = vmatprep.subr.bf16.mxu0 0
          %1101 = vmatpush1.bf16.msra.mxu0 0
          %1102 = vmatprep.subr.bf16.mxu0 0
          %1103 = vmatpush1.bf16.msra.mxu0 0
          %1104 = vmatprep.mubr.bf16.mxu0 0
          %1105 = vmatmul.mubr.bf16.gmra.mrb[0].mxu0 %v1070
          %v1106 = vpop.f32.mrb[0].mxu0
          %v1107 = vadd.f32 %v1054, %v1106
          %v1108 = vpop.f32.mrb[0].mxu0
          %v1109 = vpop.f32.mrb[0].mxu0
          %v1110 = vpop.f32.mrb[0].mxu0
          %1111 = vdwg.mxu0
          %vm1112 = vcmp.gt.f32.partialorder %v1107, 0.0
          %v1113 = vmin.f32 %v1107, 0.0
          %v1114 = vmul.f32 %v1113, 1.442695
          %v1115 = vpow.pop %v1114
          %v1116 = vsub.f32 %v1115, 1.0
          %v1117 = vsel %vm1112, %v1107, %v1116
          %v1118 = vmul.f32 %v1117, %v1117
          %v1119 = vld [vmem:[%s15] sm:$0xff]
          %v1120 = vld [vmem:[%s15 + $0x8] sm:$0xff]
          %v1121 = vld [vmem:[%s15 + $0x10] sm:$0xff]
          %v1122 = vld [vmem:[%s15 + $0x18] sm:$0xff]
          %v1124 = vsel %vm1068, %v1118, 0
          %1126 = vmatprep.subr.mxu0 0.0
          %1127 = vmatpush1.msra.mxu0 %v1119
          %1128 = vmatprep.subr.mxu0 0.0
          %1129 = vmatpush1.msra.mxu0 %v1120
          %1130 = vmatprep.subr.mxu0 0.0
          %1131 = vmatpush1.msra.mxu0 %v1121
          %1132 = vmatprep.subr.mxu0 0.0
          %1133 = vmatpush1.msra.mxu0 %v1122
          %1134 = vmatprep.subr.mxu0 0.0
          %1135 = vmatpush1.msra.mxu0 0.0
          %1136 = vmatprep.subr.mxu0 0.0
          %1137 = vmatpush1.msra.mxu0 0.0
          %1138 = vmatprep.subr.mxu0 0.0
          %1139 = vmatpush1.msra.mxu0 0.0
          %1140 = vmatprep.subr.mxu0 0.0
          %1141 = vmatpush1.msra.mxu0 0.0
          %1142 = vmatprep.subr.mxu0 0.0
          %1143 = vmatpush1.msra.mxu0 0.0
          %1144 = vmatprep.subr.mxu0 0.0
          %1145 = vmatpush1.msra.mxu0 0.0
          %1146 = vmatprep.subr.mxu0 0.0
          %1147 = vmatpush1.msra.mxu0 0.0
          %1148 = vmatprep.subr.mxu0 0.0
          %1149 = vmatpush1.msra.mxu0 0.0
          %1150 = vmatprep.subr.mxu0 0.0
          %1151 = vmatpush1.msra.mxu0 0.0
          %1152 = vmatprep.subr.mxu0 0.0
          %1153 = vmatpush1.msra.mxu0 0.0
          %1154 = vmatprep.subr.mxu0 0.0
          %1155 = vmatpush1.msra.mxu0 0.0
          %1156 = vmatprep.subr.mxu0 0.0
          %1157 = vmatpush1.msra.mxu0 0.0
          %1158 = vmatprep.subr.mxu0 0.0
          %1159 = vmatpush1.msra.mxu0 0.0
          %1160 = vmatprep.subr.mxu0 0.0
          %1161 = vmatpush1.msra.mxu0 0.0
          %1162 = vmatprep.subr.mxu0 0.0
          %1163 = vmatpush1.msra.mxu0 0.0
          %1164 = vmatprep.subr.mxu0 0.0
          %1165 = vmatpush1.msra.mxu0 0.0
          %1166 = vmatprep.subr.mxu0 0.0
          %1167 = vmatpush1.msra.mxu0 0.0
          %1168 = vmatprep.subr.mxu0 0.0
          %1169 = vmatpush1.msra.mxu0 0.0
          %1170 = vmatprep.subr.mxu0 0.0
          %1171 = vmatpush1.msra.mxu0 0.0
          %1172 = vmatprep.subr.mxu0 0.0
          %1173 = vmatpush1.msra.mxu0 0.0
          %1174 = vmatprep.subr.mxu0 0.0
          %1175 = vmatpush1.msra.mxu0 0.0
          %1176 = vmatprep.subr.mxu0 0.0
          %1177 = vmatpush1.msra.mxu0 0.0
          %1178 = vmatprep.subr.mxu0 0.0
          %1179 = vmatpush1.msra.mxu0 0.0
          %1180 = vmatprep.subr.mxu0 0.0
          %1181 = vmatpush1.msra.mxu0 0.0
          %1182 = vmatprep.subr.mxu0 0.0
          %1183 = vmatpush1.msra.mxu0 0.0
          %1184 = vmatprep.subr.mxu0 0.0
          %1185 = vmatpush1.msra.mxu0 0.0
          %1186 = vmatprep.subr.mxu0 0.0
          %1187 = vmatpush1.msra.mxu0 0.0
          %1188 = vmatprep.subr.mxu0 0.0
          %1189 = vmatpush1.msra.mxu0 0.0
          %1190 = vmatprep.mubr.f32.mxu0 0.0
          %1191 = vmatmul.mubr.f32.gmra.mrb[0].mxu0 %v1124
          %v1192 = vpop.f32.mrb[0].mxu0
          %v1193 = vadd.f32 1e-12, %v1192
          %v1194 = vpop.f32.mrb[0].mxu0
          %1195 = vdwg.mxu0
          %v1196 = vrsqrt.pop %v1193
          %v1197 = vld [vmem:[%s16] sm:$0x3]
          %vm1198 = vcmask 15360
          %v1200 = vsel %vm1198, %v1196, 0
          %vm1202 = vcmask 1041408
          %v1204 = vsel %vm1202, %v1197, 0
          %1206 = vmatprep.subr.mxu0 0.0
          %1207 = vmatpush1.msra.mxu0 %v1204
          %1208 = vmatprep.subr.mxu0 0.0
          %1209 = vmatpush1.msra.mxu0 0.0
          %1210 = vmatprep.subr.mxu0 0.0
          %1211 = vmatpush1.msra.mxu0 0.0
          %1212 = vmatprep.subr.mxu0 0.0
          %1213 = vmatpush1.msra.mxu0 0.0
          %1214 = vmatprep.subr.mxu0 0.0
          %1215 = vmatpush1.msra.mxu0 0.0
          %1216 = vmatprep.subr.mxu0 0.0
          %1217 = vmatpush1.msra.mxu0 0.0
          %1218 = vmatprep.subr.mxu0 0.0
          %1219 = vmatpush1.msra.mxu0 0.0
          %1220 = vmatprep.subr.mxu0 0.0
          %1221 = vmatpush1.msra.mxu0 0.0
          %1222 = vmatprep.subr.mxu0 0.0
          %1223 = vmatpush1.msra.mxu0 0.0
          %1224 = vmatprep.subr.mxu0 0.0
          %1225 = vmatpush1.msra.mxu0 0.0
          %1226 = vmatprep.subr.mxu0 0.0
          %1227 = vmatpush1.msra.mxu0 0.0
          %1228 = vmatprep.subr.mxu0 0.0
          %1229 = vmatpush1.msra.mxu0 0.0
          %1230 = vmatprep.subr.mxu0 0.0
          %1231 = vmatpush1.msra.mxu0 0.0
          %1232 = vmatprep.subr.mxu0 0.0
          %1233 = vmatpush1.msra.mxu0 0.0
          %1234 = vmatprep.subr.mxu0 0.0
          %1235 = vmatpush1.msra.mxu0 0.0
          %1236 = vmatprep.subr.mxu0 0.0
          %1237 = vmatpush1.msra.mxu0 0.0
          %1238 = vmatprep.subr.mxu0 0.0
          %1239 = vmatpush1.msra.mxu0 0.0
          %1240 = vmatprep.subr.mxu0 0.0
          %1241 = vmatpush1.msra.mxu0 0.0
          %1242 = vmatprep.subr.mxu0 0.0
          %1243 = vmatpush1.msra.mxu0 0.0
          %1244 = vmatprep.subr.mxu0 0.0
          %1245 = vmatpush1.msra.mxu0 0.0
          %1246 = vmatprep.subr.mxu0 0.0
          %1247 = vmatpush1.msra.mxu0 0.0
          %1248 = vmatprep.subr.mxu0 0.0
          %1249 = vmatpush1.msra.mxu0 0.0
          %1250 = vmatprep.subr.mxu0 0.0
          %1251 = vmatpush1.msra.mxu0 0.0
          %1252 = vmatprep.subr.mxu0 0.0
          %1253 = vmatpush1.msra.mxu0 0.0
          %1254 = vmatprep.subr.mxu0 0.0
          %1255 = vmatpush1.msra.mxu0 0.0
          %1256 = vmatprep.subr.mxu0 0.0
          %1257 = vmatpush1.msra.mxu0 0.0
          %1258 = vmatprep.subr.mxu0 0.0
          %1259 = vmatpush1.msra.mxu0 0.0
          %1260 = vmatprep.subr.mxu0 0.0
          %1261 = vmatpush1.msra.mxu0 0.0
          %1262 = vmatprep.subr.mxu0 0.0
          %1263 = vmatpush1.msra.mxu0 0.0
          %1264 = vmatprep.subr.mxu0 0.0
          %1265 = vmatpush1.msra.mxu0 0.0
          %1266 = vmatprep.subr.mxu0 0.0
          %1267 = vmatpush1.msra.mxu0 0.0
          %1268 = vmatprep.subr.mxu0 0.0
          %1269 = vmatpush1.msra.mxu0 0.0
          %1270 = vmatprep.mubr.f32.mxu0 0.0
          %1271 = vmatmul.mubr.f32.gmra.mrb[0].mxu0 %v1200
          %v1272 = vpop.f32.mrb[0].mxu0
          %v1273 = vadd.f32 0.0, %v1272
          %v1274 = vpop.f32.mrb[0].mxu0
          %1275 = vdwg.mxu0
          %v1276 = vmul.f32 %v1273, 0.25
          %v1277 = vmul.f32 %v1117, %v1276
          %v1278 = vpack.c.bf16 %v1277, %v1277
          %v1279 = vld [vmem:[#allocation3] sm:$0xff]
          %v1280 = vld [vmem:[#allocation3 + $0x8] sm:$0xff]
          %v1282 = vsel %vm1068, %v1278, 0
          %1284 = vmatprep.subr.bf16.mxu0 0
          %1285 = vmatpush1.bf16.msra.mxu0 %v1279
          %1286 = vmatprep.subr.bf16.mxu0 0
          %1287 = vmatpush1.bf16.msra.mxu0 %v1280
          %1288 = vmatprep.subr.bf16.mxu0 0
          %1289 = vmatpush1.bf16.msra.mxu0 0
          %1290 = vmatprep.subr.bf16.mxu0 0
          %1291 = vmatpush1.bf16.msra.mxu0 0
          %1292 = vmatprep.subr.bf16.mxu0 0
          %1293 = vmatpush1.bf16.msra.mxu0 0
          %1294 = vmatprep.subr.bf16.mxu0 0
          %1295 = vmatpush1.bf16.msra.mxu0 0
          %1296 = vmatprep.subr.bf16.mxu0 0
          %1297 = vmatpush1.bf16.msra.mxu0 0
          %1298 = vmatprep.subr.bf16.mxu0 0
          %1299 = vmatpush1.bf16.msra.mxu0 0
          %1300 = vmatprep.subr.bf16.mxu0 0
          %1301 = vmatpush1.bf16.msra.mxu0 0
          %1302 = vmatprep.subr.bf16.mxu0 0
          %1303 = vmatpush1.bf16.msra.mxu0 0
          %1304 = vmatprep.subr.bf16.mxu0 0
          %1305 = vmatpush1.bf16.msra.mxu0 0
          %1306 = vmatprep.subr.bf16.mxu0 0
          %1307 = vmatpush1.bf16.msra.mxu0 0
          %1308 = vmatprep.subr.bf16.mxu0 0
          %1309 = vmatpush1.bf16.msra.mxu0 0
          %1310 = vmatprep.subr.bf16.mxu0 0
          %1311 = vmatpush1.bf16.msra.mxu0 0
          %1312 = vmatprep.subr.bf16.mxu0 0
          %1313 = vmatpush1.bf16.msra.mxu0 0
          %1314 = vmatprep.subr.bf16.mxu0 0
          %1315 = vmatpush1.bf16.msra.mxu0 0
          %1316 = vmatprep.mubr.bf16.mxu0 0
          %1317 = vmatmul.mubr.bf16.gmra.mrb[0].mxu0 %v1282
          %v1318 = vpop.f32.mrb[0].mxu0
          %v1319 = vadd.f32 0.0, %v1318
          %v1320 = vpop.f32.mrb[0].mxu0
          %v1321 = vpop.f32.mrb[0].mxu0
          %v1322 = vpop.f32.mrb[0].mxu0
          %1323 = vdwg.mxu0
          %v1324 = vpack.c.bf16 %v1319, %v1319
          %v1325 = vld [vmem:[%s5] sm:$0xf]
          %v1326 = vld [vmem:[%s5 + $0x4] sm:$0xf]
          %v1327 = vld [vmem:[%s5 + $0x8] sm:$0xf]
          %v1328 = vld [vmem:[%s5 + $0xc] sm:$0xf]
          %v1329 = vld [vmem:[%s6] sm:$0x1]
          %v1331 = vlaneseq
          %v1332 = vshrl.u32 %v1331, 7
          %v1333 = vsub.s32 0, %v1332
          %v1334 = vrot.slane %v1329, %v1333
          %v1340 = vunpack.c.l.b16 %v1325
          %v1341 = vunpack.c.l.b16 %v1326
          %v1342 = vunpack.c.l.b16 %v1327
          %v1343 = vunpack.c.l.b16 %v1328
          %v1344 = vpack.c.b16 %v1341, %v1340
          %v1345 = vpack.c.b16 %v1343, %v1342
          %v1349 = vsel %vm1068, %v1324, 0
          %1351 = vmatprep.subr.bf16.mxu0 0
          %1352 = vmatpush1.bf16.msra.mxu0 %v1344
          %1353 = vmatprep.subr.bf16.mxu0 0
          %1354 = vmatpush1.bf16.msra.mxu0 %v1345
          %1355 = vmatprep.subr.bf16.mxu0 0
          %1356 = vmatpush1.bf16.msra.mxu0 0
          %1357 = vmatprep.subr.bf16.mxu0 0
          %1358 = vmatpush1.bf16.msra.mxu0 0
          %1359 = vmatprep.subr.bf16.mxu0 0
          %1360 = vmatpush1.bf16.msra.mxu0 0
          %1361 = vmatprep.subr.bf16.mxu0 0
          %1362 = vmatpush1.bf16.msra.mxu0 0
          %1363 = vmatprep.subr.bf16.mxu0 0
          %1364 = vmatpush1.bf16.msra.mxu0 0
          %1365 = vmatprep.subr.bf16.mxu0 0
          %1366 = vmatpush1.bf16.msra.mxu0 0
          %1367 = vmatprep.subr.bf16.mxu0 0
          %1368 = vmatpush1.bf16.msra.mxu0 0
          %1369 = vmatprep.subr.bf16.mxu0 0
          %1370 = vmatpush1.bf16.msra.mxu0 0
          %1371 = vmatprep.subr.bf16.mxu0 0
          %1372 = vmatpush1.bf16.msra.mxu0 0
          %1373 = vmatprep.subr.bf16.mxu0 0
          %1374 = vmatpush1.bf16.msra.mxu0 0
          %1375 = vmatprep.subr.bf16.mxu0 0
          %1376 = vmatpush1.bf16.msra.mxu0 0
          %1377 = vmatprep.subr.bf16.mxu0 0
          %1378 = vmatpush1.bf16.msra.mxu0 0
          %1379 = vmatprep.subr.bf16.mxu0 0
          %1380 = vmatpush1.bf16.msra.mxu0 0
          %1381 = vmatprep.subr.bf16.mxu0 0
          %1382 = vmatpush1.bf16.msra.mxu0 0
          %1383 = vmatprep.mubr.bf16.mxu0 0
          %1384 = vmatmul.mubr.bf16.gmra.mrb[0].mxu0 %v1349
          %v1385 = vpop.f32.mrb[0].mxu0
          %v1386 = vadd.f32 %v1334, %v1385
          %v1387 = vpop.f32.mrb[0].mxu0
          %v1388 = vpop.f32.mrb[0].mxu0
          %v1389 = vpop.f32.mrb[0].mxu0
          %1390 = vdwg.mxu0
          %v1391 = vadd.f32 %v1386, %v1044
          %v1392 = vld [vmem:[%s7] sm:$0x1]
          %v1393 = vld [vmem:[%s8] sm:$0x1]
          %v1394 = vsel %vm1068, %v1391, 0.0
          %1395 = vadd.xlane.f32.xlu0 %v1394
          %v1396 = vpop.xlane.xlu0 %1395
          %v1397 = vrcp.pop 32.0
          %v1398 = vmul.f32 %v1396, %v1397
          %v1399 = vsub.f32 %v1391, %v1398
          %v1400 = vmul.f32 %v1399, %v1399
          %v1401 = vsel %vm1068, %v1400, 0.0
          %1402 = vadd.xlane.f32.xlu0 %v1401
          %v1403 = vpop.xlane.xlu0 %1402
          %v1404 = vmul.f32 %v1403, %v1397
          %v1405 = vadd.f32 %v1404, 1e-12
          %v1406 = vrsqrt.pop %v1405
          %v1407 = vmul.f32 %v1399, %v1406
          %v1409 = vlaneseq
          %v1410 = vshrl.u32 %v1409, 7
          %v1411 = vsub.s32 0, %v1410
          %v1412 = vrot.slane %v1392, %v1411
          %v1414 = vmul.f32 %v1407, %v1412
          %v1416 = vlaneseq
          %v1417 = vshrl.u32 %v1416, 7
          %v1418 = vsub.s32 0, %v1417
          %v1419 = vrot.slane %v1393, %v1418
          %v1421 = vadd.f32 %v1414, %v1419
          %v1422 = vpack.c.bf16 %v1421, %v1421
          %v1423 = vld [vmem:[%s9] sm:$0xf]
          %v1424 = vld [vmem:[%s9 + $0x4] sm:$0xf]
          %v1425 = vld [vmem:[%s9 + $0x8] sm:$0xf]
          %v1426 = vld [vmem:[%s9 + $0xc] sm:$0xf]
          %v1427 = vld [vmem:[%s10] sm:$0x1]
          %v1429 = vlaneseq
          %v1430 = vshrl.u32 %v1429, 7
          %v1431 = vsub.s32 0, %v1430
          %v1432 = vrot.slane %v1427, %v1431
          %v1438 = vunpack.c.l.b16 %v1423
          %v1439 = vunpack.c.l.b16 %v1424
          %v1440 = vunpack.c.l.b16 %v1425
          %v1441 = vunpack.c.l.b16 %v1426
          %v1442 = vpack.c.b16 %v1439, %v1438
          %v1443 = vpack.c.b16 %v1441, %v1440
          %v1447 = vsel %vm1068, %v1422, 0
          %1449 = vmatprep.subr.bf16.mxu0 0
          %1450 = vmatpush1.bf16.msra.mxu0 %v1442
          %1451 = vmatprep.subr.bf16.mxu0 0
          %1452 = vmatpush1.bf16.msra.mxu0 %v1443
          %1453 = vmatprep.subr.bf16.mxu0 0
          %1454 = vmatpush1.bf16.msra.mxu0 0
          %1455 = vmatprep.subr.bf16.mxu0 0
          %1456 = vmatpush1.bf16.msra.mxu0 0
          %1457 = vmatprep.subr.bf16.mxu0 0
          %1458 = vmatpush1.bf16.msra.mxu0 0
          %1459 = vmatprep.subr.bf16.mxu0 0
          %1460 = vmatpush1.bf16.msra.mxu0 0
          %1461 = vmatprep.subr.bf16.mxu0 0
          %1462 = vmatpush1.bf16.msra.mxu0 0
          %1463 = vmatprep.subr.bf16.mxu0 0
          %1464 = vmatpush1.bf16.msra.mxu0 0
          %1465 = vmatprep.subr.bf16.mxu0 0
          %1466 = vmatpush1.bf16.msra.mxu0 0
          %1467 = vmatprep.subr.bf16.mxu0 0
          %1468 = vmatpush1.bf16.msra.mxu0 0
          %1469 = vmatprep.subr.bf16.mxu0 0
          %1470 = vmatpush1.bf16.msra.mxu0 0
          %1471 = vmatprep.subr.bf16.mxu0 0
          %1472 = vmatpush1.bf16.msra.mxu0 0
          %1473 = vmatprep.subr.bf16.mxu0 0
          %1474 = vmatpush1.bf16.msra.mxu0 0
          %1475 = vmatprep.subr.bf16.mxu0 0
          %1476 = vmatpush1.bf16.msra.mxu0 0
          %1477 = vmatprep.subr.bf16.mxu0 0
          %1478 = vmatpush1.bf16.msra.mxu0 0
          %1479 = vmatprep.subr.bf16.mxu0 0
          %1480 = vmatpush1.bf16.msra.mxu0 0
          %1481 = vmatprep.mubr.bf16.mxu0 0
          %1482 = vmatmul.mubr.bf16.gmra.mrb[0].mxu0 %v1447
          %v1483 = vpop.f32.mrb[0].mxu0
          %v1484 = vadd.f32 %v1432, %v1483
          %v1485 = vpop.f32.mrb[0].mxu0
          %v1486 = vpop.f32.mrb[0].mxu0
          %v1487 = vpop.f32.mrb[0].mxu0
          %1488 = vdwg.mxu0
          %v1489 = vmul.f32 %v1484, 0.5
          %v1490 = vmul.f32 %v1484, 0.70710677
          %v1491 = verf.f32.pop %v1490
          %v1492 = vadd.f32 %v1491, 1.0
          %v1493 = vmul.f32 %v1489, %v1492
          %v1494 = vpack.c.bf16 %v1493, %v1493
          %v1495 = vld [vmem:[%s11] sm:$0xf]
          %v1496 = vld [vmem:[%s11 + $0x4] sm:$0xf]
          %v1497 = vld [vmem:[%s11 + $0x8] sm:$0xf]
          %v1498 = vld [vmem:[%s11 + $0xc] sm:$0xf]
          %v1499 = vld [vmem:[%s11 + $0x10] sm:$0xf]
          %v1500 = vld [vmem:[%s11 + $0x14] sm:$0xf]
          %v1501 = vld [vmem:[%s11 + $0x18] sm:$0xf]
          %v1502 = vld [vmem:[%s11 + $0x1c] sm:$0xf]
          %v1503 = vld [vmem:[%s12] sm:$0x1]
          %v1505 = vlaneseq
          %v1506 = vshrl.u32 %v1505, 7
          %v1507 = vsub.s32 0, %v1506
          %v1508 = vrot.slane %v1503, %v1507
          %v1518 = vunpack.c.l.b16 %v1495
          %v1519 = vunpack.c.l.b16 %v1496
          %v1520 = vunpack.c.l.b16 %v1497
          %v1521 = vunpack.c.l.b16 %v1498
          %v1522 = vunpack.c.l.b16 %v1499
          %v1523 = vunpack.c.l.b16 %v1500
          %v1524 = vunpack.c.l.b16 %v1501
          %v1525 = vunpack.c.l.b16 %v1502
          %v1526 = vpack.c.b16 %v1519, %v1518
          %v1527 = vpack.c.b16 %v1521, %v1520
          %v1528 = vpack.c.b16 %v1523, %v1522
          %v1529 = vpack.c.b16 %v1525, %v1524
          %vm1534 = vcmask 523264
          %v1536 = vsel %vm1534, %v1494, 0
          %1538 = vmatprep.subr.bf16.mxu0 0
          %1539 = vmatpush1.bf16.msra.mxu0 %v1526
          %1540 = vmatprep.subr.bf16.mxu0 0
          %1541 = vmatpush1.bf16.msra.mxu0 %v1527
          %1542 = vmatprep.subr.bf16.mxu0 0
          %1543 = vmatpush1.bf16.msra.mxu0 %v1528
          %1544 = vmatprep.subr.bf16.mxu0 0
          %1545 = vmatpush1.bf16.msra.mxu0 %v1529
          %1546 = vmatprep.subr.bf16.mxu0 0
          %1547 = vmatpush1.bf16.msra.mxu0 0
          %1548 = vmatprep.subr.bf16.mxu0 0
          %1549 = vmatpush1.bf16.msra.mxu0 0
          %1550 = vmatprep.subr.bf16.mxu0 0
          %1551 = vmatpush1.bf16.msra.mxu0 0
          %1552 = vmatprep.subr.bf16.mxu0 0
          %1553 = vmatpush1.bf16.msra.mxu0 0
          %1554 = vmatprep.subr.bf16.mxu0 0
          %1555 = vmatpush1.bf16.msra.mxu0 0
          %1556 = vmatprep.subr.bf16.mxu0 0
          %1557 = vmatpush1.bf16.msra.mxu0 0
          %1558 = vmatprep.subr.bf16.mxu0 0
          %1559 = vmatpush1.bf16.msra.mxu0 0
          %1560 = vmatprep.subr.bf16.mxu0 0
          %1561 = vmatpush1.bf16.msra.mxu0 0
          %1562 = vmatprep.subr.bf16.mxu0 0
          %1563 = vmatpush1.bf16.msra.mxu0 0
          %1564 = vmatprep.subr.bf16.mxu0 0
          %1565 = vmatpush1.bf16.msra.mxu0 0
          %1566 = vmatprep.subr.bf16.mxu0 0
          %1567 = vmatpush1.bf16.msra.mxu0 0
          %1568 = vmatprep.subr.bf16.mxu0 0
          %1569 = vmatpush1.bf16.msra.mxu0 0
          %1570 = vmatprep.mubr.bf16.mxu0 0
          %1571 = vmatmul.mubr.bf16.gmra.mrb[0].mxu0 %v1536
          %v1572 = vpop.f32.mrb[0].mxu0
          %v1573 = vadd.f32 %v1508, %v1572
          %v1574 = vpop.f32.mrb[0].mxu0
          %v1575 = vpop.f32.mrb[0].mxu0
          %v1576 = vpop.f32.mrb[0].mxu0
          %1577 = vdwg.mxu0
          %v1578 = vadd.f32 %v1573, %v1421
          %v1579 = vld [vmem:[%s13] sm:$0x1]
          %v1580 = vld [vmem:[%s14] sm:$0x1]
          %v1581 = vsel %vm1068, %v1578, 0.0
          %1582 = vadd.xlane.f32.xlu0 %v1581
          %v1583 = vpop.xlane.xlu0 %1582
          %v1584 = vmul.f32 %v1583, %v1397
          %v1585 = vsub.f32 %v1578, %v1584
          %v1586 = vmul.f32 %v1585, %v1585
          %v1587 = vsel %vm1068, %v1586, 0.0
          %1588 = vadd.xlane.f32.xlu0 %v1587
          %v1589 = vpop.xlane.xlu0 %1588
          %v1590 = vmul.f32 %v1589, %v1397
          %v1591 = vadd.f32 %v1590, 1e-12
          %v1592 = vrsqrt.pop %v1591
          %v1593 = vmul.f32 %v1585, %v1592
          %v1595 = vlaneseq
          %v1596 = vshrl.u32 %v1595, 7
          %v1597 = vsub.s32 0, %v1596
          %v1598 = vrot.slane %v1579, %v1597
          %v1600 = vmul.f32 %v1593, %v1598
          %v1602 = vlaneseq
          %v1603 = vshrl.u32 %v1602, 7
          %v1604 = vsub.s32 0, %v1603
          %v1605 = vrot.slane %v1580, %v1604
          %v1607 = vadd.f32 %v1600, %v1605
          %1608 = vst.msk [vmem:[%s570] sm:$0xff] %vm1068, %v1607
        $region104: #{tpu_custom_call.1} parent=87 // pred_fallthru
          _
        %s1609 = sand.u32 %s426, 1
        %s1610 = scalar_lea.sflag [#allocation5], %s1609
        %s1611 = sand.u32 %s426, 1
        %s1612 = smul.addr %s1611, 8
        %s1613 = scalar_lea.vmem [#allocation4], %s1612
        // Predicated region
        $region105: #{tpu_custom_call.1} parent=87 // pred_check
          %p1614 = pneg %p436
        $region106: #{tpu_custom_call.1} parent=87 // pred_check_branch
          %1616 = sbr.rel (%p1614) target = $region108
        $region107: #{tpu_custom_call.1} parent=87 // pred_region
          %s1617 = smul.u32 %s38, %s37
          %s1619 = ssub.s32 128, 128
          %1620 = vsyncadd %s1610, %s1619
          %s1621 = sadd.s32 %s1617, %s36
          %s1622 = smul.addr %s1621, 128
          %s1623 = scalar_lea.hbm %s17, %s1622
          %s1625 = sshll.u32 %s1613, 4
          %s1626 = int_to_ptr.vmem [resolvable:$true] %s1625
          %1628 = dma.vmem_to_hbm [thread:$0]  %s1626, 128, %s1623, %s1610
        $region108: #{tpu_custom_call.1} parent=87 // pred_fallthru
          _
      $region88: #{tpu_custom_call.1} parent=5 // pred_fallthru
        _
      %p1629 = scmp.le.s32.totalorder 2, %s26
      // Predicated region
      $region109: #{tpu_custom_call.1} parent=5 // pred_check
        %p1630 = pneg %p1629
      $region110: #{tpu_custom_call.1} parent=5 // pred_check_branch
        %1632 = sbr.rel (%p1630) target = $region112
      $region111: #{tpu_custom_call.1} parent=5 // pred_region
        %s1633 = ssub.s32 %s26, 2
        // Predicated region
        $region113: #{tpu_custom_call.1} parent=111 // pred_check
          %p1634 = pneg %p442
        $region114: #{tpu_custom_call.1} parent=111 // pred_check_branch
          %1636 = sbr.rel (%p1634) target = $region116
        $region115: #{tpu_custom_call.1} parent=111 // pred_region
          %s1637 = sand.u32 %s427, 1
          %s1638 = scalar_lea.sflag [#allocation5], %s1637
          %s1639 = sand.u32 %s427, 1
          %s1640 = smul.addr %s1639, 8
          %s1641 = scalar_lea.vmem [#allocation4], %s1640
          %1642 = dma.done %s1638, 128
        $region116: #{tpu_custom_call.1} parent=111 // pred_fallthru
          _
      $region112: #{tpu_custom_call.1} parent=5 // pred_fallthru
        _
    $region6: #{tpu_custom_call.1} parent=1 // loop_footer
      %s30 = sadd.s32 1, %s26
    $region7: #{tpu_custom_call.1} parent=1 // loop_footer_branch
      %25 = sbr.rel target = $region3
    $region8: #{tpu_custom_call.1} parent=1 // loop_exit
      _
    %1643 = vsyncpa [#allocation5], 1
    %s1644 = scalar_lea.sflag [#allocation5], 1
    %1645 = vsyncpa %s1644, 1

</llo_original>
